<compile_context>
chip_gen: v5e
topology: v5e:2x2
jax: 0.10.0
libtpu: 0.0.40
codegen_flags: <defaults>
</compile_context>

<pallas_src>
import jax
import jax.numpy as jnp
from jax.experimental import pallas as pl
from jax.experimental.pallas import tpu as pltpu


def _leaky_relu(x, slope=0.2):
    return jnp.where(x > 0, x, slope * x)


def _round_up(n, m):
    return (n + m - 1) // m * m


def _discriminator_kernel(
    x_ref,
    w1_ref, b1_ref,
    w2_ref, b2_ref,
    w3_ref, b3_ref,
    w4_ref, b4_ref,
    w5_ref, b5_ref,
    out_ref,
    acc_ref,
):
    k = pl.program_id(1)

    @pl.when(k == 0)
    def _():
        acc_ref[...] = jnp.zeros_like(acc_ref)

    # Layer 1 (possibly K-tiled): bf16 x-tile @ bf16 W1-block, f32 accumulation.
    acc_ref[...] += jnp.dot(x_ref[...], w1_ref[...],
                            preferred_element_type=jnp.float32)

    @pl.when(k == pl.num_programs(1) - 1)
    def _():
        # Bias + LeakyReLU in f32, materialize once as bf16 for the next MXU op.
        h = _leaky_relu(acc_ref[...] + b1_ref[...]).astype(jnp.bfloat16)
        h = _leaky_relu(jnp.dot(h, w2_ref[...], preferred_element_type=jnp.float32)
                        + b2_ref[...]).astype(jnp.bfloat16)
        h = _leaky_relu(jnp.dot(h, w3_ref[...], preferred_element_type=jnp.float32)
                        + b3_ref[...]).astype(jnp.bfloat16)
        h = _leaky_relu(jnp.dot(h, w4_ref[...], preferred_element_type=jnp.float32)
                        + b4_ref[...]).astype(jnp.bfloat16)
        # Final 128 -> 1: keep it off the MXU (N=1 wastes the array); VPU
        # broadcast-multiply + lane reduction instead.
        w5 = w5_ref[...].astype(jnp.float32)                      # (1, 128)
        v = jnp.sum(h.astype(jnp.float32) * w5, axis=-1, keepdims=True) + b5_ref[...]
        out_ref[...] = v.astype(out_ref.dtype)


# Keep W1 fully VMEM-resident only while it is comfortably small (v7x has just
# 64 MiB VMEM); beyond this, stream it in K tiles into the f32 accumulator.
_W1_RESIDENT_LIMIT_BYTES = 16 << 20
_W1_K_TILE = 2048


@jax.jit
def discriminator_forward(img, params):
    """img: (B, C, H, W) float32 (NCHW as in PyTorch). Returns (B, 1) f32."""
    B = img.shape[0]
    (w1, b1), (w2, b2), (w3, b3), (w4, b4), (w5, b5) = params
    D, H1 = w1.shape

    # Flatten + bf16 downcast fused into one XLA op (same as img.view(B, -1),
    # but the only moving HBM stream into the kernel is now half the bytes).
    x = img.reshape(B, -1).astype(jnp.bfloat16)
    assert x.shape[1] == D

    # Batch tile: multiple of 16 (bf16 sublane packing); guarantee >= 2 grid
    # steps once B >= 32 so the "parallel" axis shards across both v7x
    # TensorCores; grow to 512 for big batches to amortize per-step overhead.
    base_tb = 512 if B >= 2048 else 256
    TB = min(base_tb, max(16, _round_up(-(-B // 2), 16)))
    B_pad = _round_up(B, TB)

    # Layer-1 K tiling guard for large input dims.
    if D * H1 * 2 <= _W1_RESIDENT_LIMIT_BYTES:
        TK = D
    else:
        TK = _W1_K_TILE
    D_pad = _round_up(D, TK)

    if B_pad != B or D_pad != D:
        x = jnp.pad(x, ((0, B_pad - B), (0, D_pad - D)))   # zero rows/cols sliced/ignored
    if D_pad != D:
        w1 = jnp.pad(w1, ((0, D_pad - D), (0, 0)))

    w5_row = w5.reshape(1, -1)                              # (128, 1) -> (1, 128)

    grid = (B_pad // TB, D_pad // TK)

    def resident(shape):
        # Constant block index -> DMA'd once, stays VMEM-resident across steps.
        return pl.BlockSpec(shape, lambda i, k: tuple(0 for _ in shape))

    in_specs = [
        pl.BlockSpec((TB, TK), lambda i, k: (i, k)),        # activations move with grid
        pl.BlockSpec((TK, H1), lambda i, k: (k, 0)),        # W1: resident if TK == D
        resident(b1.shape),
        resident(w2.shape), resident(b2.shape),
        resident(w3.shape), resident(b3.shape),
        resident(w4.shape), resident(b4.shape),
        resident(w5_row.shape), resident(b5.shape),
    ]
    out_spec = pl.BlockSpec((TB, 1), lambda i, k: (i, 0))

    operands = (x, w1, b1, w2, b2, w3, b3, w4, b4, w5_row, b5)

    layer_dims = [(D_pad, H1), (H1, 512), (512, 256), (256, 128), (128, 1)]
    flops = 2 * B_pad * sum(m * n for m, n in layer_dims)
    bytes_accessed = sum(int(op.size) * op.dtype.itemsize for op in operands) + B_pad * 4

    # Footprint is ~8-16 MiB in the resident case; allow a bit more headroom
    # when TB is large or W1 is streamed, but stay well under v7x's 64 MiB.
    vmem_limit = (48 << 20) if (TB >= 512 or TK != D) else (32 << 20)

    out = pl.pallas_call(
        _discriminator_kernel,
        out_shape=jax.ShapeDtypeStruct((B_pad, 1), jnp.float32),
        grid=grid,
        in_specs=in_specs,
        out_specs=out_spec,
        scratch_shapes=[pltpu.VMEM((TB, H1), jnp.float32)],
        compiler_params=pltpu.CompilerParams(
            dimension_semantics=("parallel", "arbitrary"),
            vmem_limit_bytes=vmem_limit,
        ),
        cost_estimate=pl.CostEstimate(
            flops=flops, transcendentals=0, bytes_accessed=bytes_accessed),
    )(*operands)

    return out[:B]


def init_params(key, in_dim):
    """nn.Linear-shaped params: weights stored (in, out) in bf16, biases (1, out) f32."""
    dims = [in_dim, 1024, 512, 256, 128, 1]
    params = []
    for i in range(len(dims) - 1):
        fan_in, fan_out = dims[i], dims[i + 1]
        key, kw, kb = jax.random.split(key, 3)
        bound = 1.0 / (fan_in ** 0.5)
        w = jax.random.uniform(kw, (fan_in, fan_out), jnp.float32, -bound, bound)
        b = jax.random.uniform(kb, (1, fan_out), jnp.float32, -bound, bound)
        params.append((w.astype(jnp.bfloat16), b))
    return params


def reference_forward(img, params):
    """Pure-JAX reference mirroring kernel numerics (bf16 operands, f32 accumulate)."""
    x = img.reshape(img.shape[0], -1).astype(jnp.bfloat16).astype(jnp.float32)
    hp = jax.lax.Precision.HIGHEST
    for (w, b) in params[:-1]:
        x = jnp.dot(x, w.astype(jnp.float32), precision=hp) + b
        x = jnp.where(x > 0, x, 0.2 * x)
        x = x.astype(jnp.bfloat16).astype(jnp.float32)   # kernel materializes bf16
    w5, b5 = params[-1]
    return jnp.sum(x * w5.astype(jnp.float32).reshape(1, -1),
                   axis=-1, keepdims=True) + b5


if __name__ == "__main__":
    # img_shape = (4, 16, 16) -> 1024 input features; batch = 2
    img_shape = (4, 16, 16)
    B = 2

    key = jax.random.PRNGKey(0)
    k_img, k_params = jax.random.split(key)
    img = jax.random.normal(k_img, (B,) + img_shape, dtype=jnp.float32)

    in_dim = 1
    for s in img_shape:
        in_dim *= s
    params = init_params(k_params, in_dim)

    out = jax.block_until_ready(discriminator_forward(img, params))
    ref = reference_forward(img, params)

    assert out.shape == (B, 1), out.shape
    assert jnp.allclose(out, ref, atol=1e-3, rtol=1e-3), (out, ref)

    print("KERNEL_OK")
</pallas_src>

<mosaic_0001>
module attributes {stable_mosaic.version = 11 : i64} {
  func.func @_discriminator_kernel(%arg0: i32, %arg1: i32, %arg2: memref<16x1024xbf16, #tpu.memory_space<vmem>>, %arg3: memref<1024x1024xbf16, #tpu.memory_space<vmem>>, %arg4: memref<1x1024xf32, #tpu.memory_space<vmem>>, %arg5: memref<1024x512xbf16, #tpu.memory_space<vmem>>, %arg6: memref<1x512xf32, #tpu.memory_space<vmem>>, %arg7: memref<512x256xbf16, #tpu.memory_space<vmem>>, %arg8: memref<1x256xf32, #tpu.memory_space<vmem>>, %arg9: memref<256x128xbf16, #tpu.memory_space<vmem>>, %arg10: memref<1x128xf32, #tpu.memory_space<vmem>>, %arg11: memref<1x128xbf16, #tpu.memory_space<vmem>>, %arg12: memref<1x1xf32, #tpu.memory_space<vmem>>, %arg13: memref<16x1xf32, #tpu.memory_space<vmem>>, %arg14: memref<16x1024xf32, #tpu.memory_space<vmem>>) attributes {dimension_semantics = [#tpu.dimension_semantics<parallel>, #tpu.dimension_semantics<arbitrary>], iteration_bounds = array<i64: 1, 1>, scalar_prefetch = 0 : i64, scratch_operands = 1 : i64, tpu.core_type = #tpu.core_type<tc>, window_params = [{transform_indices = @transform_0, window_bounds = array<i64: 16, 1024>}, {transform_indices = @transform_1, window_bounds = array<i64: 1024, 1024>}, {pipeline_mode = #tpu.pipeline_mode<synchronous>, transform_indices = @transform_2, window_bounds = array<i64: 1, 1024>}, {pipeline_mode = #tpu.pipeline_mode<synchronous>, transform_indices = @transform_3, window_bounds = array<i64: 1024, 512>}, {pipeline_mode = #tpu.pipeline_mode<synchronous>, transform_indices = @transform_4, window_bounds = array<i64: 1, 512>}, {pipeline_mode = #tpu.pipeline_mode<synchronous>, transform_indices = @transform_5, window_bounds = array<i64: 512, 256>}, {pipeline_mode = #tpu.pipeline_mode<synchronous>, transform_indices = @transform_6, window_bounds = array<i64: 1, 256>}, {pipeline_mode = #tpu.pipeline_mode<synchronous>, transform_indices = @transform_7, window_bounds = array<i64: 256, 128>}, {pipeline_mode = #tpu.pipeline_mode<synchronous>, transform_indices = @transform_8, window_bounds = array<i64: 1, 128>}, {pipeline_mode = #tpu.pipeline_mode<synchronous>, transform_indices = @transform_9, window_bounds = array<i64: 1, 128>}, {pipeline_mode = #tpu.pipeline_mode<synchronous>, transform_indices = @transform_10, window_bounds = array<i64: 1, 1>}, {transform_indices = @transform_11, window_bounds = array<i64: 16, 1>}]} {
    %c0_i32 = arith.constant 0 : i32
    %0 = arith.cmpi eq, %arg1, %c0_i32 : i32
    %1 = arith.extui %0 : i1 to i32
    %c0_i32_0 = arith.constant 0 : i32
    %2 = arith.cmpi ne, %1, %c0_i32_0 : i32
    scf.if %2 {
      %cst_10 = arith.constant 0.000000e+00 : f32
      %12 = vector.broadcast %cst_10 : f32 to vector<16x1024xf32>
      %c0_11 = arith.constant 0 : index
      %c0_12 = arith.constant 0 : index
      %13 = vector.load %arg14[%c0_11, %c0_12] : memref<16x1024xf32, #tpu.memory_space<vmem>>, vector<16x1024xf32>
      tpu.vector_store %arg14[%c0_11, %c0_12], %12 {strides = array<i32>} : memref<16x1024xf32, #tpu.memory_space<vmem>>, vector<16x1024xf32>,
    } else {
    }
    %c0 = arith.constant 0 : index
    %c0_1 = arith.constant 0 : index
    %3 = vector.load %arg14[%c0, %c0_1] : memref<16x1024xf32, #tpu.memory_space<vmem>>, vector<16x1024xf32>
    %c0_2 = arith.constant 0 : index
    %c0_3 = arith.constant 0 : index
    %4 = vector.load %arg2[%c0_2, %c0_3] : memref<16x1024xbf16, #tpu.memory_space<vmem>>, vector<16x1024xbf16>
    %c0_4 = arith.constant 0 : index
    %c0_5 = arith.constant 0 : index
    %5 = vector.load %arg3[%c0_4, %c0_5] : memref<1024x1024xbf16, #tpu.memory_space<vmem>>, vector<1024x1024xbf16>
    %cst = arith.constant dense<0.000000e+00> : vector<16x1024xf32>
    %6 = tpu.matmul %4, %5, %cst {dimension_numbers = #tpu.dot_dimension_numbers<[1], [0], [0], [1], [0, 0, 1, 1], [], []>} : vector<16x1024xbf16>, vector<1024x1024xbf16>, vector<16x1024xf32> -> vector<16x1024xf32>
    %7 = arith.addf %3, %6 : vector<16x1024xf32>
    %c0_6 = arith.constant 0 : index
    %c0_7 = arith.constant 0 : index
    %8 = vector.load %arg14[%c0_6, %c0_7] : memref<16x1024xf32, #tpu.memory_space<vmem>>, vector<16x1024xf32>
    tpu.vector_store %arg14[%c0_6, %c0_7], %7 {strides = array<i32>} : memref<16x1024xf32, #tpu.memory_space<vmem>>, vector<16x1024xf32>,
    %c0_i32_8 = arith.constant 0 : i32
    %9 = arith.cmpi eq, %arg1, %c0_i32_8 : i32
    %10 = arith.extui %9 : i1 to i32
    %c0_i32_9 = arith.constant 0 : i32
    %11 = arith.cmpi ne, %10, %c0_i32_9 : i32
    scf.if %11 {
      %c0_10 = arith.constant 0 : index
      %c0_11 = arith.constant 0 : index
      %12 = vector.load %arg14[%c0_10, %c0_11] : memref<16x1024xf32, #tpu.memory_space<vmem>>, vector<16x1024xf32>
      %c0_12 = arith.constant 0 : index
      %c0_13 = arith.constant 0 : index
      %13 = vector.load %arg4[%c0_12, %c0_13] : memref<1x1024xf32, #tpu.memory_space<vmem>>, vector<1x1024xf32>
      %14 = vector.broadcast %13 : vector<1x1024xf32> to vector<16x1024xf32>
      %15 = arith.addf %12, %14 : vector<16x1024xf32>
      %cst_14 = arith.constant 0.000000e+00 : f32
      %16 = vector.broadcast %cst_14 : f32 to vector<16x1024xf32>
      %17 = arith.cmpf ogt, %15, %16 : vector<16x1024xf32>
      %cst_15 = arith.constant 2.000000e-01 : f32
      %18 = vector.broadcast %cst_15 : f32 to vector<16x1024xf32>
      %19 = arith.mulf %18, %15 : vector<16x1024xf32>
      %20 = arith.select %17, %15, %19 : vector<16x1024xi1>, vector<16x1024xf32>
      %21 = arith.truncf %20 : vector<16x1024xf32> to vector<16x1024xbf16>
      %c0_16 = arith.constant 0 : index
      %c0_17 = arith.constant 0 : index
      %22 = vector.load %arg5[%c0_16, %c0_17] : memref<1024x512xbf16, #tpu.memory_space<vmem>>, vector<1024x512xbf16>
      %cst_18 = arith.constant dense<0.000000e+00> : vector<16x512xf32>
      %23 = tpu.matmul %21, %22, %cst_18 {dimension_numbers = #tpu.dot_dimension_numbers<[1], [0], [0], [1], [0, 0, 1, 1], [], []>} : vector<16x1024xbf16>, vector<1024x512xbf16>, vector<16x512xf32> -> vector<16x512xf32>
      %c0_19 = arith.constant 0 : index
      %c0_20 = arith.constant 0 : index
      %24 = vector.load %arg6[%c0_19, %c0_20] : memref<1x512xf32, #tpu.memory_space<vmem>>, vector<1x512xf32>
      %25 = vector.broadcast %24 : vector<1x512xf32> to vector<16x512xf32>
      %26 = arith.addf %23, %25 : vector<16x512xf32>
      %cst_21 = arith.constant 0.000000e+00 : f32
      %27 = vector.broadcast %cst_21 : f32 to vector<16x512xf32>
      %28 = arith.cmpf ogt, %26, %27 : vector<16x512xf32>
      %cst_22 = arith.constant 2.000000e-01 : f32
      %29 = vector.broadcast %cst_22 : f32 to vector<16x512xf32>
      %30 = arith.mulf %29, %26 : vector<16x512xf32>
      %31 = arith.select %28, %26, %30 : vector<16x512xi1>, vector<16x512xf32>
      %32 = arith.truncf %31 : vector<16x512xf32> to vector<16x512xbf16>
      %c0_23 = arith.constant 0 : index
      %c0_24 = arith.constant 0 : index
      %33 = vector.load %arg7[%c0_23, %c0_24] : memref<512x256xbf16, #tpu.memory_space<vmem>>, vector<512x256xbf16>
      %cst_25 = arith.constant dense<0.000000e+00> : vector<16x256xf32>
      %34 = tpu.matmul %32, %33, %cst_25 {dimension_numbers = #tpu.dot_dimension_numbers<[1], [0], [0], [1], [0, 0, 1, 1], [], []>} : vector<16x512xbf16>, vector<512x256xbf16>, vector<16x256xf32> -> vector<16x256xf32>
      %c0_26 = arith.constant 0 : index
      %c0_27 = arith.constant 0 : index
      %35 = vector.load %arg8[%c0_26, %c0_27] : memref<1x256xf32, #tpu.memory_space<vmem>>, vector<1x256xf32>
      %36 = vector.broadcast %35 : vector<1x256xf32> to vector<16x256xf32>
      %37 = arith.addf %34, %36 : vector<16x256xf32>
      %cst_28 = arith.constant 0.000000e+00 : f32
      %38 = vector.broadcast %cst_28 : f32 to vector<16x256xf32>
      %39 = arith.cmpf ogt, %37, %38 : vector<16x256xf32>
      %cst_29 = arith.constant 2.000000e-01 : f32
      %40 = vector.broadcast %cst_29 : f32 to vector<16x256xf32>
      %41 = arith.mulf %40, %37 : vector<16x256xf32>
      %42 = arith.select %39, %37, %41 : vector<16x256xi1>, vector<16x256xf32>
      %43 = arith.truncf %42 : vector<16x256xf32> to vector<16x256xbf16>
      %c0_30 = arith.constant 0 : index
      %c0_31 = arith.constant 0 : index
      %44 = vector.load %arg9[%c0_30, %c0_31] : memref<256x128xbf16, #tpu.memory_space<vmem>>, vector<256x128xbf16>
      %cst_32 = arith.constant dense<0.000000e+00> : vector<16x128xf32>
      %45 = tpu.matmul %43, %44, %cst_32 {dimension_numbers = #tpu.dot_dimension_numbers<[1], [0], [0], [1], [0, 0, 1, 1], [], []>} : vector<16x256xbf16>, vector<256x128xbf16>, vector<16x128xf32> -> vector<16x128xf32>
      %c0_33 = arith.constant 0 : index
      %c0_34 = arith.constant 0 : index
      %46 = vector.load %arg10[%c0_33, %c0_34] : memref<1x128xf32, #tpu.memory_space<vmem>>, vector<1x128xf32>
      %47 = vector.broadcast %46 : vector<1x128xf32> to vector<16x128xf32>
      %48 = arith.addf %45, %47 : vector<16x128xf32>
      %cst_35 = arith.constant 0.000000e+00 : f32
      %49 = vector.broadcast %cst_35 : f32 to vector<16x128xf32>
      %50 = arith.cmpf ogt, %48, %49 : vector<16x128xf32>
      %cst_36 = arith.constant 2.000000e-01 : f32
      %51 = vector.broadcast %cst_36 : f32 to vector<16x128xf32>
      %52 = arith.mulf %51, %48 : vector<16x128xf32>
      %53 = arith.select %50, %48, %52 : vector<16x128xi1>, vector<16x128xf32>
      %54 = arith.truncf %53 : vector<16x128xf32> to vector<16x128xbf16>
      %c0_37 = arith.constant 0 : index
      %c0_38 = arith.constant 0 : index
      %55 = vector.load %arg11[%c0_37, %c0_38] : memref<1x128xbf16, #tpu.memory_space<vmem>>, vector<1x128xbf16>
      %56 = arith.extf %55 : vector<1x128xbf16> to vector<1x128xf32>
      %57 = arith.extf %54 : vector<16x128xbf16> to vector<16x128xf32>
      %58 = vector.broadcast %56 : vector<1x128xf32> to vector<16x128xf32>
      %59 = arith.mulf %57, %58 : vector<16x128xf32>
      %cst_39 = arith.constant dense<0.000000e+00> : vector<16xf32>
      %60 = vector.multi_reduction <add>, %59, %cst_39 [1] : vector<16x128xf32> to vector<16xf32>
      %61 = vector.shape_cast %60 : vector<16xf32> to vector<16x1xf32>
      %c0_40 = arith.constant 0 : index
      %c0_41 = arith.constant 0 : index
      %62 = vector.load %arg12[%c0_40, %c0_41] : memref<1x1xf32, #tpu.memory_space<vmem>>, vector<1x1xf32>
      %63 = vector.broadcast %62 : vector<1x1xf32> to vector<16x1xf32>
      %64 = arith.addf %61, %63 : vector<16x1xf32>
      %c0_42 = arith.constant 0 : index
      %c0_43 = arith.constant 0 : index
      %65 = vector.load %arg13[%c0_42, %c0_43] : memref<16x1xf32, #tpu.memory_space<vmem>>, vector<16x1xf32>
      tpu.vector_store %arg13[%c0_42, %c0_43], %64 {strides = array<i32>} : memref<16x1xf32, #tpu.memory_space<vmem>>, vector<16x1xf32>,
    } else {
    }
    return
  }
  func.func @transform_0(%arg0: i32, %arg1: i32) -> (i32, i32) {
    %c0_i32 = arith.constant 0 : i32
    return %arg0, %arg1 : i32, i32
  }
  func.func @transform_1(%arg0: i32, %arg1: i32) -> (i32, i32) {
    %c0_i32 = arith.constant 0 : i32
    %c0_i32_0 = arith.constant 0 : i32
    return %arg1, %c0_i32 : i32, i32
  }
  func.func @transform_2(%arg0: i32, %arg1: i32) -> (i32, i32) {
    %c0_i32 = arith.constant 0 : i32
    %c0_i32_0 = arith.constant 0 : i32
    %c0_i32_1 = arith.constant 0 : i32
    return %c0_i32, %c0_i32_0 : i32, i32
  }
  func.func @transform_3(%arg0: i32, %arg1: i32) -> (i32, i32) {
    %c0_i32 = arith.constant 0 : i32
    %c0_i32_0 = arith.constant 0 : i32
    %c0_i32_1 = arith.constant 0 : i32
    return %c0_i32, %c0_i32_0 : i32, i32
  }
  func.func @transform_4(%arg0: i32, %arg1: i32) -> (i32, i32) {
    %c0_i32 = arith.constant 0 : i32
    %c0_i32_0 = arith.constant 0 : i32
    %c0_i32_1 = arith.constant 0 : i32
    return %c0_i32, %c0_i32_0 : i32, i32
  }
  func.func @transform_5(%arg0: i32, %arg1: i32) -> (i32, i32) {
    %c0_i32 = arith.constant 0 : i32
    %c0_i32_0 = arith.constant 0 : i32
    %c0_i32_1 = arith.constant 0 : i32
    return %c0_i32, %c0_i32_0 : i32, i32
  }
  func.func @transform_6(%arg0: i32, %arg1: i32) -> (i32, i32) {
    %c0_i32 = arith.constant 0 : i32
    %c0_i32_0 = arith.constant 0 : i32
    %c0_i32_1 = arith.constant 0 : i32
    return %c0_i32, %c0_i32_0 : i32, i32
  }
  func.func @transform_7(%arg0: i32, %arg1: i32) -> (i32, i32) {
    %c0_i32 = arith.constant 0 : i32
    %c0_i32_0 = arith.constant 0 : i32
    %c0_i32_1 = arith.constant 0 : i32
    return %c0_i32, %c0_i32_0 : i32, i32
  }
  func.func @transform_8(%arg0: i32, %arg1: i32) -> (i32, i32) {
    %c0_i32 = arith.constant 0 : i32
    %c0_i32_0 = arith.constant 0 : i32
    %c0_i32_1 = arith.constant 0 : i32
    return %c0_i32, %c0_i32_0 : i32, i32
  }
  func.func @transform_9(%arg0: i32, %arg1: i32) -> (i32, i32) {
    %c0_i32 = arith.constant 0 : i32
    %c0_i32_0 = arith.constant 0 : i32
    %c0_i32_1 = arith.constant 0 : i32
    return %c0_i32, %c0_i32_0 : i32, i32
  }
  func.func @transform_10(%arg0: i32, %arg1: i32) -> (i32, i32) {
    %c0_i32 = arith.constant 0 : i32
    %c0_i32_0 = arith.constant 0 : i32
    %c0_i32_1 = arith.constant 0 : i32
    return %c0_i32, %c0_i32_0 : i32, i32
  }
  func.func @transform_11(%arg0: i32, %arg1: i32) -> (i32, i32) {
    %c0_i32 = arith.constant 0 : i32
    %c0_i32_0 = arith.constant 0 : i32
    return %arg0, %c0_i32 : i32, i32
  }
}

</mosaic_0001>

<llo_original>
// kernel: discriminator_forward.1
$region0: #{discriminator_forward.1}
  #allocation0 [shape = 'u32[]', space=smem, size = 0x4, offset = 0x4, fixed_abs, tag = 'smem constant byte address 0x4 - core index']
  #allocation1 [shape = 'u32[72,128]{1,0:T(1,128)}', space=vmem, size = 0x9000, scoped, tag = 'internal scratch']
  #allocation2 [shape = 'f32[16,1024]{1,0:T(8,128)}', space=vmem, size = 0x10000, scoped, tag = 'scratch operand']
  #allocation3 [shape = 'f32[1,1]{1,0:T(1,128)S(1)}', space=vmem, size = 0x200, scoped, tag = 'scoped memory for discriminator_forward.1']
  %s0 = inlined_call_operand.vmem [shape: bf16[16,1024], index: 0, kind: input, shape index: {}]
  %s1 = inlined_call_operand.hbm [shape: bf16[1024,1024], index: 1, kind: input, shape index: {}]
  %s2 = inlined_call_operand.hbm [shape: f32[1,1024], index: 2, kind: input, shape index: {}]
  %s3 = inlined_call_operand.hbm [shape: bf16[1024,512], index: 3, kind: input, shape index: {}]
  %s4 = inlined_call_operand.hbm [shape: f32[1,512], index: 4, kind: input, shape index: {}]
  %s5 = inlined_call_operand.hbm [shape: bf16[512,256], index: 5, kind: input, shape index: {}]
  %s6 = inlined_call_operand.hbm [shape: f32[1,256], index: 6, kind: input, shape index: {}]
  %s7 = inlined_call_operand.hbm [shape: bf16[256,128], index: 7, kind: input, shape index: {}]
  %s8 = inlined_call_operand.hbm [shape: f32[1,128], index: 8, kind: input, shape index: {}]
  %s9 = inlined_call_operand.hbm [shape: bf16[1,128], index: 9, kind: input, shape index: {}]
  %s10 = inlined_call_operand.<no memory space> [shape: f32[1,1], index: 10, kind: input, shape index: {}]
  %s11 = inlined_call_operand.vmem [shape: f32[16,1], index: 11, kind: output, shape index: {}]
  %s12 = sld [smem:[#allocation0]]
  $region98: #{discriminator_forward.1} parent=0
    _
  %s14 = ssub.s32 1, %s12
  %s15 = scalar_select 0, %s14, %s12
  %v16 = vstv %s10
  %17 = vst [vmem:[#allocation3] sm:$0x1] %v16
  $region1: #{discriminator_forward.1} parent=0
    #allocation4 [shape = 'u8[2097152]{0}', space=vmem, size = 0x200000, scoped, tag = 'input window, operand 1, single buffered']
    #allocation5 [shape = 's32[1]{0}', space=sflag, size = 0x4, scoped, tag = 'scoped memory for discriminator_forward.1']
    #allocation6 [shape = 'u8[4096]{0}', space=vmem, size = 0x1000, scoped, tag = 'input window, operand 2, single buffered']
    #allocation7 [shape = 's32[1]{0}', space=sflag, size = 0x4, scoped, tag = 'scoped memory for discriminator_forward.1']
    #allocation8 [shape = 'u8[1048576]{0}', space=vmem, size = 0x100000, scoped, tag = 'input window, operand 3, single buffered']
    #allocation9 [shape = 'u8[2048]{0}', space=vmem, size = 0x800, scoped, tag = 'input window, operand 4, single buffered']
    #allocation10 [shape = 's32[1]{0}', space=sflag, size = 0x4, scoped, tag = 'scoped memory for discriminator_forward.1']
    #allocation11 [shape = 'u8[262144]{0}', space=vmem, size = 0x40000, scoped, tag = 'input window, operand 5, single buffered']
    #allocation12 [shape = 'u8[1024]{0}', space=vmem, size = 0x400, scoped, tag = 'input window, operand 6, single buffered']
    #allocation13 [shape = 's32[1]{0}', space=sflag, size = 0x4, scoped, tag = 'scoped memory for discriminator_forward.1']
    #allocation14 [shape = 'u8[65536]{0}', space=vmem, size = 0x10000, scoped, tag = 'input window, operand 7, single buffered']
    #allocation15 [shape = 'u8[512]{0}', space=vmem, size = 0x400, scoped, tag = 'input window, operand 8, single buffered']
    #allocation16 [shape = 's32[1]{0}', space=sflag, size = 0x4, scoped, tag = 'scoped memory for discriminator_forward.1']
    #allocation17 [shape = 'u8[512]{0}', space=vmem, size = 0x400, scoped, tag = 'input window, operand 9, single buffered']
    %18 = vsyncpa [#allocation5], 0
    %19 = vsyncpa [#allocation7], 0
    %20 = vsyncpa [#allocation10], 0
    %21 = vsyncpa [#allocation13], 0
    %22 = vsyncpa [#allocation16], 0
    // Predicated region
    $region2: #{discriminator_forward.1} parent=1 // pred_check
      _
    $region3: #{discriminator_forward.1} parent=1 // pred_check_branch
      %24 = sbr.rel (0) target = $region5
    $region4: #{discriminator_forward.1} parent=1 // pred_region
      _
    $region5: #{discriminator_forward.1} parent=1 // pred_fallthru
      _
    // Predicated region
    $region6: #{discriminator_forward.1} parent=1 // pred_check
      _
    $region7: #{discriminator_forward.1} parent=1 // pred_check_branch
      %26 = sbr.rel (0) target = $region9
    $region8: #{discriminator_forward.1} parent=1 // pred_region
      %28 = vsyncadd [#allocation5], 0
      %s29 = sshll.u32 %s1, 4
      %s30 = int_to_ptr.hbm [resolvable:$true] %s29
      %s31 = sshll.u32 [#allocation4], 4
      %s32 = int_to_ptr.vmem [resolvable:$true] %s31
      %37 = dma.hbm_to_vmem [thread:$0]  %s30, 65536, %s32, [#allocation5], 512, 512, 32
    $region9: #{discriminator_forward.1} parent=1 // pred_fallthru
      _
    // Predicated region
    $region10: #{discriminator_forward.1} parent=1 // pred_check
      _
    $region11: #{discriminator_forward.1} parent=1 // pred_check_branch
      %39 = sbr.rel (0) target = $region13
    $region12: #{discriminator_forward.1} parent=1 // pred_region
      %41 = vsyncadd [#allocation7], 0
      %s43 = sshll.u32 %s2, 4
      %s44 = int_to_ptr.hbm [resolvable:$true] %s43
      %s45 = sshll.u32 [#allocation6], 4
      %s46 = int_to_ptr.vmem [resolvable:$true] %s45
      %48 = dma.hbm_to_vmem [thread:$0]  %s44, 128, %s46, [#allocation7]
    $region13: #{discriminator_forward.1} parent=1 // pred_fallthru
      _
    // Predicated region
    $region14: #{discriminator_forward.1} parent=1 // pred_check
      _
    $region15: #{discriminator_forward.1} parent=1 // pred_check_branch
      %50 = sbr.rel (0) target = $region17
    $region16: #{discriminator_forward.1} parent=1 // pred_region
      %52 = vsyncadd [#allocation7], 0
      %s53 = sshll.u32 %s3, 4
      %s54 = int_to_ptr.hbm [resolvable:$true] %s53
      %s55 = sshll.u32 [#allocation8], 4
      %s56 = int_to_ptr.vmem [resolvable:$true] %s55
      %61 = dma.hbm_to_vmem [thread:$0]  %s54, 32768, %s56, [#allocation7], 256, 256, 16
    $region17: #{discriminator_forward.1} parent=1 // pred_fallthru
      _
    // Predicated region
    $region18: #{discriminator_forward.1} parent=1 // pred_check
      _
    $region19: #{discriminator_forward.1} parent=1 // pred_check_branch
      %63 = sbr.rel (0) target = $region21
    $region20: #{discriminator_forward.1} parent=1 // pred_region
      %65 = vsyncadd [#allocation10], 0
      %s67 = sshll.u32 %s4, 4
      %s68 = int_to_ptr.hbm [resolvable:$true] %s67
      %s69 = sshll.u32 [#allocation9], 4
      %s70 = int_to_ptr.vmem [resolvable:$true] %s69
      %72 = dma.hbm_to_vmem [thread:$0]  %s68, 64, %s70, [#allocation10]
    $region21: #{discriminator_forward.1} parent=1 // pred_fallthru
      _
    // Predicated region
    $region22: #{discriminator_forward.1} parent=1 // pred_check
      _
    $region23: #{discriminator_forward.1} parent=1 // pred_check_branch
      %74 = sbr.rel (0) target = $region25
    $region24: #{discriminator_forward.1} parent=1 // pred_region
      %76 = vsyncadd [#allocation10], 0
      %s77 = sshll.u32 %s5, 4
      %s78 = int_to_ptr.hbm [resolvable:$true] %s77
      %s79 = sshll.u32 [#allocation11], 4
      %s80 = int_to_ptr.vmem [resolvable:$true] %s79
      %85 = dma.hbm_to_vmem [thread:$0]  %s78, 8192, %s80, [#allocation10], 128, 128, 8
    $region25: #{discriminator_forward.1} parent=1 // pred_fallthru
      _
    // Predicated region
    $region26: #{discriminator_forward.1} parent=1 // pred_check
      _
    $region27: #{discriminator_forward.1} parent=1 // pred_check_branch
      %87 = sbr.rel (0) target = $region29
    $region28: #{discriminator_forward.1} parent=1 // pred_region
      %89 = vsyncadd [#allocation13], 0
      %s91 = sshll.u32 %s6, 4
      %s92 = int_to_ptr.hbm [resolvable:$true] %s91
      %s93 = sshll.u32 [#allocation12], 4
      %s94 = int_to_ptr.vmem [resolvable:$true] %s93
      %96 = dma.hbm_to_vmem [thread:$0]  %s92, 32, %s94, [#allocation13]
    $region29: #{discriminator_forward.1} parent=1 // pred_fallthru
      _
    // Predicated region
    $region30: #{discriminator_forward.1} parent=1 // pred_check
      _
    $region31: #{discriminator_forward.1} parent=1 // pred_check_branch
      %98 = sbr.rel (0) target = $region33
    $region32: #{discriminator_forward.1} parent=1 // pred_region
      %100 = vsyncadd [#allocation13], 0
      %s101 = sshll.u32 %s7, 4
      %s102 = int_to_ptr.hbm [resolvable:$true] %s101
      %s103 = sshll.u32 [#allocation14], 4
      %s104 = int_to_ptr.vmem [resolvable:$true] %s103
      %109 = dma.hbm_to_vmem [thread:$0]  %s102, 2048, %s104, [#allocation13], 64, 64, 4
    $region33: #{discriminator_forward.1} parent=1 // pred_fallthru
      _
    // Predicated region
    $region34: #{discriminator_forward.1} parent=1 // pred_check
      _
    $region35: #{discriminator_forward.1} parent=1 // pred_check_branch
      %111 = sbr.rel (0) target = $region37
    $region36: #{discriminator_forward.1} parent=1 // pred_region
      %113 = vsyncadd [#allocation16], 0
      %s115 = sshll.u32 %s8, 4
      %s116 = int_to_ptr.hbm [resolvable:$true] %s115
      %s117 = sshll.u32 [#allocation15], 4
      %s118 = int_to_ptr.vmem [resolvable:$true] %s117
      %120 = dma.hbm_to_vmem [thread:$0]  %s116, 16, %s118, [#allocation16]
    $region37: #{discriminator_forward.1} parent=1 // pred_fallthru
      _
    // Predicated region
    $region38: #{discriminator_forward.1} parent=1 // pred_check
      _
    $region39: #{discriminator_forward.1} parent=1 // pred_check_branch
      %122 = sbr.rel (0) target = $region41
    $region40: #{discriminator_forward.1} parent=1 // pred_region
      %124 = vsyncadd [#allocation16], 0
      %s126 = sshll.u32 %s9, 4
      %s127 = int_to_ptr.hbm [resolvable:$true] %s126
      %s128 = sshll.u32 [#allocation17], 4
      %s129 = int_to_ptr.vmem [resolvable:$true] %s128
      %131 = dma.hbm_to_vmem [thread:$0]  %s127, 16, %s129, [#allocation16]
    $region41: #{discriminator_forward.1} parent=1 // pred_fallthru
      _
    // Predicated region
    $region42: #{discriminator_forward.1} parent=1 // pred_check
      _
    $region43: #{discriminator_forward.1} parent=1 // pred_check_branch
      %133 = sbr.rel (0) target = $region45
    $region44: #{discriminator_forward.1} parent=1 // pred_region
      _
    $region45: #{discriminator_forward.1} parent=1 // pred_fallthru
      _
    // Predicated region
    $region46: #{discriminator_forward.1} parent=1 // pred_check
      _
    $region47: #{discriminator_forward.1} parent=1 // pred_check_branch
      %135 = sbr.rel (0) target = $region49
    $region48: #{discriminator_forward.1} parent=1 // pred_region
      %137 = dma.done [#allocation5], 65536
    $region49: #{discriminator_forward.1} parent=1 // pred_fallthru
      _
    // Predicated region
    $region50: #{discriminator_forward.1} parent=1 // pred_check
      _
    $region51: #{discriminator_forward.1} parent=1 // pred_check_branch
      %139 = sbr.rel (0) target = $region53
    $region52: #{discriminator_forward.1} parent=1 // pred_region
      %141 = dma.done [#allocation7], 128
    $region53: #{discriminator_forward.1} parent=1 // pred_fallthru
      _
    // Predicated region
    $region54: #{discriminator_forward.1} parent=1 // pred_check
      _
    $region55: #{discriminator_forward.1} parent=1 // pred_check_branch
      %143 = sbr.rel (0) target = $region57
    $region56: #{discriminator_forward.1} parent=1 // pred_region
      %145 = dma.done [#allocation7], 32768
    $region57: #{discriminator_forward.1} parent=1 // pred_fallthru
      _
    // Predicated region
    $region58: #{discriminator_forward.1} parent=1 // pred_check
      _
    $region59: #{discriminator_forward.1} parent=1 // pred_check_branch
      %147 = sbr.rel (0) target = $region61
    $region60: #{discriminator_forward.1} parent=1 // pred_region
      %149 = dma.done [#allocation10], 64
    $region61: #{discriminator_forward.1} parent=1 // pred_fallthru
      _
    // Predicated region
    $region62: #{discriminator_forward.1} parent=1 // pred_check
      _
    $region63: #{discriminator_forward.1} parent=1 // pred_check_branch
      %151 = sbr.rel (0) target = $region65
    $region64: #{discriminator_forward.1} parent=1 // pred_region
      %153 = dma.done [#allocation10], 8192
    $region65: #{discriminator_forward.1} parent=1 // pred_fallthru
      _
    // Predicated region
    $region66: #{discriminator_forward.1} parent=1 // pred_check
      _
    $region67: #{discriminator_forward.1} parent=1 // pred_check_branch
      %155 = sbr.rel (0) target = $region69
    $region68: #{discriminator_forward.1} parent=1 // pred_region
      %157 = dma.done [#allocation13], 32
    $region69: #{discriminator_forward.1} parent=1 // pred_fallthru
      _
    // Predicated region
    $region70: #{discriminator_forward.1} parent=1 // pred_check
      _
    $region71: #{discriminator_forward.1} parent=1 // pred_check_branch
      %159 = sbr.rel (0) target = $region73
    $region72: #{discriminator_forward.1} parent=1 // pred_region
      %161 = dma.done [#allocation13], 2048
    $region73: #{discriminator_forward.1} parent=1 // pred_fallthru
      _
    // Predicated region
    $region74: #{discriminator_forward.1} parent=1 // pred_check
      _
    $region75: #{discriminator_forward.1} parent=1 // pred_check_branch
      %163 = sbr.rel (0) target = $region77
    $region76: #{discriminator_forward.1} parent=1 // pred_region
      %165 = dma.done [#allocation16], 16
    $region77: #{discriminator_forward.1} parent=1 // pred_fallthru
      _
    // Predicated region
    $region78: #{discriminator_forward.1} parent=1 // pred_check
      _
    $region79: #{discriminator_forward.1} parent=1 // pred_check_branch
      %167 = sbr.rel (0) target = $region81
    $region80: #{discriminator_forward.1} parent=1 // pred_region
      %169 = dma.done [#allocation16], 16
    $region81: #{discriminator_forward.1} parent=1 // pred_fallthru
      _
    %p170 = scmp.eq.s32.totalorder 0, 0
    // Predicated region
    $region82: #{discriminator_forward.1} parent=1 // pred_check
      %p171 = pneg %p170
    $region83: #{discriminator_forward.1} parent=1 // pred_check_branch
      %173 = sbr.rel (%p171) target = $region85
    $region84: #{discriminator_forward.1} parent=1 // pred_region
      %174 = vst [vmem:[#allocation2] sm:$0xff] 0.0
      %175 = vst [vmem:[#allocation2 + $0x8] sm:$0xff] 0.0
      %176 = vst [vmem:[#allocation2 + $0x10] sm:$0xff] 0.0
      %177 = vst [vmem:[#allocation2 + $0x18] sm:$0xff] 0.0
      %178 = vst [vmem:[#allocation2 + $0x20] sm:$0xff] 0.0
      %179 = vst [vmem:[#allocation2 + $0x28] sm:$0xff] 0.0
      %180 = vst [vmem:[#allocation2 + $0x30] sm:$0xff] 0.0
      %181 = vst [vmem:[#allocation2 + $0x38] sm:$0xff] 0.0
      %182 = vst [vmem:[#allocation2 + $0x40] sm:$0xff] 0.0
      %183 = vst [vmem:[#allocation2 + $0x48] sm:$0xff] 0.0
      %184 = vst [vmem:[#allocation2 + $0x50] sm:$0xff] 0.0
      %185 = vst [vmem:[#allocation2 + $0x58] sm:$0xff] 0.0
      %186 = vst [vmem:[#allocation2 + $0x60] sm:$0xff] 0.0
      %187 = vst [vmem:[#allocation2 + $0x68] sm:$0xff] 0.0
      %188 = vst [vmem:[#allocation2 + $0x70] sm:$0xff] 0.0
      %189 = vst [vmem:[#allocation2 + $0x78] sm:$0xff] 0.0
    $region85: #{discriminator_forward.1} parent=1 // pred_fallthru
      _
    %v190 = vld [vmem:[#allocation2] sm:$0xff]
    %v191 = vld [vmem:[#allocation2 + $0x8] sm:$0xff]
    %v192 = vld [vmem:[#allocation2 + $0x10] sm:$0xff]
    %v193 = vld [vmem:[#allocation2 + $0x18] sm:$0xff]
    %v194 = vld [vmem:[#allocation2 + $0x20] sm:$0xff]
    %v195 = vld [vmem:[#allocation2 + $0x28] sm:$0xff]
    %v196 = vld [vmem:[#allocation2 + $0x30] sm:$0xff]
    %v197 = vld [vmem:[#allocation2 + $0x38] sm:$0xff]
    %v198 = vld [vmem:[#allocation2 + $0x40] sm:$0xff]
    %v199 = vld [vmem:[#allocation2 + $0x48] sm:$0xff]
    %v200 = vld [vmem:[#allocation2 + $0x50] sm:$0xff]
    %v201 = vld [vmem:[#allocation2 + $0x58] sm:$0xff]
    %v202 = vld [vmem:[#allocation2 + $0x60] sm:$0xff]
    %v203 = vld [vmem:[#allocation2 + $0x68] sm:$0xff]
    %v204 = vld [vmem:[#allocation2 + $0x70] sm:$0xff]
    %v205 = vld [vmem:[#allocation2 + $0x78] sm:$0xff]
    %v206 = vld [vmem:[%s0] sm:$0xff]
    %v207 = vld [vmem:[%s0 + $0x8] sm:$0xff]
    %v208 = vld [vmem:[%s0 + $0x10] sm:$0xff]
    %v209 = vld [vmem:[%s0 + $0x18] sm:$0xff]
    %v210 = vld [vmem:[%s0 + $0x20] sm:$0xff]
    %v211 = vld [vmem:[%s0 + $0x28] sm:$0xff]
    %v212 = vld [vmem:[%s0 + $0x30] sm:$0xff]
    %v213 = vld [vmem:[%s0 + $0x38] sm:$0xff]
    %v214 = vld [vmem:[#allocation4] sm:$0xff]
    %v215 = vld [vmem:[#allocation4 + $0x8] sm:$0xff]
    %v216 = vld [vmem:[#allocation4 + $0x10] sm:$0xff]
    %v217 = vld [vmem:[#allocation4 + $0x18] sm:$0xff]
    %v218 = vld [vmem:[#allocation4 + $0x20] sm:$0xff]
    %v219 = vld [vmem:[#allocation4 + $0x28] sm:$0xff]
    %v220 = vld [vmem:[#allocation4 + $0x30] sm:$0xff]
    %v221 = vld [vmem:[#allocation4 + $0x38] sm:$0xff]
    %v222 = vld [vmem:[#allocation4 + $0x40] sm:$0xff]
    %v223 = vld [vmem:[#allocation4 + $0x48] sm:$0xff]
    %v224 = vld [vmem:[#allocation4 + $0x50] sm:$0xff]
    %v225 = vld [vmem:[#allocation4 + $0x58] sm:$0xff]
    %v226 = vld [vmem:[#allocation4 + $0x60] sm:$0xff]
    %v227 = vld [vmem:[#allocation4 + $0x68] sm:$0xff]
    %v228 = vld [vmem:[#allocation4 + $0x70] sm:$0xff]
    %v229 = vld [vmem:[#allocation4 + $0x78] sm:$0xff]
    %v230 = vld [vmem:[#allocation4 + $0x80] sm:$0xff]
    %v231 = vld [vmem:[#allocation4 + $0x88] sm:$0xff]
    %v232 = vld [vmem:[#allocation4 + $0x90] sm:$0xff]
    %v233 = vld [vmem:[#allocation4 + $0x98] sm:$0xff]
    %v234 = vld [vmem:[#allocation4 + $0xa0] sm:$0xff]
    %v235 = vld [vmem:[#allocation4 + $0xa8] sm:$0xff]
    %v236 = vld [vmem:[#allocation4 + $0xb0] sm:$0xff]
    %v237 = vld [vmem:[#allocation4 + $0xb8] sm:$0xff]
    %v238 = vld [vmem:[#allocation4 + $0xc0] sm:$0xff]
    %v239 = vld [vmem:[#allocation4 + $0xc8] sm:$0xff]
    %v240 = vld [vmem:[#allocation4 + $0xd0] sm:$0xff]
    %v241 = vld [vmem:[#allocation4 + $0xd8] sm:$0xff]
    %v242 = vld [vmem:[#allocation4 + $0xe0] sm:$0xff]
    %v243 = vld [vmem:[#allocation4 + $0xe8] sm:$0xff]
    %v244 = vld [vmem:[#allocation4 + $0xf0] sm:$0xff]
    %v245 = vld [vmem:[#allocation4 + $0xf8] sm:$0xff]
    %v246 = vld [vmem:[#allocation4 + $0x100] sm:$0xff]
    %v247 = vld [vmem:[#allocation4 + $0x108] sm:$0xff]
    %v248 = vld [vmem:[#allocation4 + $0x110] sm:$0xff]
    %v249 = vld [vmem:[#allocation4 + $0x118] sm:$0xff]
    %v250 = vld [vmem:[#allocation4 + $0x120] sm:$0xff]
    %v251 = vld [vmem:[#allocation4 + $0x128] sm:$0xff]
    %v252 = vld [vmem:[#allocation4 + $0x130] sm:$0xff]
    %v253 = vld [vmem:[#allocation4 + $0x138] sm:$0xff]
    %v254 = vld [vmem:[#allocation4 + $0x140] sm:$0xff]
    %v255 = vld [vmem:[#allocation4 + $0x148] sm:$0xff]
    %v256 = vld [vmem:[#allocation4 + $0x150] sm:$0xff]
    %v257 = vld [vmem:[#allocation4 + $0x158] sm:$0xff]
    %v258 = vld [vmem:[#allocation4 + $0x160] sm:$0xff]
    %v259 = vld [vmem:[#allocation4 + $0x168] sm:$0xff]
    %v260 = vld [vmem:[#allocation4 + $0x170] sm:$0xff]
    %v261 = vld [vmem:[#allocation4 + $0x178] sm:$0xff]
    %v262 = vld [vmem:[#allocation4 + $0x180] sm:$0xff]
    %v263 = vld [vmem:[#allocation4 + $0x188] sm:$0xff]
    %v264 = vld [vmem:[#allocation4 + $0x190] sm:$0xff]
    %v265 = vld [vmem:[#allocation4 + $0x198] sm:$0xff]
    %v266 = vld [vmem:[#allocation4 + $0x1a0] sm:$0xff]
    %v267 = vld [vmem:[#allocation4 + $0x1a8] sm:$0xff]
    %v268 = vld [vmem:[#allocation4 + $0x1b0] sm:$0xff]
    %v269 = vld [vmem:[#allocation4 + $0x1b8] sm:$0xff]
    %v270 = vld [vmem:[#allocation4 + $0x1c0] sm:$0xff]
    %v271 = vld [vmem:[#allocation4 + $0x1c8] sm:$0xff]
    %v272 = vld [vmem:[#allocation4 + $0x1d0] sm:$0xff]
    %v273 = vld [vmem:[#allocation4 + $0x1d8] sm:$0xff]
    %v274 = vld [vmem:[#allocation4 + $0x1e0] sm:$0xff]
    %v275 = vld [vmem:[#allocation4 + $0x1e8] sm:$0xff]
    %v276 = vld [vmem:[#allocation4 + $0x1f0] sm:$0xff]
    %v277 = vld [vmem:[#allocation4 + $0x1f8] sm:$0xff]
    %v278 = vld [vmem:[#allocation4 + $0x200] sm:$0xff]
    %v279 = vld [vmem:[#allocation4 + $0x208] sm:$0xff]
    %v280 = vld [vmem:[#allocation4 + $0x210] sm:$0xff]
    %v281 = vld [vmem:[#allocation4 + $0x218] sm:$0xff]
    %v282 = vld [vmem:[#allocation4 + $0x220] sm:$0xff]
    %v283 = vld [vmem:[#allocation4 + $0x228] sm:$0xff]
    %v284 = vld [vmem:[#allocation4 + $0x230] sm:$0xff]
    %v285 = vld [vmem:[#allocation4 + $0x238] sm:$0xff]
    %v286 = vld [vmem:[#allocation4 + $0x240] sm:$0xff]
    %v287 = vld [vmem:[#allocation4 + $0x248] sm:$0xff]
    %v288 = vld [vmem:[#allocation4 + $0x250] sm:$0xff]
    %v289 = vld [vmem:[#allocation4 + $0x258] sm:$0xff]
    %v290 = vld [vmem:[#allocation4 + $0x260] sm:$0xff]
    %v291 = vld [vmem:[#allocation4 + $0x268] sm:$0xff]
    %v292 = vld [vmem:[#allocation4 + $0x270] sm:$0xff]
    %v293 = vld [vmem:[#allocation4 + $0x278] sm:$0xff]
    %v294 = vld [vmem:[#allocation4 + $0x280] sm:$0xff]
    %v295 = vld [vmem:[#allocation4 + $0x288] sm:$0xff]
    %v296 = vld [vmem:[#allocation4 + $0x290] sm:$0xff]
    %v297 = vld [vmem:[#allocation4 + $0x298] sm:$0xff]
    %v298 = vld [vmem:[#allocation4 + $0x2a0] sm:$0xff]
    %v299 = vld [vmem:[#allocation4 + $0x2a8] sm:$0xff]
    %v300 = vld [vmem:[#allocation4 + $0x2b0] sm:$0xff]
    %v301 = vld [vmem:[#allocation4 + $0x2b8] sm:$0xff]
    %v302 = vld [vmem:[#allocation4 + $0x2c0] sm:$0xff]
    %v303 = vld [vmem:[#allocation4 + $0x2c8] sm:$0xff]
    %v304 = vld [vmem:[#allocation4 + $0x2d0] sm:$0xff]
    %v305 = vld [vmem:[#allocation4 + $0x2d8] sm:$0xff]
    %v306 = vld [vmem:[#allocation4 + $0x2e0] sm:$0xff]
    %v307 = vld [vmem:[#allocation4 + $0x2e8] sm:$0xff]
    %v308 = vld [vmem:[#allocation4 + $0x2f0] sm:$0xff]
    %v309 = vld [vmem:[#allocation4 + $0x2f8] sm:$0xff]
    %v310 = vld [vmem:[#allocation4 + $0x300] sm:$0xff]
    %v311 = vld [vmem:[#allocation4 + $0x308] sm:$0xff]
    %v312 = vld [vmem:[#allocation4 + $0x310] sm:$0xff]
    %v313 = vld [vmem:[#allocation4 + $0x318] sm:$0xff]
    %v314 = vld [vmem:[#allocation4 + $0x320] sm:$0xff]
    %v315 = vld [vmem:[#allocation4 + $0x328] sm:$0xff]
    %v316 = vld [vmem:[#allocation4 + $0x330] sm:$0xff]
    %v317 = vld [vmem:[#allocation4 + $0x338] sm:$0xff]
    %v318 = vld [vmem:[#allocation4 + $0x340] sm:$0xff]
    %v319 = vld [vmem:[#allocation4 + $0x348] sm:$0xff]
    %v320 = vld [vmem:[#allocation4 + $0x350] sm:$0xff]
    %v321 = vld [vmem:[#allocation4 + $0x358] sm:$0xff]
    %v322 = vld [vmem:[#allocation4 + $0x360] sm:$0xff]
    %v323 = vld [vmem:[#allocation4 + $0x368] sm:$0xff]
    %v324 = vld [vmem:[#allocation4 + $0x370] sm:$0xff]
    %v325 = vld [vmem:[#allocation4 + $0x378] sm:$0xff]
    %v326 = vld [vmem:[#allocation4 + $0x380] sm:$0xff]
    %v327 = vld [vmem:[#allocation4 + $0x388] sm:$0xff]
    %v328 = vld [vmem:[#allocation4 + $0x390] sm:$0xff]
    %v329 = vld [vmem:[#allocation4 + $0x398] sm:$0xff]
    %v330 = vld [vmem:[#allocation4 + $0x3a0] sm:$0xff]
    %v331 = vld [vmem:[#allocation4 + $0x3a8] sm:$0xff]
    %v332 = vld [vmem:[#allocation4 + $0x3b0] sm:$0xff]
    %v333 = vld [vmem:[#allocation4 + $0x3b8] sm:$0xff]
    %v334 = vld [vmem:[#allocation4 + $0x3c0] sm:$0xff]
    %v335 = vld [vmem:[#allocation4 + $0x3c8] sm:$0xff]
    %v336 = vld [vmem:[#allocation4 + $0x3d0] sm:$0xff]
    %v337 = vld [vmem:[#allocation4 + $0x3d8] sm:$0xff]
    %v338 = vld [vmem:[#allocation4 + $0x3e0] sm:$0xff]
    %v339 = vld [vmem:[#allocation4 + $0x3e8] sm:$0xff]
    %v340 = vld [vmem:[#allocation4 + $0x3f0] sm:$0xff]
    %v341 = vld [vmem:[#allocation4 + $0x3f8] sm:$0xff]
    %v342 = vld [vmem:[#allocation4 + $0x400] sm:$0xff]
    %v343 = vld [vmem:[#allocation4 + $0x408] sm:$0xff]
    %v344 = vld [vmem:[#allocation4 + $0x410] sm:$0xff]
    %v345 = vld [vmem:[#allocation4 + $0x418] sm:$0xff]
    %v346 = vld [vmem:[#allocation4 + $0x420] sm:$0xff]
    %v347 = vld [vmem:[#allocation4 + $0x428] sm:$0xff]
    %v348 = vld [vmem:[#allocation4 + $0x430] sm:$0xff]
    %v349 = vld [vmem:[#allocation4 + $0x438] sm:$0xff]
    %v350 = vld [vmem:[#allocation4 + $0x440] sm:$0xff]
    %v351 = vld [vmem:[#allocation4 + $0x448] sm:$0xff]
    %v352 = vld [vmem:[#allocation4 + $0x450] sm:$0xff]
    %v353 = vld [vmem:[#allocation4 + $0x458] sm:$0xff]
    %v354 = vld [vmem:[#allocation4 + $0x460] sm:$0xff]
    %v355 = vld [vmem:[#allocation4 + $0x468] sm:$0xff]
    %v356 = vld [vmem:[#allocation4 + $0x470] sm:$0xff]
    %v357 = vld [vmem:[#allocation4 + $0x478] sm:$0xff]
    %v358 = vld [vmem:[#allocation4 + $0x480] sm:$0xff]
    %v359 = vld [vmem:[#allocation4 + $0x488] sm:$0xff]
    %v360 = vld [vmem:[#allocation4 + $0x490] sm:$0xff]
    %v361 = vld [vmem:[#allocation4 + $0x498] sm:$0xff]
    %v362 = vld [vmem:[#allocation4 + $0x4a0] sm:$0xff]
    %v363 = vld [vmem:[#allocation4 + $0x4a8] sm:$0xff]
    %v364 = vld [vmem:[#allocation4 + $0x4b0] sm:$0xff]
    %v365 = vld [vmem:[#allocation4 + $0x4b8] sm:$0xff]
    %v366 = vld [vmem:[#allocation4 + $0x4c0] sm:$0xff]
    %v367 = vld [vmem:[#allocation4 + $0x4c8] sm:$0xff]
    %v368 = vld [vmem:[#allocation4 + $0x4d0] sm:$0xff]
    %v369 = vld [vmem:[#allocation4 + $0x4d8] sm:$0xff]
    %v370 = vld [vmem:[#allocation4 + $0x4e0] sm:$0xff]
    %v371 = vld [vmem:[#allocation4 + $0x4e8] sm:$0xff]
    %v372 = vld [vmem:[#allocation4 + $0x4f0] sm:$0xff]
    %v373 = vld [vmem:[#allocation4 + $0x4f8] sm:$0xff]
    %v374 = vld [vmem:[#allocation4 + $0x500] sm:$0xff]
    %v375 = vld [vmem:[#allocation4 + $0x508] sm:$0xff]
    %v376 = vld [vmem:[#allocation4 + $0x510] sm:$0xff]
    %v377 = vld [vmem:[#allocation4 + $0x518] sm:$0xff]
    %v378 = vld [vmem:[#allocation4 + $0x520] sm:$0xff]
    %v379 = vld [vmem:[#allocation4 + $0x528] sm:$0xff]
    %v380 = vld [vmem:[#allocation4 + $0x530] sm:$0xff]
    %v381 = vld [vmem:[#allocation4 + $0x538] sm:$0xff]
    %v382 = vld [vmem:[#allocation4 + $0x540] sm:$0xff]
    %v383 = vld [vmem:[#allocation4 + $0x548] sm:$0xff]
    %v384 = vld [vmem:[#allocation4 + $0x550] sm:$0xff]
    %v385 = vld [vmem:[#allocation4 + $0x558] sm:$0xff]
    %v386 = vld [vmem:[#allocation4 + $0x560] sm:$0xff]
    %v387 = vld [vmem:[#allocation4 + $0x568] sm:$0xff]
    %v388 = vld [vmem:[#allocation4 + $0x570] sm:$0xff]
    %v389 = vld [vmem:[#allocation4 + $0x578] sm:$0xff]
    %v390 = vld [vmem:[#allocation4 + $0x580] sm:$0xff]
    %v391 = vld [vmem:[#allocation4 + $0x588] sm:$0xff]
    %v392 = vld [vmem:[#allocation4 + $0x590] sm:$0xff]
    %v393 = vld [vmem:[#allocation4 + $0x598] sm:$0xff]
    %v394 = vld [vmem:[#allocation4 + $0x5a0] sm:$0xff]
    %v395 = vld [vmem:[#allocation4 + $0x5a8] sm:$0xff]
    %v396 = vld [vmem:[#allocation4 + $0x5b0] sm:$0xff]
    %v397 = vld [vmem:[#allocation4 + $0x5b8] sm:$0xff]
    %v398 = vld [vmem:[#allocation4 + $0x5c0] sm:$0xff]
    %v399 = vld [vmem:[#allocation4 + $0x5c8] sm:$0xff]
    %v400 = vld [vmem:[#allocation4 + $0x5d0] sm:$0xff]
    %v401 = vld [vmem:[#allocation4 + $0x5d8] sm:$0xff]
    %v402 = vld [vmem:[#allocation4 + $0x5e0] sm:$0xff]
    %v403 = vld [vmem:[#allocation4 + $0x5e8] sm:$0xff]
    %v404 = vld [vmem:[#allocation4 + $0x5f0] sm:$0xff]
    %v405 = vld [vmem:[#allocation4 + $0x5f8] sm:$0xff]
    %v406 = vld [vmem:[#allocation4 + $0x600] sm:$0xff]
    %v407 = vld [vmem:[#allocation4 + $0x608] sm:$0xff]
    %v408 = vld [vmem:[#allocation4 + $0x610] sm:$0xff]
    %v409 = vld [vmem:[#allocation4 + $0x618] sm:$0xff]
    %v410 = vld [vmem:[#allocation4 + $0x620] sm:$0xff]
    %v411 = vld [vmem:[#allocation4 + $0x628] sm:$0xff]
    %v412 = vld [vmem:[#allocation4 + $0x630] sm:$0xff]
    %v413 = vld [vmem:[#allocation4 + $0x638] sm:$0xff]
    %v414 = vld [vmem:[#allocation4 + $0x640] sm:$0xff]
    %v415 = vld [vmem:[#allocation4 + $0x648] sm:$0xff]
    %v416 = vld [vmem:[#allocation4 + $0x650] sm:$0xff]
    %v417 = vld [vmem:[#allocation4 + $0x658] sm:$0xff]
    %v418 = vld [vmem:[#allocation4 + $0x660] sm:$0xff]
    %v419 = vld [vmem:[#allocation4 + $0x668] sm:$0xff]
    %v420 = vld [vmem:[#allocation4 + $0x670] sm:$0xff]
    %v421 = vld [vmem:[#allocation4 + $0x678] sm:$0xff]
    %v422 = vld [vmem:[#allocation4 + $0x680] sm:$0xff]
    %v423 = vld [vmem:[#allocation4 + $0x688] sm:$0xff]
    %v424 = vld [vmem:[#allocation4 + $0x690] sm:$0xff]
    %v425 = vld [vmem:[#allocation4 + $0x698] sm:$0xff]
    %v426 = vld [vmem:[#allocation4 + $0x6a0] sm:$0xff]
    %v427 = vld [vmem:[#allocation4 + $0x6a8] sm:$0xff]
    %v428 = vld [vmem:[#allocation4 + $0x6b0] sm:$0xff]
    %v429 = vld [vmem:[#allocation4 + $0x6b8] sm:$0xff]
    %v430 = vld [vmem:[#allocation4 + $0x6c0] sm:$0xff]
    %v431 = vld [vmem:[#allocation4 + $0x6c8] sm:$0xff]
    %v432 = vld [vmem:[#allocation4 + $0x6d0] sm:$0xff]
    %v433 = vld [vmem:[#allocation4 + $0x6d8] sm:$0xff]
    %v434 = vld [vmem:[#allocation4 + $0x6e0] sm:$0xff]
    %v435 = vld [vmem:[#allocation4 + $0x6e8] sm:$0xff]
    %v436 = vld [vmem:[#allocation4 + $0x6f0] sm:$0xff]
    %v437 = vld [vmem:[#allocation4 + $0x6f8] sm:$0xff]
    %v438 = vld [vmem:[#allocation4 + $0x700] sm:$0xff]
    %v439 = vld [vmem:[#allocation4 + $0x708] sm:$0xff]
    %v440 = vld [vmem:[#allocation4 + $0x710] sm:$0xff]
    %v441 = vld [vmem:[#allocation4 + $0x718] sm:$0xff]
    %v442 = vld [vmem:[#allocation4 + $0x720] sm:$0xff]
    %v443 = vld [vmem:[#allocation4 + $0x728] sm:$0xff]
    %v444 = vld [vmem:[#allocation4 + $0x730] sm:$0xff]
    %v445 = vld [vmem:[#allocation4 + $0x738] sm:$0xff]
    %v446 = vld [vmem:[#allocation4 + $0x740] sm:$0xff]
    %v447 = vld [vmem:[#allocation4 + $0x748] sm:$0xff]
    %v448 = vld [vmem:[#allocation4 + $0x750] sm:$0xff]
    %v449 = vld [vmem:[#allocation4 + $0x758] sm:$0xff]
    %v450 = vld [vmem:[#allocation4 + $0x760] sm:$0xff]
    %v451 = vld [vmem:[#allocation4 + $0x768] sm:$0xff]
    %v452 = vld [vmem:[#allocation4 + $0x770] sm:$0xff]
    %v453 = vld [vmem:[#allocation4 + $0x778] sm:$0xff]
    %v454 = vld [vmem:[#allocation4 + $0x780] sm:$0xff]
    %v455 = vld [vmem:[#allocation4 + $0x788] sm:$0xff]
    %v456 = vld [vmem:[#allocation4 + $0x790] sm:$0xff]
    %v457 = vld [vmem:[#allocation4 + $0x798] sm:$0xff]
    %v458 = vld [vmem:[#allocation4 + $0x7a0] sm:$0xff]
    %v459 = vld [vmem:[#allocation4 + $0x7a8] sm:$0xff]
    %v460 = vld [vmem:[#allocation4 + $0x7b0] sm:$0xff]
    %v461 = vld [vmem:[#allocation4 + $0x7b8] sm:$0xff]
    %v462 = vld [vmem:[#allocation4 + $0x7c0] sm:$0xff]
    %v463 = vld [vmem:[#allocation4 + $0x7c8] sm:$0xff]
    %v464 = vld [vmem:[#allocation4 + $0x7d0] sm:$0xff]
    %v465 = vld [vmem:[#allocation4 + $0x7d8] sm:$0xff]
    %v466 = vld [vmem:[#allocation4 + $0x7e0] sm:$0xff]
    %v467 = vld [vmem:[#allocation4 + $0x7e8] sm:$0xff]
    %v468 = vld [vmem:[#allocation4 + $0x7f0] sm:$0xff]
    %v469 = vld [vmem:[#allocation4 + $0x7f8] sm:$0xff]
    %v470 = vld [vmem:[#allocation4 + $0x800] sm:$0xff]
    %v471 = vld [vmem:[#allocation4 + $0x808] sm:$0xff]
    %v472 = vld [vmem:[#allocation4 + $0x810] sm:$0xff]
    %v473 = vld [vmem:[#allocation4 + $0x818] sm:$0xff]
    %v474 = vld [vmem:[#allocation4 + $0x820] sm:$0xff]
    %v475 = vld [vmem:[#allocation4 + $0x828] sm:$0xff]
    %v476 = vld [vmem:[#allocation4 + $0x830] sm:$0xff]
    %v477 = vld [vmem:[#allocation4 + $0x838] sm:$0xff]
    %v478 = vld [vmem:[#allocation4 + $0x840] sm:$0xff]
    %v479 = vld [vmem:[#allocation4 + $0x848] sm:$0xff]
    %v480 = vld [vmem:[#allocation4 + $0x850] sm:$0xff]
    %v481 = vld [vmem:[#allocation4 + $0x858] sm:$0xff]
    %v482 = vld [vmem:[#allocation4 + $0x860] sm:$0xff]
    %v483 = vld [vmem:[#allocation4 + $0x868] sm:$0xff]
    %v484 = vld [vmem:[#allocation4 + $0x870] sm:$0xff]
    %v485 = vld [vmem:[#allocation4 + $0x878] sm:$0xff]
    %v486 = vld [vmem:[#allocation4 + $0x880] sm:$0xff]
    %v487 = vld [vmem:[#allocation4 + $0x888] sm:$0xff]
    %v488 = vld [vmem:[#allocation4 + $0x890] sm:$0xff]
    %v489 = vld [vmem:[#allocation4 + $0x898] sm:$0xff]
    %v490 = vld [vmem:[#allocation4 + $0x8a0] sm:$0xff]
    %v491 = vld [vmem:[#allocation4 + $0x8a8] sm:$0xff]
    %v492 = vld [vmem:[#allocation4 + $0x8b0] sm:$0xff]
    %v493 = vld [vmem:[#allocation4 + $0x8b8] sm:$0xff]
    %v494 = vld [vmem:[#allocation4 + $0x8c0] sm:$0xff]
    %v495 = vld [vmem:[#allocation4 + $0x8c8] sm:$0xff]
    %v496 = vld [vmem:[#allocation4 + $0x8d0] sm:$0xff]
    %v497 = vld [vmem:[#allocation4 + $0x8d8] sm:$0xff]
    %v498 = vld [vmem:[#allocation4 + $0x8e0] sm:$0xff]
    %v499 = vld [vmem:[#allocation4 + $0x8e8] sm:$0xff]
    %v500 = vld [vmem:[#allocation4 + $0x8f0] sm:$0xff]
    %v501 = vld [vmem:[#allocation4 + $0x8f8] sm:$0xff]
    %v502 = vld [vmem:[#allocation4 + $0x900] sm:$0xff]
    %v503 = vld [vmem:[#allocation4 + $0x908] sm:$0xff]
    %v504 = vld [vmem:[#allocation4 + $0x910] sm:$0xff]
    %v505 = vld [vmem:[#allocation4 + $0x918] sm:$0xff]
    %v506 = vld [vmem:[#allocation4 + $0x920] sm:$0xff]
    %v507 = vld [vmem:[#allocation4 + $0x928] sm:$0xff]
    %v508 = vld [vmem:[#allocation4 + $0x930] sm:$0xff]
    %v509 = vld [vmem:[#allocation4 + $0x938] sm:$0xff]
    %v510 = vld [vmem:[#allocation4 + $0x940] sm:$0xff]
    %v511 = vld [vmem:[#allocation4 + $0x948] sm:$0xff]
    %v512 = vld [vmem:[#allocation4 + $0x950] sm:$0xff]
    %v513 = vld [vmem:[#allocation4 + $0x958] sm:$0xff]
    %v514 = vld [vmem:[#allocation4 + $0x960] sm:$0xff]
    %v515 = vld [vmem:[#allocation4 + $0x968] sm:$0xff]
    %v516 = vld [vmem:[#allocation4 + $0x970] sm:$0xff]
    %v517 = vld [vmem:[#allocation4 + $0x978] sm:$0xff]
    %v518 = vld [vmem:[#allocation4 + $0x980] sm:$0xff]
    %v519 = vld [vmem:[#allocation4 + $0x988] sm:$0xff]
    %v520 = vld [vmem:[#allocation4 + $0x990] sm:$0xff]
    %v521 = vld [vmem:[#allocation4 + $0x998] sm:$0xff]
    %v522 = vld [vmem:[#allocation4 + $0x9a0] sm:$0xff]
    %v523 = vld [vmem:[#allocation4 + $0x9a8] sm:$0xff]
    %v524 = vld [vmem:[#allocation4 + $0x9b0] sm:$0xff]
    %v525 = vld [vmem:[#allocation4 + $0x9b8] sm:$0xff]
    %v526 = vld [vmem:[#allocation4 + $0x9c0] sm:$0xff]
    %v527 = vld [vmem:[#allocation4 + $0x9c8] sm:$0xff]
    %v528 = vld [vmem:[#allocation4 + $0x9d0] sm:$0xff]
    %v529 = vld [vmem:[#allocation4 + $0x9d8] sm:$0xff]
    %v530 = vld [vmem:[#allocation4 + $0x9e0] sm:$0xff]
    %v531 = vld [vmem:[#allocation4 + $0x9e8] sm:$0xff]
    %v532 = vld [vmem:[#allocation4 + $0x9f0] sm:$0xff]
    %v533 = vld [vmem:[#allocation4 + $0x9f8] sm:$0xff]
    %v534 = vld [vmem:[#allocation4 + $0xa00] sm:$0xff]
    %v535 = vld [vmem:[#allocation4 + $0xa08] sm:$0xff]
    %v536 = vld [vmem:[#allocation4 + $0xa10] sm:$0xff]
    %v537 = vld [vmem:[#allocation4 + $0xa18] sm:$0xff]
    %v538 = vld [vmem:[#allocation4 + $0xa20] sm:$0xff]
    %v539 = vld [vmem:[#allocation4 + $0xa28] sm:$0xff]
    %v540 = vld [vmem:[#allocation4 + $0xa30] sm:$0xff]
    %v541 = vld [vmem:[#allocation4 + $0xa38] sm:$0xff]
    %v542 = vld [vmem:[#allocation4 + $0xa40] sm:$0xff]
    %v543 = vld [vmem:[#allocation4 + $0xa48] sm:$0xff]
    %v544 = vld [vmem:[#allocation4 + $0xa50] sm:$0xff]
    %v545 = vld [vmem:[#allocation4 + $0xa58] sm:$0xff]
    %v546 = vld [vmem:[#allocation4 + $0xa60] sm:$0xff]
    %v547 = vld [vmem:[#allocation4 + $0xa68] sm:$0xff]
    %v548 = vld [vmem:[#allocation4 + $0xa70] sm:$0xff]
    %v549 = vld [vmem:[#allocation4 + $0xa78] sm:$0xff]
    %v550 = vld [vmem:[#allocation4 + $0xa80] sm:$0xff]
    %v551 = vld [vmem:[#allocation4 + $0xa88] sm:$0xff]
    %v552 = vld [vmem:[#allocation4 + $0xa90] sm:$0xff]
    %v553 = vld [vmem:[#allocation4 + $0xa98] sm:$0xff]
    %v554 = vld [vmem:[#allocation4 + $0xaa0] sm:$0xff]
    %v555 = vld [vmem:[#allocation4 + $0xaa8] sm:$0xff]
    %v556 = vld [vmem:[#allocation4 + $0xab0] sm:$0xff]
    %v557 = vld [vmem:[#allocation4 + $0xab8] sm:$0xff]
    %v558 = vld [vmem:[#allocation4 + $0xac0] sm:$0xff]
    %v559 = vld [vmem:[#allocation4 + $0xac8] sm:$0xff]
    %v560 = vld [vmem:[#allocation4 + $0xad0] sm:$0xff]
    %v561 = vld [vmem:[#allocation4 + $0xad8] sm:$0xff]
    %v562 = vld [vmem:[#allocation4 + $0xae0] sm:$0xff]
    %v563 = vld [vmem:[#allocation4 + $0xae8] sm:$0xff]
    %v564 = vld [vmem:[#allocation4 + $0xaf0] sm:$0xff]
    %v565 = vld [vmem:[#allocation4 + $0xaf8] sm:$0xff]
    %v566 = vld [vmem:[#allocation4 + $0xb00] sm:$0xff]
    %v567 = vld [vmem:[#allocation4 + $0xb08] sm:$0xff]
    %v568 = vld [vmem:[#allocation4 + $0xb10] sm:$0xff]
    %v569 = vld [vmem:[#allocation4 + $0xb18] sm:$0xff]
    %v570 = vld [vmem:[#allocation4 + $0xb20] sm:$0xff]
    %v571 = vld [vmem:[#allocation4 + $0xb28] sm:$0xff]
    %v572 = vld [vmem:[#allocation4 + $0xb30] sm:$0xff]
    %v573 = vld [vmem:[#allocation4 + $0xb38] sm:$0xff]
    %v574 = vld [vmem:[#allocation4 + $0xb40] sm:$0xff]
    %v575 = vld [vmem:[#allocation4 + $0xb48] sm:$0xff]
    %v576 = vld [vmem:[#allocation4 + $0xb50] sm:$0xff]
    %v577 = vld [vmem:[#allocation4 + $0xb58] sm:$0xff]
    %v578 = vld [vmem:[#allocation4 + $0xb60] sm:$0xff]
    %v579 = vld [vmem:[#allocation4 + $0xb68] sm:$0xff]
    %v580 = vld [vmem:[#allocation4 + $0xb70] sm:$0xff]
    %v581 = vld [vmem:[#allocation4 + $0xb78] sm:$0xff]
    %v582 = vld [vmem:[#allocation4 + $0xb80] sm:$0xff]
    %v583 = vld [vmem:[#allocation4 + $0xb88] sm:$0xff]
    %v584 = vld [vmem:[#allocation4 + $0xb90] sm:$0xff]
    %v585 = vld [vmem:[#allocation4 + $0xb98] sm:$0xff]
    %v586 = vld [vmem:[#allocation4 + $0xba0] sm:$0xff]
    %v587 = vld [vmem:[#allocation4 + $0xba8] sm:$0xff]
    %v588 = vld [vmem:[#allocation4 + $0xbb0] sm:$0xff]
    %v589 = vld [vmem:[#allocation4 + $0xbb8] sm:$0xff]
    %v590 = vld [vmem:[#allocation4 + $0xbc0] sm:$0xff]
    %v591 = vld [vmem:[#allocation4 + $0xbc8] sm:$0xff]
    %v592 = vld [vmem:[#allocation4 + $0xbd0] sm:$0xff]
    %v593 = vld [vmem:[#allocation4 + $0xbd8] sm:$0xff]
    %v594 = vld [vmem:[#allocation4 + $0xbe0] sm:$0xff]
    %v595 = vld [vmem:[#allocation4 + $0xbe8] sm:$0xff]
    %v596 = vld [vmem:[#allocation4 + $0xbf0] sm:$0xff]
    %v597 = vld [vmem:[#allocation4 + $0xbf8] sm:$0xff]
    %v598 = vld [vmem:[#allocation4 + $0xc00] sm:$0xff]
    %v599 = vld [vmem:[#allocation4 + $0xc08] sm:$0xff]
    %v600 = vld [vmem:[#allocation4 + $0xc10] sm:$0xff]
    %v601 = vld [vmem:[#allocation4 + $0xc18] sm:$0xff]
    %v602 = vld [vmem:[#allocation4 + $0xc20] sm:$0xff]
    %v603 = vld [vmem:[#allocation4 + $0xc28] sm:$0xff]
    %v604 = vld [vmem:[#allocation4 + $0xc30] sm:$0xff]
    %v605 = vld [vmem:[#allocation4 + $0xc38] sm:$0xff]
    %v606 = vld [vmem:[#allocation4 + $0xc40] sm:$0xff]
    %v607 = vld [vmem:[#allocation4 + $0xc48] sm:$0xff]
    %v608 = vld [vmem:[#allocation4 + $0xc50] sm:$0xff]
    %v609 = vld [vmem:[#allocation4 + $0xc58] sm:$0xff]
    %v610 = vld [vmem:[#allocation4 + $0xc60] sm:$0xff]
    %v611 = vld [vmem:[#allocation4 + $0xc68] sm:$0xff]
    %v612 = vld [vmem:[#allocation4 + $0xc70] sm:$0xff]
    %v613 = vld [vmem:[#allocation4 + $0xc78] sm:$0xff]
    %v614 = vld [vmem:[#allocation4 + $0xc80] sm:$0xff]
    %v615 = vld [vmem:[#allocation4 + $0xc88] sm:$0xff]
    %v616 = vld [vmem:[#allocation4 + $0xc90] sm:$0xff]
    %v617 = vld [vmem:[#allocation4 + $0xc98] sm:$0xff]
    %v618 = vld [vmem:[#allocation4 + $0xca0] sm:$0xff]
    %v619 = vld [vmem:[#allocation4 + $0xca8] sm:$0xff]
    %v620 = vld [vmem:[#allocation4 + $0xcb0] sm:$0xff]
    %v621 = vld [vmem:[#allocation4 + $0xcb8] sm:$0xff]
    %v622 = vld [vmem:[#allocation4 + $0xcc0] sm:$0xff]
    %v623 = vld [vmem:[#allocation4 + $0xcc8] sm:$0xff]
    %v624 = vld [vmem:[#allocation4 + $0xcd0] sm:$0xff]
    %v625 = vld [vmem:[#allocation4 + $0xcd8] sm:$0xff]
    %v626 = vld [vmem:[#allocation4 + $0xce0] sm:$0xff]
    %v627 = vld [vmem:[#allocation4 + $0xce8] sm:$0xff]
    %v628 = vld [vmem:[#allocation4 + $0xcf0] sm:$0xff]
    %v629 = vld [vmem:[#allocation4 + $0xcf8] sm:$0xff]
    %v630 = vld [vmem:[#allocation4 + $0xd00] sm:$0xff]
    %v631 = vld [vmem:[#allocation4 + $0xd08] sm:$0xff]
    %v632 = vld [vmem:[#allocation4 + $0xd10] sm:$0xff]
    %v633 = vld [vmem:[#allocation4 + $0xd18] sm:$0xff]
    %v634 = vld [vmem:[#allocation4 + $0xd20] sm:$0xff]
    %v635 = vld [vmem:[#allocation4 + $0xd28] sm:$0xff]
    %v636 = vld [vmem:[#allocation4 + $0xd30] sm:$0xff]
    %v637 = vld [vmem:[#allocation4 + $0xd38] sm:$0xff]
    %v638 = vld [vmem:[#allocation4 + $0xd40] sm:$0xff]
    %v639 = vld [vmem:[#allocation4 + $0xd48] sm:$0xff]
    %v640 = vld [vmem:[#allocation4 + $0xd50] sm:$0xff]
    %v641 = vld [vmem:[#allocation4 + $0xd58] sm:$0xff]
    %v642 = vld [vmem:[#allocation4 + $0xd60] sm:$0xff]
    %v643 = vld [vmem:[#allocation4 + $0xd68] sm:$0xff]
    %v644 = vld [vmem:[#allocation4 + $0xd70] sm:$0xff]
    %v645 = vld [vmem:[#allocation4 + $0xd78] sm:$0xff]
    %v646 = vld [vmem:[#allocation4 + $0xd80] sm:$0xff]
    %v647 = vld [vmem:[#allocation4 + $0xd88] sm:$0xff]
    %v648 = vld [vmem:[#allocation4 + $0xd90] sm:$0xff]
    %v649 = vld [vmem:[#allocation4 + $0xd98] sm:$0xff]
    %v650 = vld [vmem:[#allocation4 + $0xda0] sm:$0xff]
    %v651 = vld [vmem:[#allocation4 + $0xda8] sm:$0xff]
    %v652 = vld [vmem:[#allocation4 + $0xdb0] sm:$0xff]
    %v653 = vld [vmem:[#allocation4 + $0xdb8] sm:$0xff]
    %v654 = vld [vmem:[#allocation4 + $0xdc0] sm:$0xff]
    %v655 = vld [vmem:[#allocation4 + $0xdc8] sm:$0xff]
    %v656 = vld [vmem:[#allocation4 + $0xdd0] sm:$0xff]
    %v657 = vld [vmem:[#allocation4 + $0xdd8] sm:$0xff]
    %v658 = vld [vmem:[#allocation4 + $0xde0] sm:$0xff]
    %v659 = vld [vmem:[#allocation4 + $0xde8] sm:$0xff]
    %v660 = vld [vmem:[#allocation4 + $0xdf0] sm:$0xff]
    %v661 = vld [vmem:[#allocation4 + $0xdf8] sm:$0xff]
    %v662 = vld [vmem:[#allocation4 + $0xe00] sm:$0xff]
    %v663 = vld [vmem:[#allocation4 + $0xe08] sm:$0xff]
    %v664 = vld [vmem:[#allocation4 + $0xe10] sm:$0xff]
    %v665 = vld [vmem:[#allocation4 + $0xe18] sm:$0xff]
    %v666 = vld [vmem:[#allocation4 + $0xe20] sm:$0xff]
    %v667 = vld [vmem:[#allocation4 + $0xe28] sm:$0xff]
    %v668 = vld [vmem:[#allocation4 + $0xe30] sm:$0xff]
    %v669 = vld [vmem:[#allocation4 + $0xe38] sm:$0xff]
    %v670 = vld [vmem:[#allocation4 + $0xe40] sm:$0xff]
    %v671 = vld [vmem:[#allocation4 + $0xe48] sm:$0xff]
    %v672 = vld [vmem:[#allocation4 + $0xe50] sm:$0xff]
    %v673 = vld [vmem:[#allocation4 + $0xe58] sm:$0xff]
    %v674 = vld [vmem:[#allocation4 + $0xe60] sm:$0xff]
    %v675 = vld [vmem:[#allocation4 + $0xe68] sm:$0xff]
    %v676 = vld [vmem:[#allocation4 + $0xe70] sm:$0xff]
    %v677 = vld [vmem:[#allocation4 + $0xe78] sm:$0xff]
    %v678 = vld [vmem:[#allocation4 + $0xe80] sm:$0xff]
    %v679 = vld [vmem:[#allocation4 + $0xe88] sm:$0xff]
    %v680 = vld [vmem:[#allocation4 + $0xe90] sm:$0xff]
    %v681 = vld [vmem:[#allocation4 + $0xe98] sm:$0xff]
    %v682 = vld [vmem:[#allocation4 + $0xea0] sm:$0xff]
    %v683 = vld [vmem:[#allocation4 + $0xea8] sm:$0xff]
    %v684 = vld [vmem:[#allocation4 + $0xeb0] sm:$0xff]
    %v685 = vld [vmem:[#allocation4 + $0xeb8] sm:$0xff]
    %v686 = vld [vmem:[#allocation4 + $0xec0] sm:$0xff]
    %v687 = vld [vmem:[#allocation4 + $0xec8] sm:$0xff]
    %v688 = vld [vmem:[#allocation4 + $0xed0] sm:$0xff]
    %v689 = vld [vmem:[#allocation4 + $0xed8] sm:$0xff]
    %v690 = vld [vmem:[#allocation4 + $0xee0] sm:$0xff]
    %v691 = vld [vmem:[#allocation4 + $0xee8] sm:$0xff]
    %v692 = vld [vmem:[#allocation4 + $0xef0] sm:$0xff]
    %v693 = vld [vmem:[#allocation4 + $0xef8] sm:$0xff]
    %v694 = vld [vmem:[#allocation4 + $0xf00] sm:$0xff]
    %v695 = vld [vmem:[#allocation4 + $0xf08] sm:$0xff]
    %v696 = vld [vmem:[#allocation4 + $0xf10] sm:$0xff]
    %v697 = vld [vmem:[#allocation4 + $0xf18] sm:$0xff]
    %v698 = vld [vmem:[#allocation4 + $0xf20] sm:$0xff]
    %v699 = vld [vmem:[#allocation4 + $0xf28] sm:$0xff]
    %v700 = vld [vmem:[#allocation4 + $0xf30] sm:$0xff]
    %v701 = vld [vmem:[#allocation4 + $0xf38] sm:$0xff]
    %v702 = vld [vmem:[#allocation4 + $0xf40] sm:$0xff]
    %v703 = vld [vmem:[#allocation4 + $0xf48] sm:$0xff]
    %v704 = vld [vmem:[#allocation4 + $0xf50] sm:$0xff]
    %v705 = vld [vmem:[#allocation4 + $0xf58] sm:$0xff]
    %v706 = vld [vmem:[#allocation4 + $0xf60] sm:$0xff]
    %v707 = vld [vmem:[#allocation4 + $0xf68] sm:$0xff]
    %v708 = vld [vmem:[#allocation4 + $0xf70] sm:$0xff]
    %v709 = vld [vmem:[#allocation4 + $0xf78] sm:$0xff]
    %v710 = vld [vmem:[#allocation4 + $0xf80] sm:$0xff]
    %v711 = vld [vmem:[#allocation4 + $0xf88] sm:$0xff]
    %v712 = vld [vmem:[#allocation4 + $0xf90] sm:$0xff]
    %v713 = vld [vmem:[#allocation4 + $0xf98] sm:$0xff]
    %v714 = vld [vmem:[#allocation4 + $0xfa0] sm:$0xff]
    %v715 = vld [vmem:[#allocation4 + $0xfa8] sm:$0xff]
    %v716 = vld [vmem:[#allocation4 + $0xfb0] sm:$0xff]
    %v717 = vld [vmem:[#allocation4 + $0xfb8] sm:$0xff]
    %v718 = vld [vmem:[#allocation4 + $0xfc0] sm:$0xff]
    %v719 = vld [vmem:[#allocation4 + $0xfc8] sm:$0xff]
    %v720 = vld [vmem:[#allocation4 + $0xfd0] sm:$0xff]
    %v721 = vld [vmem:[#allocation4 + $0xfd8] sm:$0xff]
    %v722 = vld [vmem:[#allocation4 + $0xfe0] sm:$0xff]
    %v723 = vld [vmem:[#allocation4 + $0xfe8] sm:$0xff]
    %v724 = vld [vmem:[#allocation4 + $0xff0] sm:$0xff]
    %v725 = vld [vmem:[#allocation4 + $0xff8] sm:$0xff]
    %v734 = vunpack.c.l.b16 %v206
    %v735 = vunpack.c.h.b16 %v206
    %v736 = vunpack.c.l.b16 %v207
    %v737 = vunpack.c.h.b16 %v207
    %v738 = vunpack.c.l.b16 %v208
    %v739 = vunpack.c.h.b16 %v208
    %v740 = vunpack.c.l.b16 %v209
    %v741 = vunpack.c.h.b16 %v209
    %v742 = vunpack.c.l.b16 %v210
    %v743 = vunpack.c.h.b16 %v210
    %v744 = vunpack.c.l.b16 %v211
    %v745 = vunpack.c.h.b16 %v211
    %v746 = vunpack.c.l.b16 %v212
    %v747 = vunpack.c.h.b16 %v212
    %v748 = vunpack.c.l.b16 %v213
    %v749 = vunpack.c.h.b16 %v213
    %v750 = vpack.c.b16 %v742, %v734
    %v751 = vpack.c.b16 %v743, %v735
    %v752 = vpack.c.b16 %v744, %v736
    %v753 = vpack.c.b16 %v745, %v737
    %v754 = vpack.c.b16 %v746, %v738
    %v755 = vpack.c.b16 %v747, %v739
    %v756 = vpack.c.b16 %v748, %v740
    %v757 = vpack.c.b16 %v749, %v741
    %v1278 = vunpack.c.l.b16 %v214
    %v1279 = vunpack.c.h.b16 %v214
    %v1280 = vunpack.c.l.b16 %v215
    %v1281 = vunpack.c.h.b16 %v215
    %v1282 = vunpack.c.l.b16 %v216
    %v1283 = vunpack.c.h.b16 %v216
    %v1284 = vunpack.c.l.b16 %v217
    %v1285 = vunpack.c.h.b16 %v217
    %v1286 = vunpack.c.l.b16 %v218
    %v1287 = vunpack.c.h.b16 %v218
    %v1288 = vunpack.c.l.b16 %v219
    %v1289 = vunpack.c.h.b16 %v219
    %v1290 = vunpack.c.l.b16 %v220
    %v1291 = vunpack.c.h.b16 %v220
    %v1292 = vunpack.c.l.b16 %v221
    %v1293 = vunpack.c.h.b16 %v221
    %v1294 = vunpack.c.l.b16 %v222
    %v1295 = vunpack.c.h.b16 %v222
    %v1296 = vunpack.c.l.b16 %v223
    %v1297 = vunpack.c.h.b16 %v223
    %v1298 = vunpack.c.l.b16 %v224
    %v1299 = vunpack.c.h.b16 %v224
    %v1300 = vunpack.c.l.b16 %v225
    %v1301 = vunpack.c.h.b16 %v225
    %v1302 = vunpack.c.l.b16 %v226
    %v1303 = vunpack.c.h.b16 %v226
    %v1304 = vunpack.c.l.b16 %v227
    %v1305 = vunpack.c.h.b16 %v227
    %v1306 = vunpack.c.l.b16 %v228
    %v1307 = vunpack.c.h.b16 %v228
    %v1308 = vunpack.c.l.b16 %v229
    %v1309 = vunpack.c.h.b16 %v229
    %v1310 = vunpack.c.l.b16 %v230
    %v1311 = vunpack.c.h.b16 %v230
    %v1312 = vunpack.c.l.b16 %v231
    %v1313 = vunpack.c.h.b16 %v231
    %v1314 = vunpack.c.l.b16 %v232
    %v1315 = vunpack.c.h.b16 %v232
    %v1316 = vunpack.c.l.b16 %v233
    %v1317 = vunpack.c.h.b16 %v233
    %v1318 = vunpack.c.l.b16 %v234
    %v1319 = vunpack.c.h.b16 %v234
    %v1320 = vunpack.c.l.b16 %v235
    %v1321 = vunpack.c.h.b16 %v235
    %v1322 = vunpack.c.l.b16 %v236
    %v1323 = vunpack.c.h.b16 %v236
    %v1324 = vunpack.c.l.b16 %v237
    %v1325 = vunpack.c.h.b16 %v237
    %v1326 = vunpack.c.l.b16 %v238
    %v1327 = vunpack.c.h.b16 %v238
    %v1328 = vunpack.c.l.b16 %v239
    %v1329 = vunpack.c.h.b16 %v239
    %v1330 = vunpack.c.l.b16 %v240
    %v1331 = vunpack.c.h.b16 %v240
    %v1332 = vunpack.c.l.b16 %v241
    %v1333 = vunpack.c.h.b16 %v241
    %v1334 = vunpack.c.l.b16 %v242
    %v1335 = vunpack.c.h.b16 %v242
    %v1336 = vunpack.c.l.b16 %v243
    %v1337 = vunpack.c.h.b16 %v243
    %v1338 = vunpack.c.l.b16 %v244
    %v1339 = vunpack.c.h.b16 %v244
    %v1340 = vunpack.c.l.b16 %v245
    %v1341 = vunpack.c.h.b16 %v245
    %v1342 = vunpack.c.l.b16 %v246
    %v1343 = vunpack.c.h.b16 %v246
    %v1344 = vunpack.c.l.b16 %v247
    %v1345 = vunpack.c.h.b16 %v247
    %v1346 = vunpack.c.l.b16 %v248
    %v1347 = vunpack.c.h.b16 %v248
    %v1348 = vunpack.c.l.b16 %v249
    %v1349 = vunpack.c.h.b16 %v249
    %v1350 = vunpack.c.l.b16 %v250
    %v1351 = vunpack.c.h.b16 %v250
    %v1352 = vunpack.c.l.b16 %v251
    %v1353 = vunpack.c.h.b16 %v251
    %v1354 = vunpack.c.l.b16 %v252
    %v1355 = vunpack.c.h.b16 %v252
    %v1356 = vunpack.c.l.b16 %v253
    %v1357 = vunpack.c.h.b16 %v253
    %v1358 = vunpack.c.l.b16 %v254
    %v1359 = vunpack.c.h.b16 %v254
    %v1360 = vunpack.c.l.b16 %v255
    %v1361 = vunpack.c.h.b16 %v255
    %v1362 = vunpack.c.l.b16 %v256
    %v1363 = vunpack.c.h.b16 %v256
    %v1364 = vunpack.c.l.b16 %v257
    %v1365 = vunpack.c.h.b16 %v257
    %v1366 = vunpack.c.l.b16 %v258
    %v1367 = vunpack.c.h.b16 %v258
    %v1368 = vunpack.c.l.b16 %v259
    %v1369 = vunpack.c.h.b16 %v259
    %v1370 = vunpack.c.l.b16 %v260
    %v1371 = vunpack.c.h.b16 %v260
    %v1372 = vunpack.c.l.b16 %v261
    %v1373 = vunpack.c.h.b16 %v261
    %v1374 = vunpack.c.l.b16 %v262
    %v1375 = vunpack.c.h.b16 %v262
    %v1376 = vunpack.c.l.b16 %v263
    %v1377 = vunpack.c.h.b16 %v263
    %v1378 = vunpack.c.l.b16 %v264
    %v1379 = vunpack.c.h.b16 %v264
    %v1380 = vunpack.c.l.b16 %v265
    %v1381 = vunpack.c.h.b16 %v265
    %v1382 = vunpack.c.l.b16 %v266
    %v1383 = vunpack.c.h.b16 %v266
    %v1384 = vunpack.c.l.b16 %v267
    %v1385 = vunpack.c.h.b16 %v267
    %v1386 = vunpack.c.l.b16 %v268
    %v1387 = vunpack.c.h.b16 %v268
    %v1388 = vunpack.c.l.b16 %v269
    %v1389 = vunpack.c.h.b16 %v269
    %v1390 = vunpack.c.l.b16 %v270
    %v1391 = vunpack.c.h.b16 %v270
    %v1392 = vunpack.c.l.b16 %v271
    %v1393 = vunpack.c.h.b16 %v271
    %v1394 = vunpack.c.l.b16 %v272
    %v1395 = vunpack.c.h.b16 %v272
    %v1396 = vunpack.c.l.b16 %v273
    %v1397 = vunpack.c.h.b16 %v273
    %v1398 = vunpack.c.l.b16 %v274
    %v1399 = vunpack.c.h.b16 %v274
    %v1400 = vunpack.c.l.b16 %v275
    %v1401 = vunpack.c.h.b16 %v275
    %v1402 = vunpack.c.l.b16 %v276
    %v1403 = vunpack.c.h.b16 %v276
    %v1404 = vunpack.c.l.b16 %v277
    %v1405 = vunpack.c.h.b16 %v277
    %v1406 = vunpack.c.l.b16 %v278
    %v1407 = vunpack.c.h.b16 %v278
    %v1408 = vunpack.c.l.b16 %v279
    %v1409 = vunpack.c.h.b16 %v279
    %v1410 = vunpack.c.l.b16 %v280
    %v1411 = vunpack.c.h.b16 %v280
    %v1412 = vunpack.c.l.b16 %v281
    %v1413 = vunpack.c.h.b16 %v281
    %v1414 = vunpack.c.l.b16 %v282
    %v1415 = vunpack.c.h.b16 %v282
    %v1416 = vunpack.c.l.b16 %v283
    %v1417 = vunpack.c.h.b16 %v283
    %v1418 = vunpack.c.l.b16 %v284
    %v1419 = vunpack.c.h.b16 %v284
    %v1420 = vunpack.c.l.b16 %v285
    %v1421 = vunpack.c.h.b16 %v285
    %v1422 = vunpack.c.l.b16 %v286
    %v1423 = vunpack.c.h.b16 %v286
    %v1424 = vunpack.c.l.b16 %v287
    %v1425 = vunpack.c.h.b16 %v287
    %v1426 = vunpack.c.l.b16 %v288
    %v1427 = vunpack.c.h.b16 %v288
    %v1428 = vunpack.c.l.b16 %v289
    %v1429 = vunpack.c.h.b16 %v289
    %v1430 = vunpack.c.l.b16 %v290
    %v1431 = vunpack.c.h.b16 %v290
    %v1432 = vunpack.c.l.b16 %v291
    %v1433 = vunpack.c.h.b16 %v291
    %v1434 = vunpack.c.l.b16 %v292
    %v1435 = vunpack.c.h.b16 %v292
    %v1436 = vunpack.c.l.b16 %v293
    %v1437 = vunpack.c.h.b16 %v293
    %v1438 = vunpack.c.l.b16 %v294
    %v1439 = vunpack.c.h.b16 %v294
    %v1440 = vunpack.c.l.b16 %v295
    %v1441 = vunpack.c.h.b16 %v295
    %v1442 = vunpack.c.l.b16 %v296
    %v1443 = vunpack.c.h.b16 %v296
    %v1444 = vunpack.c.l.b16 %v297
    %v1445 = vunpack.c.h.b16 %v297
    %v1446 = vunpack.c.l.b16 %v298
    %v1447 = vunpack.c.h.b16 %v298
    %v1448 = vunpack.c.l.b16 %v299
    %v1449 = vunpack.c.h.b16 %v299
    %v1450 = vunpack.c.l.b16 %v300
    %v1451 = vunpack.c.h.b16 %v300
    %v1452 = vunpack.c.l.b16 %v301
    %v1453 = vunpack.c.h.b16 %v301
    %v1454 = vunpack.c.l.b16 %v302
    %v1455 = vunpack.c.h.b16 %v302
    %v1456 = vunpack.c.l.b16 %v303
    %v1457 = vunpack.c.h.b16 %v303
    %v1458 = vunpack.c.l.b16 %v304
    %v1459 = vunpack.c.h.b16 %v304
    %v1460 = vunpack.c.l.b16 %v305
    %v1461 = vunpack.c.h.b16 %v305
    %v1462 = vunpack.c.l.b16 %v306
    %v1463 = vunpack.c.h.b16 %v306
    %v1464 = vunpack.c.l.b16 %v307
    %v1465 = vunpack.c.h.b16 %v307
    %v1466 = vunpack.c.l.b16 %v308
    %v1467 = vunpack.c.h.b16 %v308
    %v1468 = vunpack.c.l.b16 %v309
    %v1469 = vunpack.c.h.b16 %v309
    %v1470 = vunpack.c.l.b16 %v310
    %v1471 = vunpack.c.h.b16 %v310
    %v1472 = vunpack.c.l.b16 %v311
    %v1473 = vunpack.c.h.b16 %v311
    %v1474 = vunpack.c.l.b16 %v312
    %v1475 = vunpack.c.h.b16 %v312
    %v1476 = vunpack.c.l.b16 %v313
    %v1477 = vunpack.c.h.b16 %v313
    %v1478 = vunpack.c.l.b16 %v314
    %v1479 = vunpack.c.h.b16 %v314
    %v1480 = vunpack.c.l.b16 %v315
    %v1481 = vunpack.c.h.b16 %v315
    %v1482 = vunpack.c.l.b16 %v316
    %v1483 = vunpack.c.h.b16 %v316
    %v1484 = vunpack.c.l.b16 %v317
    %v1485 = vunpack.c.h.b16 %v317
    %v1486 = vunpack.c.l.b16 %v318
    %v1487 = vunpack.c.h.b16 %v318
    %v1488 = vunpack.c.l.b16 %v319
    %v1489 = vunpack.c.h.b16 %v319
    %v1490 = vunpack.c.l.b16 %v320
    %v1491 = vunpack.c.h.b16 %v320
    %v1492 = vunpack.c.l.b16 %v321
    %v1493 = vunpack.c.h.b16 %v321
    %v1494 = vunpack.c.l.b16 %v322
    %v1495 = vunpack.c.h.b16 %v322
    %v1496 = vunpack.c.l.b16 %v323
    %v1497 = vunpack.c.h.b16 %v323
    %v1498 = vunpack.c.l.b16 %v324
    %v1499 = vunpack.c.h.b16 %v324
    %v1500 = vunpack.c.l.b16 %v325
    %v1501 = vunpack.c.h.b16 %v325
    %v1502 = vunpack.c.l.b16 %v326
    %v1503 = vunpack.c.h.b16 %v326
    %v1504 = vunpack.c.l.b16 %v327
    %v1505 = vunpack.c.h.b16 %v327
    %v1506 = vunpack.c.l.b16 %v328
    %v1507 = vunpack.c.h.b16 %v328
    %v1508 = vunpack.c.l.b16 %v329
    %v1509 = vunpack.c.h.b16 %v329
    %v1510 = vunpack.c.l.b16 %v330
    %v1511 = vunpack.c.h.b16 %v330
    %v1512 = vunpack.c.l.b16 %v331
    %v1513 = vunpack.c.h.b16 %v331
    %v1514 = vunpack.c.l.b16 %v332
    %v1515 = vunpack.c.h.b16 %v332
    %v1516 = vunpack.c.l.b16 %v333
    %v1517 = vunpack.c.h.b16 %v333
    %v1518 = vunpack.c.l.b16 %v334
    %v1519 = vunpack.c.h.b16 %v334
    %v1520 = vunpack.c.l.b16 %v335
    %v1521 = vunpack.c.h.b16 %v335
    %v1522 = vunpack.c.l.b16 %v336
    %v1523 = vunpack.c.h.b16 %v336
    %v1524 = vunpack.c.l.b16 %v337
    %v1525 = vunpack.c.h.b16 %v337
    %v1526 = vunpack.c.l.b16 %v338
    %v1527 = vunpack.c.h.b16 %v338
    %v1528 = vunpack.c.l.b16 %v339
    %v1529 = vunpack.c.h.b16 %v339
    %v1530 = vunpack.c.l.b16 %v340
    %v1531 = vunpack.c.h.b16 %v340
    %v1532 = vunpack.c.l.b16 %v341
    %v1533 = vunpack.c.h.b16 %v341
    %v1534 = vunpack.c.l.b16 %v342
    %v1535 = vunpack.c.h.b16 %v342
    %v1536 = vunpack.c.l.b16 %v343
    %v1537 = vunpack.c.h.b16 %v343
    %v1538 = vunpack.c.l.b16 %v344
    %v1539 = vunpack.c.h.b16 %v344
    %v1540 = vunpack.c.l.b16 %v345
    %v1541 = vunpack.c.h.b16 %v345
    %v1542 = vunpack.c.l.b16 %v346
    %v1543 = vunpack.c.h.b16 %v346
    %v1544 = vunpack.c.l.b16 %v347
    %v1545 = vunpack.c.h.b16 %v347
    %v1546 = vunpack.c.l.b16 %v348
    %v1547 = vunpack.c.h.b16 %v348
    %v1548 = vunpack.c.l.b16 %v349
    %v1549 = vunpack.c.h.b16 %v349
    %v1550 = vunpack.c.l.b16 %v350
    %v1551 = vunpack.c.h.b16 %v350
    %v1552 = vunpack.c.l.b16 %v351
    %v1553 = vunpack.c.h.b16 %v351
    %v1554 = vunpack.c.l.b16 %v352
    %v1555 = vunpack.c.h.b16 %v352
    %v1556 = vunpack.c.l.b16 %v353
    %v1557 = vunpack.c.h.b16 %v353
    %v1558 = vunpack.c.l.b16 %v354
    %v1559 = vunpack.c.h.b16 %v354
    %v1560 = vunpack.c.l.b16 %v355
    %v1561 = vunpack.c.h.b16 %v355
    %v1562 = vunpack.c.l.b16 %v356
    %v1563 = vunpack.c.h.b16 %v356
    %v1564 = vunpack.c.l.b16 %v357
    %v1565 = vunpack.c.h.b16 %v357
    %v1566 = vunpack.c.l.b16 %v358
    %v1567 = vunpack.c.h.b16 %v358
    %v1568 = vunpack.c.l.b16 %v359
    %v1569 = vunpack.c.h.b16 %v359
    %v1570 = vunpack.c.l.b16 %v360
    %v1571 = vunpack.c.h.b16 %v360
    %v1572 = vunpack.c.l.b16 %v361
    %v1573 = vunpack.c.h.b16 %v361
    %v1574 = vunpack.c.l.b16 %v362
    %v1575 = vunpack.c.h.b16 %v362
    %v1576 = vunpack.c.l.b16 %v363
    %v1577 = vunpack.c.h.b16 %v363
    %v1578 = vunpack.c.l.b16 %v364
    %v1579 = vunpack.c.h.b16 %v364
    %v1580 = vunpack.c.l.b16 %v365
    %v1581 = vunpack.c.h.b16 %v365
    %v1582 = vunpack.c.l.b16 %v366
    %v1583 = vunpack.c.h.b16 %v366
    %v1584 = vunpack.c.l.b16 %v367
    %v1585 = vunpack.c.h.b16 %v367
    %v1586 = vunpack.c.l.b16 %v368
    %v1587 = vunpack.c.h.b16 %v368
    %v1588 = vunpack.c.l.b16 %v369
    %v1589 = vunpack.c.h.b16 %v369
    %v1590 = vunpack.c.l.b16 %v370
    %v1591 = vunpack.c.h.b16 %v370
    %v1592 = vunpack.c.l.b16 %v371
    %v1593 = vunpack.c.h.b16 %v371
    %v1594 = vunpack.c.l.b16 %v372
    %v1595 = vunpack.c.h.b16 %v372
    %v1596 = vunpack.c.l.b16 %v373
    %v1597 = vunpack.c.h.b16 %v373
    %v1598 = vunpack.c.l.b16 %v374
    %v1599 = vunpack.c.h.b16 %v374
    %v1600 = vunpack.c.l.b16 %v375
    %v1601 = vunpack.c.h.b16 %v375
    %v1602 = vunpack.c.l.b16 %v376
    %v1603 = vunpack.c.h.b16 %v376
    %v1604 = vunpack.c.l.b16 %v377
    %v1605 = vunpack.c.h.b16 %v377
    %v1606 = vunpack.c.l.b16 %v378
    %v1607 = vunpack.c.h.b16 %v378
    %v1608 = vunpack.c.l.b16 %v379
    %v1609 = vunpack.c.h.b16 %v379
    %v1610 = vunpack.c.l.b16 %v380
    %v1611 = vunpack.c.h.b16 %v380
    %v1612 = vunpack.c.l.b16 %v381
    %v1613 = vunpack.c.h.b16 %v381
    %v1614 = vunpack.c.l.b16 %v382
    %v1615 = vunpack.c.h.b16 %v382
    %v1616 = vunpack.c.l.b16 %v383
    %v1617 = vunpack.c.h.b16 %v383
    %v1618 = vunpack.c.l.b16 %v384
    %v1619 = vunpack.c.h.b16 %v384
    %v1620 = vunpack.c.l.b16 %v385
    %v1621 = vunpack.c.h.b16 %v385
    %v1622 = vunpack.c.l.b16 %v386
    %v1623 = vunpack.c.h.b16 %v386
    %v1624 = vunpack.c.l.b16 %v387
    %v1625 = vunpack.c.h.b16 %v387
    %v1626 = vunpack.c.l.b16 %v388
    %v1627 = vunpack.c.h.b16 %v388
    %v1628 = vunpack.c.l.b16 %v389
    %v1629 = vunpack.c.h.b16 %v389
    %v1630 = vunpack.c.l.b16 %v390
    %v1631 = vunpack.c.h.b16 %v390
    %v1632 = vunpack.c.l.b16 %v391
    %v1633 = vunpack.c.h.b16 %v391
    %v1634 = vunpack.c.l.b16 %v392
    %v1635 = vunpack.c.h.b16 %v392
    %v1636 = vunpack.c.l.b16 %v393
    %v1637 = vunpack.c.h.b16 %v393
    %v1638 = vunpack.c.l.b16 %v394
    %v1639 = vunpack.c.h.b16 %v394
    %v1640 = vunpack.c.l.b16 %v395
    %v1641 = vunpack.c.h.b16 %v395
    %v1642 = vunpack.c.l.b16 %v396
    %v1643 = vunpack.c.h.b16 %v396
    %v1644 = vunpack.c.l.b16 %v397
    %v1645 = vunpack.c.h.b16 %v397
    %v1646 = vunpack.c.l.b16 %v398
    %v1647 = vunpack.c.h.b16 %v398
    %v1648 = vunpack.c.l.b16 %v399
    %v1649 = vunpack.c.h.b16 %v399
    %v1650 = vunpack.c.l.b16 %v400
    %v1651 = vunpack.c.h.b16 %v400
    %v1652 = vunpack.c.l.b16 %v401
    %v1653 = vunpack.c.h.b16 %v401
    %v1654 = vunpack.c.l.b16 %v402
    %v1655 = vunpack.c.h.b16 %v402
    %v1656 = vunpack.c.l.b16 %v403
    %v1657 = vunpack.c.h.b16 %v403
    %v1658 = vunpack.c.l.b16 %v404
    %v1659 = vunpack.c.h.b16 %v404
    %v1660 = vunpack.c.l.b16 %v405
    %v1661 = vunpack.c.h.b16 %v405
    %v1662 = vunpack.c.l.b16 %v406
    %v1663 = vunpack.c.h.b16 %v406
    %v1664 = vunpack.c.l.b16 %v407
    %v1665 = vunpack.c.h.b16 %v407
    %v1666 = vunpack.c.l.b16 %v408
    %v1667 = vunpack.c.h.b16 %v408
    %v1668 = vunpack.c.l.b16 %v409
    %v1669 = vunpack.c.h.b16 %v409
    %v1670 = vunpack.c.l.b16 %v410
    %v1671 = vunpack.c.h.b16 %v410
    %v1672 = vunpack.c.l.b16 %v411
    %v1673 = vunpack.c.h.b16 %v411
    %v1674 = vunpack.c.l.b16 %v412
    %v1675 = vunpack.c.h.b16 %v412
    %v1676 = vunpack.c.l.b16 %v413
    %v1677 = vunpack.c.h.b16 %v413
    %v1678 = vunpack.c.l.b16 %v414
    %v1679 = vunpack.c.h.b16 %v414
    %v1680 = vunpack.c.l.b16 %v415
    %v1681 = vunpack.c.h.b16 %v415
    %v1682 = vunpack.c.l.b16 %v416
    %v1683 = vunpack.c.h.b16 %v416
    %v1684 = vunpack.c.l.b16 %v417
    %v1685 = vunpack.c.h.b16 %v417
    %v1686 = vunpack.c.l.b16 %v418
    %v1687 = vunpack.c.h.b16 %v418
    %v1688 = vunpack.c.l.b16 %v419
    %v1689 = vunpack.c.h.b16 %v419
    %v1690 = vunpack.c.l.b16 %v420
    %v1691 = vunpack.c.h.b16 %v420
    %v1692 = vunpack.c.l.b16 %v421
    %v1693 = vunpack.c.h.b16 %v421
    %v1694 = vunpack.c.l.b16 %v422
    %v1695 = vunpack.c.h.b16 %v422
    %v1696 = vunpack.c.l.b16 %v423
    %v1697 = vunpack.c.h.b16 %v423
    %v1698 = vunpack.c.l.b16 %v424
    %v1699 = vunpack.c.h.b16 %v424
    %v1700 = vunpack.c.l.b16 %v425
    %v1701 = vunpack.c.h.b16 %v425
    %v1702 = vunpack.c.l.b16 %v426
    %v1703 = vunpack.c.h.b16 %v426
    %v1704 = vunpack.c.l.b16 %v427
    %v1705 = vunpack.c.h.b16 %v427
    %v1706 = vunpack.c.l.b16 %v428
    %v1707 = vunpack.c.h.b16 %v428
    %v1708 = vunpack.c.l.b16 %v429
    %v1709 = vunpack.c.h.b16 %v429
    %v1710 = vunpack.c.l.b16 %v430
    %v1711 = vunpack.c.h.b16 %v430
    %v1712 = vunpack.c.l.b16 %v431
    %v1713 = vunpack.c.h.b16 %v431
    %v1714 = vunpack.c.l.b16 %v432
    %v1715 = vunpack.c.h.b16 %v432
    %v1716 = vunpack.c.l.b16 %v433
    %v1717 = vunpack.c.h.b16 %v433
    %v1718 = vunpack.c.l.b16 %v434
    %v1719 = vunpack.c.h.b16 %v434
    %v1720 = vunpack.c.l.b16 %v435
    %v1721 = vunpack.c.h.b16 %v435
    %v1722 = vunpack.c.l.b16 %v436
    %v1723 = vunpack.c.h.b16 %v436
    %v1724 = vunpack.c.l.b16 %v437
    %v1725 = vunpack.c.h.b16 %v437
    %v1726 = vunpack.c.l.b16 %v438
    %v1727 = vunpack.c.h.b16 %v438
    %v1728 = vunpack.c.l.b16 %v439
    %v1729 = vunpack.c.h.b16 %v439
    %v1730 = vunpack.c.l.b16 %v440
    %v1731 = vunpack.c.h.b16 %v440
    %v1732 = vunpack.c.l.b16 %v441
    %v1733 = vunpack.c.h.b16 %v441
    %v1734 = vunpack.c.l.b16 %v442
    %v1735 = vunpack.c.h.b16 %v442
    %v1736 = vunpack.c.l.b16 %v443
    %v1737 = vunpack.c.h.b16 %v443
    %v1738 = vunpack.c.l.b16 %v444
    %v1739 = vunpack.c.h.b16 %v444
    %v1740 = vunpack.c.l.b16 %v445
    %v1741 = vunpack.c.h.b16 %v445
    %v1742 = vunpack.c.l.b16 %v446
    %v1743 = vunpack.c.h.b16 %v446
    %v1744 = vunpack.c.l.b16 %v447
    %v1745 = vunpack.c.h.b16 %v447
    %v1746 = vunpack.c.l.b16 %v448
    %v1747 = vunpack.c.h.b16 %v448
    %v1748 = vunpack.c.l.b16 %v449
    %v1749 = vunpack.c.h.b16 %v449
    %v1750 = vunpack.c.l.b16 %v450
    %v1751 = vunpack.c.h.b16 %v450
    %v1752 = vunpack.c.l.b16 %v451
    %v1753 = vunpack.c.h.b16 %v451
    %v1754 = vunpack.c.l.b16 %v452
    %v1755 = vunpack.c.h.b16 %v452
    %v1756 = vunpack.c.l.b16 %v453
    %v1757 = vunpack.c.h.b16 %v453
    %v1758 = vunpack.c.l.b16 %v454
    %v1759 = vunpack.c.h.b16 %v454
    %v1760 = vunpack.c.l.b16 %v455
    %v1761 = vunpack.c.h.b16 %v455
    %v1762 = vunpack.c.l.b16 %v456
    %v1763 = vunpack.c.h.b16 %v456
    %v1764 = vunpack.c.l.b16 %v457
    %v1765 = vunpack.c.h.b16 %v457
    %v1766 = vunpack.c.l.b16 %v458
    %v1767 = vunpack.c.h.b16 %v458
    %v1768 = vunpack.c.l.b16 %v459
    %v1769 = vunpack.c.h.b16 %v459
    %v1770 = vunpack.c.l.b16 %v460
    %v1771 = vunpack.c.h.b16 %v460
    %v1772 = vunpack.c.l.b16 %v461
    %v1773 = vunpack.c.h.b16 %v461
    %v1774 = vunpack.c.l.b16 %v462
    %v1775 = vunpack.c.h.b16 %v462
    %v1776 = vunpack.c.l.b16 %v463
    %v1777 = vunpack.c.h.b16 %v463
    %v1778 = vunpack.c.l.b16 %v464
    %v1779 = vunpack.c.h.b16 %v464
    %v1780 = vunpack.c.l.b16 %v465
    %v1781 = vunpack.c.h.b16 %v465
    %v1782 = vunpack.c.l.b16 %v466
    %v1783 = vunpack.c.h.b16 %v466
    %v1784 = vunpack.c.l.b16 %v467
    %v1785 = vunpack.c.h.b16 %v467
    %v1786 = vunpack.c.l.b16 %v468
    %v1787 = vunpack.c.h.b16 %v468
    %v1788 = vunpack.c.l.b16 %v469
    %v1789 = vunpack.c.h.b16 %v469
    %v1790 = vunpack.c.l.b16 %v470
    %v1791 = vunpack.c.h.b16 %v470
    %v1792 = vunpack.c.l.b16 %v471
    %v1793 = vunpack.c.h.b16 %v471
    %v1794 = vunpack.c.l.b16 %v472
    %v1795 = vunpack.c.h.b16 %v472
    %v1796 = vunpack.c.l.b16 %v473
    %v1797 = vunpack.c.h.b16 %v473
    %v1798 = vunpack.c.l.b16 %v474
    %v1799 = vunpack.c.h.b16 %v474
    %v1800 = vunpack.c.l.b16 %v475
    %v1801 = vunpack.c.h.b16 %v475
    %v1802 = vunpack.c.l.b16 %v476
    %v1803 = vunpack.c.h.b16 %v476
    %v1804 = vunpack.c.l.b16 %v477
    %v1805 = vunpack.c.h.b16 %v477
    %v1806 = vunpack.c.l.b16 %v478
    %v1807 = vunpack.c.h.b16 %v478
    %v1808 = vunpack.c.l.b16 %v479
    %v1809 = vunpack.c.h.b16 %v479
    %v1810 = vunpack.c.l.b16 %v480
    %v1811 = vunpack.c.h.b16 %v480
    %v1812 = vunpack.c.l.b16 %v481
    %v1813 = vunpack.c.h.b16 %v481
    %v1814 = vunpack.c.l.b16 %v482
    %v1815 = vunpack.c.h.b16 %v482
    %v1816 = vunpack.c.l.b16 %v483
    %v1817 = vunpack.c.h.b16 %v483
    %v1818 = vunpack.c.l.b16 %v484
    %v1819 = vunpack.c.h.b16 %v484
    %v1820 = vunpack.c.l.b16 %v485
    %v1821 = vunpack.c.h.b16 %v485
    %v1822 = vunpack.c.l.b16 %v486
    %v1823 = vunpack.c.h.b16 %v486
    %v1824 = vunpack.c.l.b16 %v487
    %v1825 = vunpack.c.h.b16 %v487
    %v1826 = vunpack.c.l.b16 %v488
    %v1827 = vunpack.c.h.b16 %v488
    %v1828 = vunpack.c.l.b16 %v489
    %v1829 = vunpack.c.h.b16 %v489
    %v1830 = vunpack.c.l.b16 %v490
    %v1831 = vunpack.c.h.b16 %v490
    %v1832 = vunpack.c.l.b16 %v491
    %v1833 = vunpack.c.h.b16 %v491
    %v1834 = vunpack.c.l.b16 %v492
    %v1835 = vunpack.c.h.b16 %v492
    %v1836 = vunpack.c.l.b16 %v493
    %v1837 = vunpack.c.h.b16 %v493
    %v1838 = vunpack.c.l.b16 %v494
    %v1839 = vunpack.c.h.b16 %v494
    %v1840 = vunpack.c.l.b16 %v495
    %v1841 = vunpack.c.h.b16 %v495
    %v1842 = vunpack.c.l.b16 %v496
    %v1843 = vunpack.c.h.b16 %v496
    %v1844 = vunpack.c.l.b16 %v497
    %v1845 = vunpack.c.h.b16 %v497
    %v1846 = vunpack.c.l.b16 %v498
    %v1847 = vunpack.c.h.b16 %v498
    %v1848 = vunpack.c.l.b16 %v499
    %v1849 = vunpack.c.h.b16 %v499
    %v1850 = vunpack.c.l.b16 %v500
    %v1851 = vunpack.c.h.b16 %v500
    %v1852 = vunpack.c.l.b16 %v501
    %v1853 = vunpack.c.h.b16 %v501
    %v1854 = vunpack.c.l.b16 %v502
    %v1855 = vunpack.c.h.b16 %v502
    %v1856 = vunpack.c.l.b16 %v503
    %v1857 = vunpack.c.h.b16 %v503
    %v1858 = vunpack.c.l.b16 %v504
    %v1859 = vunpack.c.h.b16 %v504
    %v1860 = vunpack.c.l.b16 %v505
    %v1861 = vunpack.c.h.b16 %v505
    %v1862 = vunpack.c.l.b16 %v506
    %v1863 = vunpack.c.h.b16 %v506
    %v1864 = vunpack.c.l.b16 %v507
    %v1865 = vunpack.c.h.b16 %v507
    %v1866 = vunpack.c.l.b16 %v508
    %v1867 = vunpack.c.h.b16 %v508
    %v1868 = vunpack.c.l.b16 %v509
    %v1869 = vunpack.c.h.b16 %v509
    %v1870 = vunpack.c.l.b16 %v510
    %v1871 = vunpack.c.h.b16 %v510
    %v1872 = vunpack.c.l.b16 %v511
    %v1873 = vunpack.c.h.b16 %v511
    %v1874 = vunpack.c.l.b16 %v512
    %v1875 = vunpack.c.h.b16 %v512
    %v1876 = vunpack.c.l.b16 %v513
    %v1877 = vunpack.c.h.b16 %v513
    %v1878 = vunpack.c.l.b16 %v514
    %v1879 = vunpack.c.h.b16 %v514
    %v1880 = vunpack.c.l.b16 %v515
    %v1881 = vunpack.c.h.b16 %v515
    %v1882 = vunpack.c.l.b16 %v516
    %v1883 = vunpack.c.h.b16 %v516
    %v1884 = vunpack.c.l.b16 %v517
    %v1885 = vunpack.c.h.b16 %v517
    %v1886 = vunpack.c.l.b16 %v518
    %v1887 = vunpack.c.h.b16 %v518
    %v1888 = vunpack.c.l.b16 %v519
    %v1889 = vunpack.c.h.b16 %v519
    %v1890 = vunpack.c.l.b16 %v520
    %v1891 = vunpack.c.h.b16 %v520
    %v1892 = vunpack.c.l.b16 %v521
    %v1893 = vunpack.c.h.b16 %v521
    %v1894 = vunpack.c.l.b16 %v522
    %v1895 = vunpack.c.h.b16 %v522
    %v1896 = vunpack.c.l.b16 %v523
    %v1897 = vunpack.c.h.b16 %v523
    %v1898 = vunpack.c.l.b16 %v524
    %v1899 = vunpack.c.h.b16 %v524
    %v1900 = vunpack.c.l.b16 %v525
    %v1901 = vunpack.c.h.b16 %v525
    %v1902 = vunpack.c.l.b16 %v526
    %v1903 = vunpack.c.h.b16 %v526
    %v1904 = vunpack.c.l.b16 %v527
    %v1905 = vunpack.c.h.b16 %v527
    %v1906 = vunpack.c.l.b16 %v528
    %v1907 = vunpack.c.h.b16 %v528
    %v1908 = vunpack.c.l.b16 %v529
    %v1909 = vunpack.c.h.b16 %v529
    %v1910 = vunpack.c.l.b16 %v530
    %v1911 = vunpack.c.h.b16 %v530
    %v1912 = vunpack.c.l.b16 %v531
    %v1913 = vunpack.c.h.b16 %v531
    %v1914 = vunpack.c.l.b16 %v532
    %v1915 = vunpack.c.h.b16 %v532
    %v1916 = vunpack.c.l.b16 %v533
    %v1917 = vunpack.c.h.b16 %v533
    %v1918 = vunpack.c.l.b16 %v534
    %v1919 = vunpack.c.h.b16 %v534
    %v1920 = vunpack.c.l.b16 %v535
    %v1921 = vunpack.c.h.b16 %v535
    %v1922 = vunpack.c.l.b16 %v536
    %v1923 = vunpack.c.h.b16 %v536
    %v1924 = vunpack.c.l.b16 %v537
    %v1925 = vunpack.c.h.b16 %v537
    %v1926 = vunpack.c.l.b16 %v538
    %v1927 = vunpack.c.h.b16 %v538
    %v1928 = vunpack.c.l.b16 %v539
    %v1929 = vunpack.c.h.b16 %v539
    %v1930 = vunpack.c.l.b16 %v540
    %v1931 = vunpack.c.h.b16 %v540
    %v1932 = vunpack.c.l.b16 %v541
    %v1933 = vunpack.c.h.b16 %v541
    %v1934 = vunpack.c.l.b16 %v542
    %v1935 = vunpack.c.h.b16 %v542
    %v1936 = vunpack.c.l.b16 %v543
    %v1937 = vunpack.c.h.b16 %v543
    %v1938 = vunpack.c.l.b16 %v544
    %v1939 = vunpack.c.h.b16 %v544
    %v1940 = vunpack.c.l.b16 %v545
    %v1941 = vunpack.c.h.b16 %v545
    %v1942 = vunpack.c.l.b16 %v546
    %v1943 = vunpack.c.h.b16 %v546
    %v1944 = vunpack.c.l.b16 %v547
    %v1945 = vunpack.c.h.b16 %v547
    %v1946 = vunpack.c.l.b16 %v548
    %v1947 = vunpack.c.h.b16 %v548
    %v1948 = vunpack.c.l.b16 %v549
    %v1949 = vunpack.c.h.b16 %v549
    %v1950 = vunpack.c.l.b16 %v550
    %v1951 = vunpack.c.h.b16 %v550
    %v1952 = vunpack.c.l.b16 %v551
    %v1953 = vunpack.c.h.b16 %v551
    %v1954 = vunpack.c.l.b16 %v552
    %v1955 = vunpack.c.h.b16 %v552
    %v1956 = vunpack.c.l.b16 %v553
    %v1957 = vunpack.c.h.b16 %v553
    %v1958 = vunpack.c.l.b16 %v554
    %v1959 = vunpack.c.h.b16 %v554
    %v1960 = vunpack.c.l.b16 %v555
    %v1961 = vunpack.c.h.b16 %v555
    %v1962 = vunpack.c.l.b16 %v556
    %v1963 = vunpack.c.h.b16 %v556
    %v1964 = vunpack.c.l.b16 %v557
    %v1965 = vunpack.c.h.b16 %v557
    %v1966 = vunpack.c.l.b16 %v558
    %v1967 = vunpack.c.h.b16 %v558
    %v1968 = vunpack.c.l.b16 %v559
    %v1969 = vunpack.c.h.b16 %v559
    %v1970 = vunpack.c.l.b16 %v560
    %v1971 = vunpack.c.h.b16 %v560
    %v1972 = vunpack.c.l.b16 %v561
    %v1973 = vunpack.c.h.b16 %v561
    %v1974 = vunpack.c.l.b16 %v562
    %v1975 = vunpack.c.h.b16 %v562
    %v1976 = vunpack.c.l.b16 %v563
    %v1977 = vunpack.c.h.b16 %v563
    %v1978 = vunpack.c.l.b16 %v564
    %v1979 = vunpack.c.h.b16 %v564
    %v1980 = vunpack.c.l.b16 %v565
    %v1981 = vunpack.c.h.b16 %v565
    %v1982 = vunpack.c.l.b16 %v566
    %v1983 = vunpack.c.h.b16 %v566
    %v1984 = vunpack.c.l.b16 %v567
    %v1985 = vunpack.c.h.b16 %v567
    %v1986 = vunpack.c.l.b16 %v568
    %v1987 = vunpack.c.h.b16 %v568
    %v1988 = vunpack.c.l.b16 %v569
    %v1989 = vunpack.c.h.b16 %v569
    %v1990 = vunpack.c.l.b16 %v570
    %v1991 = vunpack.c.h.b16 %v570
    %v1992 = vunpack.c.l.b16 %v571
    %v1993 = vunpack.c.h.b16 %v571
    %v1994 = vunpack.c.l.b16 %v572
    %v1995 = vunpack.c.h.b16 %v572
    %v1996 = vunpack.c.l.b16 %v573
    %v1997 = vunpack.c.h.b16 %v573
    %v1998 = vunpack.c.l.b16 %v574
    %v1999 = vunpack.c.h.b16 %v574
    %v2000 = vunpack.c.l.b16 %v575
    %v2001 = vunpack.c.h.b16 %v575
    %v2002 = vunpack.c.l.b16 %v576
    %v2003 = vunpack.c.h.b16 %v576
    %v2004 = vunpack.c.l.b16 %v577
    %v2005 = vunpack.c.h.b16 %v577
    %v2006 = vunpack.c.l.b16 %v578
    %v2007 = vunpack.c.h.b16 %v578
    %v2008 = vunpack.c.l.b16 %v579
    %v2009 = vunpack.c.h.b16 %v579
    %v2010 = vunpack.c.l.b16 %v580
    %v2011 = vunpack.c.h.b16 %v580
    %v2012 = vunpack.c.l.b16 %v581
    %v2013 = vunpack.c.h.b16 %v581
    %v2014 = vunpack.c.l.b16 %v582
    %v2015 = vunpack.c.h.b16 %v582
    %v2016 = vunpack.c.l.b16 %v583
    %v2017 = vunpack.c.h.b16 %v583
    %v2018 = vunpack.c.l.b16 %v584
    %v2019 = vunpack.c.h.b16 %v584
    %v2020 = vunpack.c.l.b16 %v585
    %v2021 = vunpack.c.h.b16 %v585
    %v2022 = vunpack.c.l.b16 %v586
    %v2023 = vunpack.c.h.b16 %v586
    %v2024 = vunpack.c.l.b16 %v587
    %v2025 = vunpack.c.h.b16 %v587
    %v2026 = vunpack.c.l.b16 %v588
    %v2027 = vunpack.c.h.b16 %v588
    %v2028 = vunpack.c.l.b16 %v589
    %v2029 = vunpack.c.h.b16 %v589
    %v2030 = vunpack.c.l.b16 %v590
    %v2031 = vunpack.c.h.b16 %v590
    %v2032 = vunpack.c.l.b16 %v591
    %v2033 = vunpack.c.h.b16 %v591
    %v2034 = vunpack.c.l.b16 %v592
    %v2035 = vunpack.c.h.b16 %v592
    %v2036 = vunpack.c.l.b16 %v593
    %v2037 = vunpack.c.h.b16 %v593
    %v2038 = vunpack.c.l.b16 %v594
    %v2039 = vunpack.c.h.b16 %v594
    %v2040 = vunpack.c.l.b16 %v595
    %v2041 = vunpack.c.h.b16 %v595
    %v2042 = vunpack.c.l.b16 %v596
    %v2043 = vunpack.c.h.b16 %v596
    %v2044 = vunpack.c.l.b16 %v597
    %v2045 = vunpack.c.h.b16 %v597
    %v2046 = vunpack.c.l.b16 %v598
    %v2047 = vunpack.c.h.b16 %v598
    %v2048 = vunpack.c.l.b16 %v599
    %v2049 = vunpack.c.h.b16 %v599
    %v2050 = vunpack.c.l.b16 %v600
    %v2051 = vunpack.c.h.b16 %v600
    %v2052 = vunpack.c.l.b16 %v601
    %v2053 = vunpack.c.h.b16 %v601
    %v2054 = vunpack.c.l.b16 %v602
    %v2055 = vunpack.c.h.b16 %v602
    %v2056 = vunpack.c.l.b16 %v603
    %v2057 = vunpack.c.h.b16 %v603
    %v2058 = vunpack.c.l.b16 %v604
    %v2059 = vunpack.c.h.b16 %v604
    %v2060 = vunpack.c.l.b16 %v605
    %v2061 = vunpack.c.h.b16 %v605
    %v2062 = vunpack.c.l.b16 %v606
    %v2063 = vunpack.c.h.b16 %v606
    %v2064 = vunpack.c.l.b16 %v607
    %v2065 = vunpack.c.h.b16 %v607
    %v2066 = vunpack.c.l.b16 %v608
    %v2067 = vunpack.c.h.b16 %v608
    %v2068 = vunpack.c.l.b16 %v609
    %v2069 = vunpack.c.h.b16 %v609
    %v2070 = vunpack.c.l.b16 %v610
    %v2071 = vunpack.c.h.b16 %v610
    %v2072 = vunpack.c.l.b16 %v611
    %v2073 = vunpack.c.h.b16 %v611
    %v2074 = vunpack.c.l.b16 %v612
    %v2075 = vunpack.c.h.b16 %v612
    %v2076 = vunpack.c.l.b16 %v613
    %v2077 = vunpack.c.h.b16 %v613
    %v2078 = vunpack.c.l.b16 %v614
    %v2079 = vunpack.c.h.b16 %v614
    %v2080 = vunpack.c.l.b16 %v615
    %v2081 = vunpack.c.h.b16 %v615
    %v2082 = vunpack.c.l.b16 %v616
    %v2083 = vunpack.c.h.b16 %v616
    %v2084 = vunpack.c.l.b16 %v617
    %v2085 = vunpack.c.h.b16 %v617
    %v2086 = vunpack.c.l.b16 %v618
    %v2087 = vunpack.c.h.b16 %v618
    %v2088 = vunpack.c.l.b16 %v619
    %v2089 = vunpack.c.h.b16 %v619
    %v2090 = vunpack.c.l.b16 %v620
    %v2091 = vunpack.c.h.b16 %v620
    %v2092 = vunpack.c.l.b16 %v621
    %v2093 = vunpack.c.h.b16 %v621
    %v2094 = vunpack.c.l.b16 %v622
    %v2095 = vunpack.c.h.b16 %v622
    %v2096 = vunpack.c.l.b16 %v623
    %v2097 = vunpack.c.h.b16 %v623
    %v2098 = vunpack.c.l.b16 %v624
    %v2099 = vunpack.c.h.b16 %v624
    %v2100 = vunpack.c.l.b16 %v625
    %v2101 = vunpack.c.h.b16 %v625
    %v2102 = vunpack.c.l.b16 %v626
    %v2103 = vunpack.c.h.b16 %v626
    %v2104 = vunpack.c.l.b16 %v627
    %v2105 = vunpack.c.h.b16 %v627
    %v2106 = vunpack.c.l.b16 %v628
    %v2107 = vunpack.c.h.b16 %v628
    %v2108 = vunpack.c.l.b16 %v629
    %v2109 = vunpack.c.h.b16 %v629
    %v2110 = vunpack.c.l.b16 %v630
    %v2111 = vunpack.c.h.b16 %v630
    %v2112 = vunpack.c.l.b16 %v631
    %v2113 = vunpack.c.h.b16 %v631
    %v2114 = vunpack.c.l.b16 %v632
    %v2115 = vunpack.c.h.b16 %v632
    %v2116 = vunpack.c.l.b16 %v633
    %v2117 = vunpack.c.h.b16 %v633
    %v2118 = vunpack.c.l.b16 %v634
    %v2119 = vunpack.c.h.b16 %v634
    %v2120 = vunpack.c.l.b16 %v635
    %v2121 = vunpack.c.h.b16 %v635
    %v2122 = vunpack.c.l.b16 %v636
    %v2123 = vunpack.c.h.b16 %v636
    %v2124 = vunpack.c.l.b16 %v637
    %v2125 = vunpack.c.h.b16 %v637
    %v2126 = vunpack.c.l.b16 %v638
    %v2127 = vunpack.c.h.b16 %v638
    %v2128 = vunpack.c.l.b16 %v639
    %v2129 = vunpack.c.h.b16 %v639
    %v2130 = vunpack.c.l.b16 %v640
    %v2131 = vunpack.c.h.b16 %v640
    %v2132 = vunpack.c.l.b16 %v641
    %v2133 = vunpack.c.h.b16 %v641
    %v2134 = vunpack.c.l.b16 %v642
    %v2135 = vunpack.c.h.b16 %v642
    %v2136 = vunpack.c.l.b16 %v643
    %v2137 = vunpack.c.h.b16 %v643
    %v2138 = vunpack.c.l.b16 %v644
    %v2139 = vunpack.c.h.b16 %v644
    %v2140 = vunpack.c.l.b16 %v645
    %v2141 = vunpack.c.h.b16 %v645
    %v2142 = vunpack.c.l.b16 %v646
    %v2143 = vunpack.c.h.b16 %v646
    %v2144 = vunpack.c.l.b16 %v647
    %v2145 = vunpack.c.h.b16 %v647
    %v2146 = vunpack.c.l.b16 %v648
    %v2147 = vunpack.c.h.b16 %v648
    %v2148 = vunpack.c.l.b16 %v649
    %v2149 = vunpack.c.h.b16 %v649
    %v2150 = vunpack.c.l.b16 %v650
    %v2151 = vunpack.c.h.b16 %v650
    %v2152 = vunpack.c.l.b16 %v651
    %v2153 = vunpack.c.h.b16 %v651
    %v2154 = vunpack.c.l.b16 %v652
    %v2155 = vunpack.c.h.b16 %v652
    %v2156 = vunpack.c.l.b16 %v653
    %v2157 = vunpack.c.h.b16 %v653
    %v2158 = vunpack.c.l.b16 %v654
    %v2159 = vunpack.c.h.b16 %v654
    %v2160 = vunpack.c.l.b16 %v655
    %v2161 = vunpack.c.h.b16 %v655
    %v2162 = vunpack.c.l.b16 %v656
    %v2163 = vunpack.c.h.b16 %v656
    %v2164 = vunpack.c.l.b16 %v657
    %v2165 = vunpack.c.h.b16 %v657
    %v2166 = vunpack.c.l.b16 %v658
    %v2167 = vunpack.c.h.b16 %v658
    %v2168 = vunpack.c.l.b16 %v659
    %v2169 = vunpack.c.h.b16 %v659
    %v2170 = vunpack.c.l.b16 %v660
    %v2171 = vunpack.c.h.b16 %v660
    %v2172 = vunpack.c.l.b16 %v661
    %v2173 = vunpack.c.h.b16 %v661
    %v2174 = vunpack.c.l.b16 %v662
    %v2175 = vunpack.c.h.b16 %v662
    %v2176 = vunpack.c.l.b16 %v663
    %v2177 = vunpack.c.h.b16 %v663
    %v2178 = vunpack.c.l.b16 %v664
    %v2179 = vunpack.c.h.b16 %v664
    %v2180 = vunpack.c.l.b16 %v665
    %v2181 = vunpack.c.h.b16 %v665
    %v2182 = vunpack.c.l.b16 %v666
    %v2183 = vunpack.c.h.b16 %v666
    %v2184 = vunpack.c.l.b16 %v667
    %v2185 = vunpack.c.h.b16 %v667
    %v2186 = vunpack.c.l.b16 %v668
    %v2187 = vunpack.c.h.b16 %v668
    %v2188 = vunpack.c.l.b16 %v669
    %v2189 = vunpack.c.h.b16 %v669
    %v2190 = vunpack.c.l.b16 %v670
    %v2191 = vunpack.c.h.b16 %v670
    %v2192 = vunpack.c.l.b16 %v671
    %v2193 = vunpack.c.h.b16 %v671
    %v2194 = vunpack.c.l.b16 %v672
    %v2195 = vunpack.c.h.b16 %v672
    %v2196 = vunpack.c.l.b16 %v673
    %v2197 = vunpack.c.h.b16 %v673
    %v2198 = vunpack.c.l.b16 %v674
    %v2199 = vunpack.c.h.b16 %v674
    %v2200 = vunpack.c.l.b16 %v675
    %v2201 = vunpack.c.h.b16 %v675
    %v2202 = vunpack.c.l.b16 %v676
    %v2203 = vunpack.c.h.b16 %v676
    %v2204 = vunpack.c.l.b16 %v677
    %v2205 = vunpack.c.h.b16 %v677
    %v2206 = vunpack.c.l.b16 %v678
    %v2207 = vunpack.c.h.b16 %v678
    %v2208 = vunpack.c.l.b16 %v679
    %v2209 = vunpack.c.h.b16 %v679
    %v2210 = vunpack.c.l.b16 %v680
    %v2211 = vunpack.c.h.b16 %v680
    %v2212 = vunpack.c.l.b16 %v681
    %v2213 = vunpack.c.h.b16 %v681
    %v2214 = vunpack.c.l.b16 %v682
    %v2215 = vunpack.c.h.b16 %v682
    %v2216 = vunpack.c.l.b16 %v683
    %v2217 = vunpack.c.h.b16 %v683
    %v2218 = vunpack.c.l.b16 %v684
    %v2219 = vunpack.c.h.b16 %v684
    %v2220 = vunpack.c.l.b16 %v685
    %v2221 = vunpack.c.h.b16 %v685
    %v2222 = vunpack.c.l.b16 %v686
    %v2223 = vunpack.c.h.b16 %v686
    %v2224 = vunpack.c.l.b16 %v687
    %v2225 = vunpack.c.h.b16 %v687
    %v2226 = vunpack.c.l.b16 %v688
    %v2227 = vunpack.c.h.b16 %v688
    %v2228 = vunpack.c.l.b16 %v689
    %v2229 = vunpack.c.h.b16 %v689
    %v2230 = vunpack.c.l.b16 %v690
    %v2231 = vunpack.c.h.b16 %v690
    %v2232 = vunpack.c.l.b16 %v691
    %v2233 = vunpack.c.h.b16 %v691
    %v2234 = vunpack.c.l.b16 %v692
    %v2235 = vunpack.c.h.b16 %v692
    %v2236 = vunpack.c.l.b16 %v693
    %v2237 = vunpack.c.h.b16 %v693
    %v2238 = vunpack.c.l.b16 %v694
    %v2239 = vunpack.c.h.b16 %v694
    %v2240 = vunpack.c.l.b16 %v695
    %v2241 = vunpack.c.h.b16 %v695
    %v2242 = vunpack.c.l.b16 %v696
    %v2243 = vunpack.c.h.b16 %v696
    %v2244 = vunpack.c.l.b16 %v697
    %v2245 = vunpack.c.h.b16 %v697
    %v2246 = vunpack.c.l.b16 %v698
    %v2247 = vunpack.c.h.b16 %v698
    %v2248 = vunpack.c.l.b16 %v699
    %v2249 = vunpack.c.h.b16 %v699
    %v2250 = vunpack.c.l.b16 %v700
    %v2251 = vunpack.c.h.b16 %v700
    %v2252 = vunpack.c.l.b16 %v701
    %v2253 = vunpack.c.h.b16 %v701
    %v2254 = vunpack.c.l.b16 %v702
    %v2255 = vunpack.c.h.b16 %v702
    %v2256 = vunpack.c.l.b16 %v703
    %v2257 = vunpack.c.h.b16 %v703
    %v2258 = vunpack.c.l.b16 %v704
    %v2259 = vunpack.c.h.b16 %v704
    %v2260 = vunpack.c.l.b16 %v705
    %v2261 = vunpack.c.h.b16 %v705
    %v2262 = vunpack.c.l.b16 %v706
    %v2263 = vunpack.c.h.b16 %v706
    %v2264 = vunpack.c.l.b16 %v707
    %v2265 = vunpack.c.h.b16 %v707
    %v2266 = vunpack.c.l.b16 %v708
    %v2267 = vunpack.c.h.b16 %v708
    %v2268 = vunpack.c.l.b16 %v709
    %v2269 = vunpack.c.h.b16 %v709
    %v2270 = vunpack.c.l.b16 %v710
    %v2271 = vunpack.c.h.b16 %v710
    %v2272 = vunpack.c.l.b16 %v711
    %v2273 = vunpack.c.h.b16 %v711
    %v2274 = vunpack.c.l.b16 %v712
    %v2275 = vunpack.c.h.b16 %v712
    %v2276 = vunpack.c.l.b16 %v713
    %v2277 = vunpack.c.h.b16 %v713
    %v2278 = vunpack.c.l.b16 %v714
    %v2279 = vunpack.c.h.b16 %v714
    %v2280 = vunpack.c.l.b16 %v715
    %v2281 = vunpack.c.h.b16 %v715
    %v2282 = vunpack.c.l.b16 %v716
    %v2283 = vunpack.c.h.b16 %v716
    %v2284 = vunpack.c.l.b16 %v717
    %v2285 = vunpack.c.h.b16 %v717
    %v2286 = vunpack.c.l.b16 %v718
    %v2287 = vunpack.c.h.b16 %v718
    %v2288 = vunpack.c.l.b16 %v719
    %v2289 = vunpack.c.h.b16 %v719
    %v2290 = vunpack.c.l.b16 %v720
    %v2291 = vunpack.c.h.b16 %v720
    %v2292 = vunpack.c.l.b16 %v721
    %v2293 = vunpack.c.h.b16 %v721
    %v2294 = vunpack.c.l.b16 %v722
    %v2295 = vunpack.c.h.b16 %v722
    %v2296 = vunpack.c.l.b16 %v723
    %v2297 = vunpack.c.h.b16 %v723
    %v2298 = vunpack.c.l.b16 %v724
    %v2299 = vunpack.c.h.b16 %v724
    %v2300 = vunpack.c.l.b16 %v725
    %v2301 = vunpack.c.h.b16 %v725
    %v2302 = vpack.c.b16 %v1286, %v1278
    %v2303 = vpack.c.b16 %v1287, %v1279
    %v2304 = vpack.c.b16 %v1288, %v1280
    %v2305 = vpack.c.b16 %v1289, %v1281
    %v2306 = vpack.c.b16 %v1290, %v1282
    %v2307 = vpack.c.b16 %v1291, %v1283
    %v2308 = vpack.c.b16 %v1292, %v1284
    %v2309 = vpack.c.b16 %v1293, %v1285
    %v2310 = vpack.c.b16 %v1302, %v1294
    %v2311 = vpack.c.b16 %v1303, %v1295
    %v2312 = vpack.c.b16 %v1304, %v1296
    %v2313 = vpack.c.b16 %v1305, %v1297
    %v2314 = vpack.c.b16 %v1306, %v1298
    %v2315 = vpack.c.b16 %v1307, %v1299
    %v2316 = vpack.c.b16 %v1308, %v1300
    %v2317 = vpack.c.b16 %v1309, %v1301
    %v2318 = vpack.c.b16 %v1318, %v1310
    %v2319 = vpack.c.b16 %v1319, %v1311
    %v2320 = vpack.c.b16 %v1320, %v1312
    %v2321 = vpack.c.b16 %v1321, %v1313
    %v2322 = vpack.c.b16 %v1322, %v1314
    %v2323 = vpack.c.b16 %v1323, %v1315
    %v2324 = vpack.c.b16 %v1324, %v1316
    %v2325 = vpack.c.b16 %v1325, %v1317
    %v2326 = vpack.c.b16 %v1334, %v1326
    %v2327 = vpack.c.b16 %v1335, %v1327
    %v2328 = vpack.c.b16 %v1336, %v1328
    %v2329 = vpack.c.b16 %v1337, %v1329
    %v2330 = vpack.c.b16 %v1338, %v1330
    %v2331 = vpack.c.b16 %v1339, %v1331
    %v2332 = vpack.c.b16 %v1340, %v1332
    %v2333 = vpack.c.b16 %v1341, %v1333
    %v2334 = vpack.c.b16 %v1350, %v1342
    %v2335 = vpack.c.b16 %v1351, %v1343
    %v2336 = vpack.c.b16 %v1352, %v1344
    %v2337 = vpack.c.b16 %v1353, %v1345
    %v2338 = vpack.c.b16 %v1354, %v1346
    %v2339 = vpack.c.b16 %v1355, %v1347
    %v2340 = vpack.c.b16 %v1356, %v1348
    %v2341 = vpack.c.b16 %v1357, %v1349
    %v2342 = vpack.c.b16 %v1366, %v1358
    %v2343 = vpack.c.b16 %v1367, %v1359
    %v2344 = vpack.c.b16 %v1368, %v1360
    %v2345 = vpack.c.b16 %v1369, %v1361
    %v2346 = vpack.c.b16 %v1370, %v1362
    %v2347 = vpack.c.b16 %v1371, %v1363
    %v2348 = vpack.c.b16 %v1372, %v1364
    %v2349 = vpack.c.b16 %v1373, %v1365
    %v2350 = vpack.c.b16 %v1382, %v1374
    %v2351 = vpack.c.b16 %v1383, %v1375
    %v2352 = vpack.c.b16 %v1384, %v1376
    %v2353 = vpack.c.b16 %v1385, %v1377
    %v2354 = vpack.c.b16 %v1386, %v1378
    %v2355 = vpack.c.b16 %v1387, %v1379
    %v2356 = vpack.c.b16 %v1388, %v1380
    %v2357 = vpack.c.b16 %v1389, %v1381
    %v2358 = vpack.c.b16 %v1398, %v1390
    %v2359 = vpack.c.b16 %v1399, %v1391
    %v2360 = vpack.c.b16 %v1400, %v1392
    %v2361 = vpack.c.b16 %v1401, %v1393
    %v2362 = vpack.c.b16 %v1402, %v1394
    %v2363 = vpack.c.b16 %v1403, %v1395
    %v2364 = vpack.c.b16 %v1404, %v1396
    %v2365 = vpack.c.b16 %v1405, %v1397
    %v2366 = vpack.c.b16 %v1414, %v1406
    %v2367 = vpack.c.b16 %v1415, %v1407
    %v2368 = vpack.c.b16 %v1416, %v1408
    %v2369 = vpack.c.b16 %v1417, %v1409
    %v2370 = vpack.c.b16 %v1418, %v1410
    %v2371 = vpack.c.b16 %v1419, %v1411
    %v2372 = vpack.c.b16 %v1420, %v1412
    %v2373 = vpack.c.b16 %v1421, %v1413
    %v2374 = vpack.c.b16 %v1430, %v1422
    %v2375 = vpack.c.b16 %v1431, %v1423
    %v2376 = vpack.c.b16 %v1432, %v1424
    %v2377 = vpack.c.b16 %v1433, %v1425
    %v2378 = vpack.c.b16 %v1434, %v1426
    %v2379 = vpack.c.b16 %v1435, %v1427
    %v2380 = vpack.c.b16 %v1436, %v1428
    %v2381 = vpack.c.b16 %v1437, %v1429
    %v2382 = vpack.c.b16 %v1446, %v1438
    %v2383 = vpack.c.b16 %v1447, %v1439
    %v2384 = vpack.c.b16 %v1448, %v1440
    %v2385 = vpack.c.b16 %v1449, %v1441
    %v2386 = vpack.c.b16 %v1450, %v1442
    %v2387 = vpack.c.b16 %v1451, %v1443
    %v2388 = vpack.c.b16 %v1452, %v1444
    %v2389 = vpack.c.b16 %v1453, %v1445
    %v2390 = vpack.c.b16 %v1462, %v1454
    %v2391 = vpack.c.b16 %v1463, %v1455
    %v2392 = vpack.c.b16 %v1464, %v1456
    %v2393 = vpack.c.b16 %v1465, %v1457
    %v2394 = vpack.c.b16 %v1466, %v1458
    %v2395 = vpack.c.b16 %v1467, %v1459
    %v2396 = vpack.c.b16 %v1468, %v1460
    %v2397 = vpack.c.b16 %v1469, %v1461
    %v2398 = vpack.c.b16 %v1478, %v1470
    %v2399 = vpack.c.b16 %v1479, %v1471
    %v2400 = vpack.c.b16 %v1480, %v1472
    %v2401 = vpack.c.b16 %v1481, %v1473
    %v2402 = vpack.c.b16 %v1482, %v1474
    %v2403 = vpack.c.b16 %v1483, %v1475
    %v2404 = vpack.c.b16 %v1484, %v1476
    %v2405 = vpack.c.b16 %v1485, %v1477
    %v2406 = vpack.c.b16 %v1494, %v1486
    %v2407 = vpack.c.b16 %v1495, %v1487
    %v2408 = vpack.c.b16 %v1496, %v1488
    %v2409 = vpack.c.b16 %v1497, %v1489
    %v2410 = vpack.c.b16 %v1498, %v1490
    %v2411 = vpack.c.b16 %v1499, %v1491
    %v2412 = vpack.c.b16 %v1500, %v1492
    %v2413 = vpack.c.b16 %v1501, %v1493
    %v2414 = vpack.c.b16 %v1510, %v1502
    %v2415 = vpack.c.b16 %v1511, %v1503
    %v2416 = vpack.c.b16 %v1512, %v1504
    %v2417 = vpack.c.b16 %v1513, %v1505
    %v2418 = vpack.c.b16 %v1514, %v1506
    %v2419 = vpack.c.b16 %v1515, %v1507
    %v2420 = vpack.c.b16 %v1516, %v1508
    %v2421 = vpack.c.b16 %v1517, %v1509
    %v2422 = vpack.c.b16 %v1526, %v1518
    %v2423 = vpack.c.b16 %v1527, %v1519
    %v2424 = vpack.c.b16 %v1528, %v1520
    %v2425 = vpack.c.b16 %v1529, %v1521
    %v2426 = vpack.c.b16 %v1530, %v1522
    %v2427 = vpack.c.b16 %v1531, %v1523
    %v2428 = vpack.c.b16 %v1532, %v1524
    %v2429 = vpack.c.b16 %v1533, %v1525
    %v2430 = vpack.c.b16 %v1542, %v1534
    %v2431 = vpack.c.b16 %v1543, %v1535
    %v2432 = vpack.c.b16 %v1544, %v1536
    %v2433 = vpack.c.b16 %v1545, %v1537
    %v2434 = vpack.c.b16 %v1546, %v1538
    %v2435 = vpack.c.b16 %v1547, %v1539
    %v2436 = vpack.c.b16 %v1548, %v1540
    %v2437 = vpack.c.b16 %v1549, %v1541
    %v2438 = vpack.c.b16 %v1558, %v1550
    %v2439 = vpack.c.b16 %v1559, %v1551
    %v2440 = vpack.c.b16 %v1560, %v1552
    %v2441 = vpack.c.b16 %v1561, %v1553
    %v2442 = vpack.c.b16 %v1562, %v1554
    %v2443 = vpack.c.b16 %v1563, %v1555
    %v2444 = vpack.c.b16 %v1564, %v1556
    %v2445 = vpack.c.b16 %v1565, %v1557
    %v2446 = vpack.c.b16 %v1574, %v1566
    %v2447 = vpack.c.b16 %v1575, %v1567
    %v2448 = vpack.c.b16 %v1576, %v1568
    %v2449 = vpack.c.b16 %v1577, %v1569
    %v2450 = vpack.c.b16 %v1578, %v1570
    %v2451 = vpack.c.b16 %v1579, %v1571
    %v2452 = vpack.c.b16 %v1580, %v1572
    %v2453 = vpack.c.b16 %v1581, %v1573
    %v2454 = vpack.c.b16 %v1590, %v1582
    %v2455 = vpack.c.b16 %v1591, %v1583
    %v2456 = vpack.c.b16 %v1592, %v1584
    %v2457 = vpack.c.b16 %v1593, %v1585
    %v2458 = vpack.c.b16 %v1594, %v1586
    %v2459 = vpack.c.b16 %v1595, %v1587
    %v2460 = vpack.c.b16 %v1596, %v1588
    %v2461 = vpack.c.b16 %v1597, %v1589
    %v2462 = vpack.c.b16 %v1606, %v1598
    %v2463 = vpack.c.b16 %v1607, %v1599
    %v2464 = vpack.c.b16 %v1608, %v1600
    %v2465 = vpack.c.b16 %v1609, %v1601
    %v2466 = vpack.c.b16 %v1610, %v1602
    %v2467 = vpack.c.b16 %v1611, %v1603
    %v2468 = vpack.c.b16 %v1612, %v1604
    %v2469 = vpack.c.b16 %v1613, %v1605
    %v2470 = vpack.c.b16 %v1622, %v1614
    %v2471 = vpack.c.b16 %v1623, %v1615
    %v2472 = vpack.c.b16 %v1624, %v1616
    %v2473 = vpack.c.b16 %v1625, %v1617
    %v2474 = vpack.c.b16 %v1626, %v1618
    %v2475 = vpack.c.b16 %v1627, %v1619
    %v2476 = vpack.c.b16 %v1628, %v1620
    %v2477 = vpack.c.b16 %v1629, %v1621
    %v2478 = vpack.c.b16 %v1638, %v1630
    %v2479 = vpack.c.b16 %v1639, %v1631
    %v2480 = vpack.c.b16 %v1640, %v1632
    %v2481 = vpack.c.b16 %v1641, %v1633
    %v2482 = vpack.c.b16 %v1642, %v1634
    %v2483 = vpack.c.b16 %v1643, %v1635
    %v2484 = vpack.c.b16 %v1644, %v1636
    %v2485 = vpack.c.b16 %v1645, %v1637
    %v2486 = vpack.c.b16 %v1654, %v1646
    %v2487 = vpack.c.b16 %v1655, %v1647
    %v2488 = vpack.c.b16 %v1656, %v1648
    %v2489 = vpack.c.b16 %v1657, %v1649
    %v2490 = vpack.c.b16 %v1658, %v1650
    %v2491 = vpack.c.b16 %v1659, %v1651
    %v2492 = vpack.c.b16 %v1660, %v1652
    %v2493 = vpack.c.b16 %v1661, %v1653
    %v2494 = vpack.c.b16 %v1670, %v1662
    %v2495 = vpack.c.b16 %v1671, %v1663
    %v2496 = vpack.c.b16 %v1672, %v1664
    %v2497 = vpack.c.b16 %v1673, %v1665
    %v2498 = vpack.c.b16 %v1674, %v1666
    %v2499 = vpack.c.b16 %v1675, %v1667
    %v2500 = vpack.c.b16 %v1676, %v1668
    %v2501 = vpack.c.b16 %v1677, %v1669
    %v2502 = vpack.c.b16 %v1686, %v1678
    %v2503 = vpack.c.b16 %v1687, %v1679
    %v2504 = vpack.c.b16 %v1688, %v1680
    %v2505 = vpack.c.b16 %v1689, %v1681
    %v2506 = vpack.c.b16 %v1690, %v1682
    %v2507 = vpack.c.b16 %v1691, %v1683
    %v2508 = vpack.c.b16 %v1692, %v1684
    %v2509 = vpack.c.b16 %v1693, %v1685
    %v2510 = vpack.c.b16 %v1702, %v1694
    %v2511 = vpack.c.b16 %v1703, %v1695
    %v2512 = vpack.c.b16 %v1704, %v1696
    %v2513 = vpack.c.b16 %v1705, %v1697
    %v2514 = vpack.c.b16 %v1706, %v1698
    %v2515 = vpack.c.b16 %v1707, %v1699
    %v2516 = vpack.c.b16 %v1708, %v1700
    %v2517 = vpack.c.b16 %v1709, %v1701
    %v2518 = vpack.c.b16 %v1718, %v1710
    %v2519 = vpack.c.b16 %v1719, %v1711
    %v2520 = vpack.c.b16 %v1720, %v1712
    %v2521 = vpack.c.b16 %v1721, %v1713
    %v2522 = vpack.c.b16 %v1722, %v1714
    %v2523 = vpack.c.b16 %v1723, %v1715
    %v2524 = vpack.c.b16 %v1724, %v1716
    %v2525 = vpack.c.b16 %v1725, %v1717
    %v2526 = vpack.c.b16 %v1734, %v1726
    %v2527 = vpack.c.b16 %v1735, %v1727
    %v2528 = vpack.c.b16 %v1736, %v1728
    %v2529 = vpack.c.b16 %v1737, %v1729
    %v2530 = vpack.c.b16 %v1738, %v1730
    %v2531 = vpack.c.b16 %v1739, %v1731
    %v2532 = vpack.c.b16 %v1740, %v1732
    %v2533 = vpack.c.b16 %v1741, %v1733
    %v2534 = vpack.c.b16 %v1750, %v1742
    %v2535 = vpack.c.b16 %v1751, %v1743
    %v2536 = vpack.c.b16 %v1752, %v1744
    %v2537 = vpack.c.b16 %v1753, %v1745
    %v2538 = vpack.c.b16 %v1754, %v1746
    %v2539 = vpack.c.b16 %v1755, %v1747
    %v2540 = vpack.c.b16 %v1756, %v1748
    %v2541 = vpack.c.b16 %v1757, %v1749
    %v2542 = vpack.c.b16 %v1766, %v1758
    %v2543 = vpack.c.b16 %v1767, %v1759
    %v2544 = vpack.c.b16 %v1768, %v1760
    %v2545 = vpack.c.b16 %v1769, %v1761
    %v2546 = vpack.c.b16 %v1770, %v1762
    %v2547 = vpack.c.b16 %v1771, %v1763
    %v2548 = vpack.c.b16 %v1772, %v1764
    %v2549 = vpack.c.b16 %v1773, %v1765
    %v2550 = vpack.c.b16 %v1782, %v1774
    %v2551 = vpack.c.b16 %v1783, %v1775
    %v2552 = vpack.c.b16 %v1784, %v1776
    %v2553 = vpack.c.b16 %v1785, %v1777
    %v2554 = vpack.c.b16 %v1786, %v1778
    %v2555 = vpack.c.b16 %v1787, %v1779
    %v2556 = vpack.c.b16 %v1788, %v1780
    %v2557 = vpack.c.b16 %v1789, %v1781
    %v2558 = vpack.c.b16 %v1798, %v1790
    %v2559 = vpack.c.b16 %v1799, %v1791
    %v2560 = vpack.c.b16 %v1800, %v1792
    %v2561 = vpack.c.b16 %v1801, %v1793
    %v2562 = vpack.c.b16 %v1802, %v1794
    %v2563 = vpack.c.b16 %v1803, %v1795
    %v2564 = vpack.c.b16 %v1804, %v1796
    %v2565 = vpack.c.b16 %v1805, %v1797
    %v2566 = vpack.c.b16 %v1814, %v1806
    %v2567 = vpack.c.b16 %v1815, %v1807
    %v2568 = vpack.c.b16 %v1816, %v1808
    %v2569 = vpack.c.b16 %v1817, %v1809
    %v2570 = vpack.c.b16 %v1818, %v1810
    %v2571 = vpack.c.b16 %v1819, %v1811
    %v2572 = vpack.c.b16 %v1820, %v1812
    %v2573 = vpack.c.b16 %v1821, %v1813
    %v2574 = vpack.c.b16 %v1830, %v1822
    %v2575 = vpack.c.b16 %v1831, %v1823
    %v2576 = vpack.c.b16 %v1832, %v1824
    %v2577 = vpack.c.b16 %v1833, %v1825
    %v2578 = vpack.c.b16 %v1834, %v1826
    %v2579 = vpack.c.b16 %v1835, %v1827
    %v2580 = vpack.c.b16 %v1836, %v1828
    %v2581 = vpack.c.b16 %v1837, %v1829
    %v2582 = vpack.c.b16 %v1846, %v1838
    %v2583 = vpack.c.b16 %v1847, %v1839
    %v2584 = vpack.c.b16 %v1848, %v1840
    %v2585 = vpack.c.b16 %v1849, %v1841
    %v2586 = vpack.c.b16 %v1850, %v1842
    %v2587 = vpack.c.b16 %v1851, %v1843
    %v2588 = vpack.c.b16 %v1852, %v1844
    %v2589 = vpack.c.b16 %v1853, %v1845
    %v2590 = vpack.c.b16 %v1862, %v1854
    %v2591 = vpack.c.b16 %v1863, %v1855
    %v2592 = vpack.c.b16 %v1864, %v1856
    %v2593 = vpack.c.b16 %v1865, %v1857
    %v2594 = vpack.c.b16 %v1866, %v1858
    %v2595 = vpack.c.b16 %v1867, %v1859
    %v2596 = vpack.c.b16 %v1868, %v1860
    %v2597 = vpack.c.b16 %v1869, %v1861
    %v2598 = vpack.c.b16 %v1878, %v1870
    %v2599 = vpack.c.b16 %v1879, %v1871
    %v2600 = vpack.c.b16 %v1880, %v1872
    %v2601 = vpack.c.b16 %v1881, %v1873
    %v2602 = vpack.c.b16 %v1882, %v1874
    %v2603 = vpack.c.b16 %v1883, %v1875
    %v2604 = vpack.c.b16 %v1884, %v1876
    %v2605 = vpack.c.b16 %v1885, %v1877
    %v2606 = vpack.c.b16 %v1894, %v1886
    %v2607 = vpack.c.b16 %v1895, %v1887
    %v2608 = vpack.c.b16 %v1896, %v1888
    %v2609 = vpack.c.b16 %v1897, %v1889
    %v2610 = vpack.c.b16 %v1898, %v1890
    %v2611 = vpack.c.b16 %v1899, %v1891
    %v2612 = vpack.c.b16 %v1900, %v1892
    %v2613 = vpack.c.b16 %v1901, %v1893
    %v2614 = vpack.c.b16 %v1910, %v1902
    %v2615 = vpack.c.b16 %v1911, %v1903
    %v2616 = vpack.c.b16 %v1912, %v1904
    %v2617 = vpack.c.b16 %v1913, %v1905
    %v2618 = vpack.c.b16 %v1914, %v1906
    %v2619 = vpack.c.b16 %v1915, %v1907
    %v2620 = vpack.c.b16 %v1916, %v1908
    %v2621 = vpack.c.b16 %v1917, %v1909
    %v2622 = vpack.c.b16 %v1926, %v1918
    %v2623 = vpack.c.b16 %v1927, %v1919
    %v2624 = vpack.c.b16 %v1928, %v1920
    %v2625 = vpack.c.b16 %v1929, %v1921
    %v2626 = vpack.c.b16 %v1930, %v1922
    %v2627 = vpack.c.b16 %v1931, %v1923
    %v2628 = vpack.c.b16 %v1932, %v1924
    %v2629 = vpack.c.b16 %v1933, %v1925
    %v2630 = vpack.c.b16 %v1942, %v1934
    %v2631 = vpack.c.b16 %v1943, %v1935
    %v2632 = vpack.c.b16 %v1944, %v1936
    %v2633 = vpack.c.b16 %v1945, %v1937
    %v2634 = vpack.c.b16 %v1946, %v1938
    %v2635 = vpack.c.b16 %v1947, %v1939
    %v2636 = vpack.c.b16 %v1948, %v1940
    %v2637 = vpack.c.b16 %v1949, %v1941
    %v2638 = vpack.c.b16 %v1958, %v1950
    %v2639 = vpack.c.b16 %v1959, %v1951
    %v2640 = vpack.c.b16 %v1960, %v1952
    %v2641 = vpack.c.b16 %v1961, %v1953
    %v2642 = vpack.c.b16 %v1962, %v1954
    %v2643 = vpack.c.b16 %v1963, %v1955
    %v2644 = vpack.c.b16 %v1964, %v1956
    %v2645 = vpack.c.b16 %v1965, %v1957
    %v2646 = vpack.c.b16 %v1974, %v1966
    %v2647 = vpack.c.b16 %v1975, %v1967
    %v2648 = vpack.c.b16 %v1976, %v1968
    %v2649 = vpack.c.b16 %v1977, %v1969
    %v2650 = vpack.c.b16 %v1978, %v1970
    %v2651 = vpack.c.b16 %v1979, %v1971
    %v2652 = vpack.c.b16 %v1980, %v1972
    %v2653 = vpack.c.b16 %v1981, %v1973
    %v2654 = vpack.c.b16 %v1990, %v1982
    %v2655 = vpack.c.b16 %v1991, %v1983
    %v2656 = vpack.c.b16 %v1992, %v1984
    %v2657 = vpack.c.b16 %v1993, %v1985
    %v2658 = vpack.c.b16 %v1994, %v1986
    %v2659 = vpack.c.b16 %v1995, %v1987
    %v2660 = vpack.c.b16 %v1996, %v1988
    %v2661 = vpack.c.b16 %v1997, %v1989
    %v2662 = vpack.c.b16 %v2006, %v1998
    %v2663 = vpack.c.b16 %v2007, %v1999
    %v2664 = vpack.c.b16 %v2008, %v2000
    %v2665 = vpack.c.b16 %v2009, %v2001
    %v2666 = vpack.c.b16 %v2010, %v2002
    %v2667 = vpack.c.b16 %v2011, %v2003
    %v2668 = vpack.c.b16 %v2012, %v2004
    %v2669 = vpack.c.b16 %v2013, %v2005
    %v2670 = vpack.c.b16 %v2022, %v2014
    %v2671 = vpack.c.b16 %v2023, %v2015
    %v2672 = vpack.c.b16 %v2024, %v2016
    %v2673 = vpack.c.b16 %v2025, %v2017
    %v2674 = vpack.c.b16 %v2026, %v2018
    %v2675 = vpack.c.b16 %v2027, %v2019
    %v2676 = vpack.c.b16 %v2028, %v2020
    %v2677 = vpack.c.b16 %v2029, %v2021
    %v2678 = vpack.c.b16 %v2038, %v2030
    %v2679 = vpack.c.b16 %v2039, %v2031
    %v2680 = vpack.c.b16 %v2040, %v2032
    %v2681 = vpack.c.b16 %v2041, %v2033
    %v2682 = vpack.c.b16 %v2042, %v2034
    %v2683 = vpack.c.b16 %v2043, %v2035
    %v2684 = vpack.c.b16 %v2044, %v2036
    %v2685 = vpack.c.b16 %v2045, %v2037
    %v2686 = vpack.c.b16 %v2054, %v2046
    %v2687 = vpack.c.b16 %v2055, %v2047
    %v2688 = vpack.c.b16 %v2056, %v2048
    %v2689 = vpack.c.b16 %v2057, %v2049
    %v2690 = vpack.c.b16 %v2058, %v2050
    %v2691 = vpack.c.b16 %v2059, %v2051
    %v2692 = vpack.c.b16 %v2060, %v2052
    %v2693 = vpack.c.b16 %v2061, %v2053
    %v2694 = vpack.c.b16 %v2070, %v2062
    %v2695 = vpack.c.b16 %v2071, %v2063
    %v2696 = vpack.c.b16 %v2072, %v2064
    %v2697 = vpack.c.b16 %v2073, %v2065
    %v2698 = vpack.c.b16 %v2074, %v2066
    %v2699 = vpack.c.b16 %v2075, %v2067
    %v2700 = vpack.c.b16 %v2076, %v2068
    %v2701 = vpack.c.b16 %v2077, %v2069
    %v2702 = vpack.c.b16 %v2086, %v2078
    %v2703 = vpack.c.b16 %v2087, %v2079
    %v2704 = vpack.c.b16 %v2088, %v2080
    %v2705 = vpack.c.b16 %v2089, %v2081
    %v2706 = vpack.c.b16 %v2090, %v2082
    %v2707 = vpack.c.b16 %v2091, %v2083
    %v2708 = vpack.c.b16 %v2092, %v2084
    %v2709 = vpack.c.b16 %v2093, %v2085
    %v2710 = vpack.c.b16 %v2102, %v2094
    %v2711 = vpack.c.b16 %v2103, %v2095
    %v2712 = vpack.c.b16 %v2104, %v2096
    %v2713 = vpack.c.b16 %v2105, %v2097
    %v2714 = vpack.c.b16 %v2106, %v2098
    %v2715 = vpack.c.b16 %v2107, %v2099
    %v2716 = vpack.c.b16 %v2108, %v2100
    %v2717 = vpack.c.b16 %v2109, %v2101
    %v2718 = vpack.c.b16 %v2118, %v2110
    %v2719 = vpack.c.b16 %v2119, %v2111
    %v2720 = vpack.c.b16 %v2120, %v2112
    %v2721 = vpack.c.b16 %v2121, %v2113
    %v2722 = vpack.c.b16 %v2122, %v2114
    %v2723 = vpack.c.b16 %v2123, %v2115
    %v2724 = vpack.c.b16 %v2124, %v2116
    %v2725 = vpack.c.b16 %v2125, %v2117
    %v2726 = vpack.c.b16 %v2134, %v2126
    %v2727 = vpack.c.b16 %v2135, %v2127
    %v2728 = vpack.c.b16 %v2136, %v2128
    %v2729 = vpack.c.b16 %v2137, %v2129
    %v2730 = vpack.c.b16 %v2138, %v2130
    %v2731 = vpack.c.b16 %v2139, %v2131
    %v2732 = vpack.c.b16 %v2140, %v2132
    %v2733 = vpack.c.b16 %v2141, %v2133
    %v2734 = vpack.c.b16 %v2150, %v2142
    %v2735 = vpack.c.b16 %v2151, %v2143
    %v2736 = vpack.c.b16 %v2152, %v2144
    %v2737 = vpack.c.b16 %v2153, %v2145
    %v2738 = vpack.c.b16 %v2154, %v2146
    %v2739 = vpack.c.b16 %v2155, %v2147
    %v2740 = vpack.c.b16 %v2156, %v2148
    %v2741 = vpack.c.b16 %v2157, %v2149
    %v2742 = vpack.c.b16 %v2166, %v2158
    %v2743 = vpack.c.b16 %v2167, %v2159
    %v2744 = vpack.c.b16 %v2168, %v2160
    %v2745 = vpack.c.b16 %v2169, %v2161
    %v2746 = vpack.c.b16 %v2170, %v2162
    %v2747 = vpack.c.b16 %v2171, %v2163
    %v2748 = vpack.c.b16 %v2172, %v2164
    %v2749 = vpack.c.b16 %v2173, %v2165
    %v2750 = vpack.c.b16 %v2182, %v2174
    %v2751 = vpack.c.b16 %v2183, %v2175
    %v2752 = vpack.c.b16 %v2184, %v2176
    %v2753 = vpack.c.b16 %v2185, %v2177
    %v2754 = vpack.c.b16 %v2186, %v2178
    %v2755 = vpack.c.b16 %v2187, %v2179
    %v2756 = vpack.c.b16 %v2188, %v2180
    %v2757 = vpack.c.b16 %v2189, %v2181
    %v2758 = vpack.c.b16 %v2198, %v2190
    %v2759 = vpack.c.b16 %v2199, %v2191
    %v2760 = vpack.c.b16 %v2200, %v2192
    %v2761 = vpack.c.b16 %v2201, %v2193
    %v2762 = vpack.c.b16 %v2202, %v2194
    %v2763 = vpack.c.b16 %v2203, %v2195
    %v2764 = vpack.c.b16 %v2204, %v2196
    %v2765 = vpack.c.b16 %v2205, %v2197
    %v2766 = vpack.c.b16 %v2214, %v2206
    %v2767 = vpack.c.b16 %v2215, %v2207
    %v2768 = vpack.c.b16 %v2216, %v2208
    %v2769 = vpack.c.b16 %v2217, %v2209
    %v2770 = vpack.c.b16 %v2218, %v2210
    %v2771 = vpack.c.b16 %v2219, %v2211
    %v2772 = vpack.c.b16 %v2220, %v2212
    %v2773 = vpack.c.b16 %v2221, %v2213
    %v2774 = vpack.c.b16 %v2230, %v2222
    %v2775 = vpack.c.b16 %v2231, %v2223
    %v2776 = vpack.c.b16 %v2232, %v2224
    %v2777 = vpack.c.b16 %v2233, %v2225
    %v2778 = vpack.c.b16 %v2234, %v2226
    %v2779 = vpack.c.b16 %v2235, %v2227
    %v2780 = vpack.c.b16 %v2236, %v2228
    %v2781 = vpack.c.b16 %v2237, %v2229
    %v2782 = vpack.c.b16 %v2246, %v2238
    %v2783 = vpack.c.b16 %v2247, %v2239
    %v2784 = vpack.c.b16 %v2248, %v2240
    %v2785 = vpack.c.b16 %v2249, %v2241
    %v2786 = vpack.c.b16 %v2250, %v2242
    %v2787 = vpack.c.b16 %v2251, %v2243
    %v2788 = vpack.c.b16 %v2252, %v2244
    %v2789 = vpack.c.b16 %v2253, %v2245
    %v2790 = vpack.c.b16 %v2262, %v2254
    %v2791 = vpack.c.b16 %v2263, %v2255
    %v2792 = vpack.c.b16 %v2264, %v2256
    %v2793 = vpack.c.b16 %v2265, %v2257
    %v2794 = vpack.c.b16 %v2266, %v2258
    %v2795 = vpack.c.b16 %v2267, %v2259
    %v2796 = vpack.c.b16 %v2268, %v2260
    %v2797 = vpack.c.b16 %v2269, %v2261
    %v2798 = vpack.c.b16 %v2278, %v2270
    %v2799 = vpack.c.b16 %v2279, %v2271
    %v2800 = vpack.c.b16 %v2280, %v2272
    %v2801 = vpack.c.b16 %v2281, %v2273
    %v2802 = vpack.c.b16 %v2282, %v2274
    %v2803 = vpack.c.b16 %v2283, %v2275
    %v2804 = vpack.c.b16 %v2284, %v2276
    %v2805 = vpack.c.b16 %v2285, %v2277
    %v2806 = vpack.c.b16 %v2294, %v2286
    %v2807 = vpack.c.b16 %v2295, %v2287
    %v2808 = vpack.c.b16 %v2296, %v2288
    %v2809 = vpack.c.b16 %v2297, %v2289
    %v2810 = vpack.c.b16 %v2298, %v2290
    %v2811 = vpack.c.b16 %v2299, %v2291
    %v2812 = vpack.c.b16 %v2300, %v2292
    %v2813 = vpack.c.b16 %v2301, %v2293
    %3326 = vmatpush.bf16.msra.mxu0 %v2358
    %3327 = vmatpush.bf16.msra.mxu0 %v2350
    %3328 = vmatpush.bf16.msra.mxu0 %v2342
    %3329 = vmatpush.bf16.msra.mxu0 %v2334
    %3330 = vmatpush.bf16.msra.mxu0 %v2326
    %3331 = vmatpush.bf16.msra.mxu0 %v2318
    %3332 = vmatpush.bf16.msra.mxu0 %v2310
    %3333 = vmatpush.bf16.msra.mxu0 %v2302
    %3334 = vmatmul.bf16.gmra.mxu0 %v750
    %v3335 = vpop.f32.mrf.mxu0
    %v3336 = vadd.f32 0.0, %v3335
    %v3337 = vpop.f32.mrf.mxu0
    %v3338 = vadd.f32 0.0, %v3337
    %3339 = vdwg.mxu0
    %3340 = vmatpush.bf16.msra.mxu0 %v2422
    %3341 = vmatpush.bf16.msra.mxu0 %v2414
    %3342 = vmatpush.bf16.msra.mxu0 %v2406
    %3343 = vmatpush.bf16.msra.mxu0 %v2398
    %3344 = vmatpush.bf16.msra.mxu0 %v2390
    %3345 = vmatpush.bf16.msra.mxu0 %v2382
    %3346 = vmatpush.bf16.msra.mxu0 %v2374
    %3347 = vmatpush.bf16.msra.mxu0 %v2366
    %3348 = vmatmul.bf16.gmra.mxu0 %v751
    %v3349 = vpop.f32.mrf.mxu0
    %v3350 = vadd.f32 %v3336, %v3349
    %v3351 = vpop.f32.mrf.mxu0
    %v3352 = vadd.f32 %v3338, %v3351
    %3353 = vdwg.mxu0
    %3354 = vmatpush.bf16.msra.mxu0 %v2486
    %3355 = vmatpush.bf16.msra.mxu0 %v2478
    %3356 = vmatpush.bf16.msra.mxu0 %v2470
    %3357 = vmatpush.bf16.msra.mxu0 %v2462
    %3358 = vmatpush.bf16.msra.mxu0 %v2454
    %3359 = vmatpush.bf16.msra.mxu0 %v2446
    %3360 = vmatpush.bf16.msra.mxu0 %v2438
    %3361 = vmatpush.bf16.msra.mxu0 %v2430
    %3362 = vmatmul.bf16.gmra.mxu0 %v752
    %v3363 = vpop.f32.mrf.mxu0
    %v3364 = vadd.f32 %v3350, %v3363
    %v3365 = vpop.f32.mrf.mxu0
    %v3366 = vadd.f32 %v3352, %v3365
    %3367 = vdwg.mxu0
    %3368 = vmatpush.bf16.msra.mxu0 %v2550
    %3369 = vmatpush.bf16.msra.mxu0 %v2542
    %3370 = vmatpush.bf16.msra.mxu0 %v2534
    %3371 = vmatpush.bf16.msra.mxu0 %v2526
    %3372 = vmatpush.bf16.msra.mxu0 %v2518
    %3373 = vmatpush.bf16.msra.mxu0 %v2510
    %3374 = vmatpush.bf16.msra.mxu0 %v2502
    %3375 = vmatpush.bf16.msra.mxu0 %v2494
    %3376 = vmatmul.bf16.gmra.mxu0 %v753
    %v3377 = vpop.f32.mrf.mxu0
    %v3378 = vadd.f32 %v3364, %v3377
    %v3379 = vpop.f32.mrf.mxu0
    %v3380 = vadd.f32 %v3366, %v3379
    %3381 = vdwg.mxu0
    %3382 = vmatpush.bf16.msra.mxu0 %v2614
    %3383 = vmatpush.bf16.msra.mxu0 %v2606
    %3384 = vmatpush.bf16.msra.mxu0 %v2598
    %3385 = vmatpush.bf16.msra.mxu0 %v2590
    %3386 = vmatpush.bf16.msra.mxu0 %v2582
    %3387 = vmatpush.bf16.msra.mxu0 %v2574
    %3388 = vmatpush.bf16.msra.mxu0 %v2566
    %3389 = vmatpush.bf16.msra.mxu0 %v2558
    %3390 = vmatmul.bf16.gmra.mxu0 %v754
    %v3391 = vpop.f32.mrf.mxu0
    %v3392 = vadd.f32 %v3378, %v3391
    %v3393 = vpop.f32.mrf.mxu0
    %v3394 = vadd.f32 %v3380, %v3393
    %3395 = vdwg.mxu0
    %3396 = vmatpush.bf16.msra.mxu0 %v2678
    %3397 = vmatpush.bf16.msra.mxu0 %v2670
    %3398 = vmatpush.bf16.msra.mxu0 %v2662
    %3399 = vmatpush.bf16.msra.mxu0 %v2654
    %3400 = vmatpush.bf16.msra.mxu0 %v2646
    %3401 = vmatpush.bf16.msra.mxu0 %v2638
    %3402 = vmatpush.bf16.msra.mxu0 %v2630
    %3403 = vmatpush.bf16.msra.mxu0 %v2622
    %3404 = vmatmul.bf16.gmra.mxu0 %v755
    %v3405 = vpop.f32.mrf.mxu0
    %v3406 = vadd.f32 %v3392, %v3405
    %v3407 = vpop.f32.mrf.mxu0
    %v3408 = vadd.f32 %v3394, %v3407
    %3409 = vdwg.mxu0
    %3410 = vmatpush.bf16.msra.mxu0 %v2742
    %3411 = vmatpush.bf16.msra.mxu0 %v2734
    %3412 = vmatpush.bf16.msra.mxu0 %v2726
    %3413 = vmatpush.bf16.msra.mxu0 %v2718
    %3414 = vmatpush.bf16.msra.mxu0 %v2710
    %3415 = vmatpush.bf16.msra.mxu0 %v2702
    %3416 = vmatpush.bf16.msra.mxu0 %v2694
    %3417 = vmatpush.bf16.msra.mxu0 %v2686
    %3418 = vmatmul.bf16.gmra.mxu0 %v756
    %v3419 = vpop.f32.mrf.mxu0
    %v3420 = vadd.f32 %v3406, %v3419
    %v3421 = vpop.f32.mrf.mxu0
    %v3422 = vadd.f32 %v3408, %v3421
    %3423 = vdwg.mxu0
    %3424 = vmatpush.bf16.msra.mxu0 %v2806
    %3425 = vmatpush.bf16.msra.mxu0 %v2798
    %3426 = vmatpush.bf16.msra.mxu0 %v2790
    %3427 = vmatpush.bf16.msra.mxu0 %v2782
    %3428 = vmatpush.bf16.msra.mxu0 %v2774
    %3429 = vmatpush.bf16.msra.mxu0 %v2766
    %3430 = vmatpush.bf16.msra.mxu0 %v2758
    %3431 = vmatpush.bf16.msra.mxu0 %v2750
    %3432 = vmatmul.bf16.gmra.mxu0 %v757
    %v3433 = vpop.f32.mrf.mxu0
    %v3434 = vadd.f32 %v3420, %v3433
    %v3435 = vpop.f32.mrf.mxu0
    %v3436 = vadd.f32 %v3422, %v3435
    %3437 = vdwg.mxu0
    %3438 = vmatpush.bf16.msra.mxu0 %v2359
    %3439 = vmatpush.bf16.msra.mxu0 %v2351
    %3440 = vmatpush.bf16.msra.mxu0 %v2343
    %3441 = vmatpush.bf16.msra.mxu0 %v2335
    %3442 = vmatpush.bf16.msra.mxu0 %v2327
    %3443 = vmatpush.bf16.msra.mxu0 %v2319
    %3444 = vmatpush.bf16.msra.mxu0 %v2311
    %3445 = vmatpush.bf16.msra.mxu0 %v2303
    %3446 = vmatmul.bf16.gmra.mxu0 %v750
    %v3447 = vpop.f32.mrf.mxu0
    %v3448 = vadd.f32 0.0, %v3447
    %v3449 = vpop.f32.mrf.mxu0
    %v3450 = vadd.f32 0.0, %v3449
    %3451 = vdwg.mxu0
    %3452 = vmatpush.bf16.msra.mxu0 %v2423
    %3453 = vmatpush.bf16.msra.mxu0 %v2415
    %3454 = vmatpush.bf16.msra.mxu0 %v2407
    %3455 = vmatpush.bf16.msra.mxu0 %v2399
    %3456 = vmatpush.bf16.msra.mxu0 %v2391
    %3457 = vmatpush.bf16.msra.mxu0 %v2383
    %3458 = vmatpush.bf16.msra.mxu0 %v2375
    %3459 = vmatpush.bf16.msra.mxu0 %v2367
    %3460 = vmatmul.bf16.gmra.mxu0 %v751
    %v3461 = vpop.f32.mrf.mxu0
    %v3462 = vadd.f32 %v3448, %v3461
    %v3463 = vpop.f32.mrf.mxu0
    %v3464 = vadd.f32 %v3450, %v3463
    %3465 = vdwg.mxu0
    %3466 = vmatpush.bf16.msra.mxu0 %v2487
    %3467 = vmatpush.bf16.msra.mxu0 %v2479
    %3468 = vmatpush.bf16.msra.mxu0 %v2471
    %3469 = vmatpush.bf16.msra.mxu0 %v2463
    %3470 = vmatpush.bf16.msra.mxu0 %v2455
    %3471 = vmatpush.bf16.msra.mxu0 %v2447
    %3472 = vmatpush.bf16.msra.mxu0 %v2439
    %3473 = vmatpush.bf16.msra.mxu0 %v2431
    %3474 = vmatmul.bf16.gmra.mxu0 %v752
    %v3475 = vpop.f32.mrf.mxu0
    %v3476 = vadd.f32 %v3462, %v3475
    %v3477 = vpop.f32.mrf.mxu0
    %v3478 = vadd.f32 %v3464, %v3477
    %3479 = vdwg.mxu0
    %3480 = vmatpush.bf16.msra.mxu0 %v2551
    %3481 = vmatpush.bf16.msra.mxu0 %v2543
    %3482 = vmatpush.bf16.msra.mxu0 %v2535
    %3483 = vmatpush.bf16.msra.mxu0 %v2527
    %3484 = vmatpush.bf16.msra.mxu0 %v2519
    %3485 = vmatpush.bf16.msra.mxu0 %v2511
    %3486 = vmatpush.bf16.msra.mxu0 %v2503
    %3487 = vmatpush.bf16.msra.mxu0 %v2495
    %3488 = vmatmul.bf16.gmra.mxu0 %v753
    %v3489 = vpop.f32.mrf.mxu0
    %v3490 = vadd.f32 %v3476, %v3489
    %v3491 = vpop.f32.mrf.mxu0
    %v3492 = vadd.f32 %v3478, %v3491
    %3493 = vdwg.mxu0
    %3494 = vmatpush.bf16.msra.mxu0 %v2615
    %3495 = vmatpush.bf16.msra.mxu0 %v2607
    %3496 = vmatpush.bf16.msra.mxu0 %v2599
    %3497 = vmatpush.bf16.msra.mxu0 %v2591
    %3498 = vmatpush.bf16.msra.mxu0 %v2583
    %3499 = vmatpush.bf16.msra.mxu0 %v2575
    %3500 = vmatpush.bf16.msra.mxu0 %v2567
    %3501 = vmatpush.bf16.msra.mxu0 %v2559
    %3502 = vmatmul.bf16.gmra.mxu0 %v754
    %v3503 = vpop.f32.mrf.mxu0
    %v3504 = vadd.f32 %v3490, %v3503
    %v3505 = vpop.f32.mrf.mxu0
    %v3506 = vadd.f32 %v3492, %v3505
    %3507 = vdwg.mxu0
    %3508 = vmatpush.bf16.msra.mxu0 %v2679
    %3509 = vmatpush.bf16.msra.mxu0 %v2671
    %3510 = vmatpush.bf16.msra.mxu0 %v2663
    %3511 = vmatpush.bf16.msra.mxu0 %v2655
    %3512 = vmatpush.bf16.msra.mxu0 %v2647
    %3513 = vmatpush.bf16.msra.mxu0 %v2639
    %3514 = vmatpush.bf16.msra.mxu0 %v2631
    %3515 = vmatpush.bf16.msra.mxu0 %v2623
    %3516 = vmatmul.bf16.gmra.mxu0 %v755
    %v3517 = vpop.f32.mrf.mxu0
    %v3518 = vadd.f32 %v3504, %v3517
    %v3519 = vpop.f32.mrf.mxu0
    %v3520 = vadd.f32 %v3506, %v3519
    %3521 = vdwg.mxu0
    %3522 = vmatpush.bf16.msra.mxu0 %v2743
    %3523 = vmatpush.bf16.msra.mxu0 %v2735
    %3524 = vmatpush.bf16.msra.mxu0 %v2727
    %3525 = vmatpush.bf16.msra.mxu0 %v2719
    %3526 = vmatpush.bf16.msra.mxu0 %v2711
    %3527 = vmatpush.bf16.msra.mxu0 %v2703
    %3528 = vmatpush.bf16.msra.mxu0 %v2695
    %3529 = vmatpush.bf16.msra.mxu0 %v2687
    %3530 = vmatmul.bf16.gmra.mxu0 %v756
    %v3531 = vpop.f32.mrf.mxu0
    %v3532 = vadd.f32 %v3518, %v3531
    %v3533 = vpop.f32.mrf.mxu0
    %v3534 = vadd.f32 %v3520, %v3533
    %3535 = vdwg.mxu0
    %3536 = vmatpush.bf16.msra.mxu0 %v2807
    %3537 = vmatpush.bf16.msra.mxu0 %v2799
    %3538 = vmatpush.bf16.msra.mxu0 %v2791
    %3539 = vmatpush.bf16.msra.mxu0 %v2783
    %3540 = vmatpush.bf16.msra.mxu0 %v2775
    %3541 = vmatpush.bf16.msra.mxu0 %v2767
    %3542 = vmatpush.bf16.msra.mxu0 %v2759
    %3543 = vmatpush.bf16.msra.mxu0 %v2751
    %3544 = vmatmul.bf16.gmra.mxu0 %v757
    %v3545 = vpop.f32.mrf.mxu0
    %v3546 = vadd.f32 %v3532, %v3545
    %v3547 = vpop.f32.mrf.mxu0
    %v3548 = vadd.f32 %v3534, %v3547
    %3549 = vdwg.mxu0
    %3550 = vmatpush.bf16.msra.mxu0 %v2360
    %3551 = vmatpush.bf16.msra.mxu0 %v2352
    %3552 = vmatpush.bf16.msra.mxu0 %v2344
    %3553 = vmatpush.bf16.msra.mxu0 %v2336
    %3554 = vmatpush.bf16.msra.mxu0 %v2328
    %3555 = vmatpush.bf16.msra.mxu0 %v2320
    %3556 = vmatpush.bf16.msra.mxu0 %v2312
    %3557 = vmatpush.bf16.msra.mxu0 %v2304
    %3558 = vmatmul.bf16.gmra.mxu0 %v750
    %v3559 = vpop.f32.mrf.mxu0
    %v3560 = vadd.f32 0.0, %v3559
    %v3561 = vpop.f32.mrf.mxu0
    %v3562 = vadd.f32 0.0, %v3561
    %3563 = vdwg.mxu0
    %3564 = vmatpush.bf16.msra.mxu0 %v2424
    %3565 = vmatpush.bf16.msra.mxu0 %v2416
    %3566 = vmatpush.bf16.msra.mxu0 %v2408
    %3567 = vmatpush.bf16.msra.mxu0 %v2400
    %3568 = vmatpush.bf16.msra.mxu0 %v2392
    %3569 = vmatpush.bf16.msra.mxu0 %v2384
    %3570 = vmatpush.bf16.msra.mxu0 %v2376
    %3571 = vmatpush.bf16.msra.mxu0 %v2368
    %3572 = vmatmul.bf16.gmra.mxu0 %v751
    %v3573 = vpop.f32.mrf.mxu0
    %v3574 = vadd.f32 %v3560, %v3573
    %v3575 = vpop.f32.mrf.mxu0
    %v3576 = vadd.f32 %v3562, %v3575
    %3577 = vdwg.mxu0
    %3578 = vmatpush.bf16.msra.mxu0 %v2488
    %3579 = vmatpush.bf16.msra.mxu0 %v2480
    %3580 = vmatpush.bf16.msra.mxu0 %v2472
    %3581 = vmatpush.bf16.msra.mxu0 %v2464
    %3582 = vmatpush.bf16.msra.mxu0 %v2456
    %3583 = vmatpush.bf16.msra.mxu0 %v2448
    %3584 = vmatpush.bf16.msra.mxu0 %v2440
    %3585 = vmatpush.bf16.msra.mxu0 %v2432
    %3586 = vmatmul.bf16.gmra.mxu0 %v752
    %v3587 = vpop.f32.mrf.mxu0
    %v3588 = vadd.f32 %v3574, %v3587
    %v3589 = vpop.f32.mrf.mxu0
    %v3590 = vadd.f32 %v3576, %v3589
    %3591 = vdwg.mxu0
    %3592 = vmatpush.bf16.msra.mxu0 %v2552
    %3593 = vmatpush.bf16.msra.mxu0 %v2544
    %3594 = vmatpush.bf16.msra.mxu0 %v2536
    %3595 = vmatpush.bf16.msra.mxu0 %v2528
    %3596 = vmatpush.bf16.msra.mxu0 %v2520
    %3597 = vmatpush.bf16.msra.mxu0 %v2512
    %3598 = vmatpush.bf16.msra.mxu0 %v2504
    %3599 = vmatpush.bf16.msra.mxu0 %v2496
    %3600 = vmatmul.bf16.gmra.mxu0 %v753
    %v3601 = vpop.f32.mrf.mxu0
    %v3602 = vadd.f32 %v3588, %v3601
    %v3603 = vpop.f32.mrf.mxu0
    %v3604 = vadd.f32 %v3590, %v3603
    %3605 = vdwg.mxu0
    %3606 = vmatpush.bf16.msra.mxu0 %v2616
    %3607 = vmatpush.bf16.msra.mxu0 %v2608
    %3608 = vmatpush.bf16.msra.mxu0 %v2600
    %3609 = vmatpush.bf16.msra.mxu0 %v2592
    %3610 = vmatpush.bf16.msra.mxu0 %v2584
    %3611 = vmatpush.bf16.msra.mxu0 %v2576
    %3612 = vmatpush.bf16.msra.mxu0 %v2568
    %3613 = vmatpush.bf16.msra.mxu0 %v2560
    %3614 = vmatmul.bf16.gmra.mxu0 %v754
    %v3615 = vpop.f32.mrf.mxu0
    %v3616 = vadd.f32 %v3602, %v3615
    %v3617 = vpop.f32.mrf.mxu0
    %v3618 = vadd.f32 %v3604, %v3617
    %3619 = vdwg.mxu0
    %3620 = vmatpush.bf16.msra.mxu0 %v2680
    %3621 = vmatpush.bf16.msra.mxu0 %v2672
    %3622 = vmatpush.bf16.msra.mxu0 %v2664
    %3623 = vmatpush.bf16.msra.mxu0 %v2656
    %3624 = vmatpush.bf16.msra.mxu0 %v2648
    %3625 = vmatpush.bf16.msra.mxu0 %v2640
    %3626 = vmatpush.bf16.msra.mxu0 %v2632
    %3627 = vmatpush.bf16.msra.mxu0 %v2624
    %3628 = vmatmul.bf16.gmra.mxu0 %v755
    %v3629 = vpop.f32.mrf.mxu0
    %v3630 = vadd.f32 %v3616, %v3629
    %v3631 = vpop.f32.mrf.mxu0
    %v3632 = vadd.f32 %v3618, %v3631
    %3633 = vdwg.mxu0
    %3634 = vmatpush.bf16.msra.mxu0 %v2744
    %3635 = vmatpush.bf16.msra.mxu0 %v2736
    %3636 = vmatpush.bf16.msra.mxu0 %v2728
    %3637 = vmatpush.bf16.msra.mxu0 %v2720
    %3638 = vmatpush.bf16.msra.mxu0 %v2712
    %3639 = vmatpush.bf16.msra.mxu0 %v2704
    %3640 = vmatpush.bf16.msra.mxu0 %v2696
    %3641 = vmatpush.bf16.msra.mxu0 %v2688
    %3642 = vmatmul.bf16.gmra.mxu0 %v756
    %v3643 = vpop.f32.mrf.mxu0
    %v3644 = vadd.f32 %v3630, %v3643
    %v3645 = vpop.f32.mrf.mxu0
    %v3646 = vadd.f32 %v3632, %v3645
    %3647 = vdwg.mxu0
    %3648 = vmatpush.bf16.msra.mxu0 %v2808
    %3649 = vmatpush.bf16.msra.mxu0 %v2800
    %3650 = vmatpush.bf16.msra.mxu0 %v2792
    %3651 = vmatpush.bf16.msra.mxu0 %v2784
    %3652 = vmatpush.bf16.msra.mxu0 %v2776
    %3653 = vmatpush.bf16.msra.mxu0 %v2768
    %3654 = vmatpush.bf16.msra.mxu0 %v2760
    %3655 = vmatpush.bf16.msra.mxu0 %v2752
    %3656 = vmatmul.bf16.gmra.mxu0 %v757
    %v3657 = vpop.f32.mrf.mxu0
    %v3658 = vadd.f32 %v3644, %v3657
    %v3659 = vpop.f32.mrf.mxu0
    %v3660 = vadd.f32 %v3646, %v3659
    %3661 = vdwg.mxu0
    %3662 = vmatpush.bf16.msra.mxu0 %v2361
    %3663 = vmatpush.bf16.msra.mxu0 %v2353
    %3664 = vmatpush.bf16.msra.mxu0 %v2345
    %3665 = vmatpush.bf16.msra.mxu0 %v2337
    %3666 = vmatpush.bf16.msra.mxu0 %v2329
    %3667 = vmatpush.bf16.msra.mxu0 %v2321
    %3668 = vmatpush.bf16.msra.mxu0 %v2313
    %3669 = vmatpush.bf16.msra.mxu0 %v2305
    %3670 = vmatmul.bf16.gmra.mxu0 %v750
    %v3671 = vpop.f32.mrf.mxu0
    %v3672 = vadd.f32 0.0, %v3671
    %v3673 = vpop.f32.mrf.mxu0
    %v3674 = vadd.f32 0.0, %v3673
    %3675 = vdwg.mxu0
    %3676 = vmatpush.bf16.msra.mxu0 %v2425
    %3677 = vmatpush.bf16.msra.mxu0 %v2417
    %3678 = vmatpush.bf16.msra.mxu0 %v2409
    %3679 = vmatpush.bf16.msra.mxu0 %v2401
    %3680 = vmatpush.bf16.msra.mxu0 %v2393
    %3681 = vmatpush.bf16.msra.mxu0 %v2385
    %3682 = vmatpush.bf16.msra.mxu0 %v2377
    %3683 = vmatpush.bf16.msra.mxu0 %v2369
    %3684 = vmatmul.bf16.gmra.mxu0 %v751
    %v3685 = vpop.f32.mrf.mxu0
    %v3686 = vadd.f32 %v3672, %v3685
    %v3687 = vpop.f32.mrf.mxu0
    %v3688 = vadd.f32 %v3674, %v3687
    %3689 = vdwg.mxu0
    %3690 = vmatpush.bf16.msra.mxu0 %v2489
    %3691 = vmatpush.bf16.msra.mxu0 %v2481
    %3692 = vmatpush.bf16.msra.mxu0 %v2473
    %3693 = vmatpush.bf16.msra.mxu0 %v2465
    %3694 = vmatpush.bf16.msra.mxu0 %v2457
    %3695 = vmatpush.bf16.msra.mxu0 %v2449
    %3696 = vmatpush.bf16.msra.mxu0 %v2441
    %3697 = vmatpush.bf16.msra.mxu0 %v2433
    %3698 = vmatmul.bf16.gmra.mxu0 %v752
    %v3699 = vpop.f32.mrf.mxu0
    %v3700 = vadd.f32 %v3686, %v3699
    %v3701 = vpop.f32.mrf.mxu0
    %v3702 = vadd.f32 %v3688, %v3701
    %3703 = vdwg.mxu0
    %3704 = vmatpush.bf16.msra.mxu0 %v2553
    %3705 = vmatpush.bf16.msra.mxu0 %v2545
    %3706 = vmatpush.bf16.msra.mxu0 %v2537
    %3707 = vmatpush.bf16.msra.mxu0 %v2529
    %3708 = vmatpush.bf16.msra.mxu0 %v2521
    %3709 = vmatpush.bf16.msra.mxu0 %v2513
    %3710 = vmatpush.bf16.msra.mxu0 %v2505
    %3711 = vmatpush.bf16.msra.mxu0 %v2497
    %3712 = vmatmul.bf16.gmra.mxu0 %v753
    %v3713 = vpop.f32.mrf.mxu0
    %v3714 = vadd.f32 %v3700, %v3713
    %v3715 = vpop.f32.mrf.mxu0
    %v3716 = vadd.f32 %v3702, %v3715
    %3717 = vdwg.mxu0
    %3718 = vmatpush.bf16.msra.mxu0 %v2617
    %3719 = vmatpush.bf16.msra.mxu0 %v2609
    %3720 = vmatpush.bf16.msra.mxu0 %v2601
    %3721 = vmatpush.bf16.msra.mxu0 %v2593
    %3722 = vmatpush.bf16.msra.mxu0 %v2585
    %3723 = vmatpush.bf16.msra.mxu0 %v2577
    %3724 = vmatpush.bf16.msra.mxu0 %v2569
    %3725 = vmatpush.bf16.msra.mxu0 %v2561
    %3726 = vmatmul.bf16.gmra.mxu0 %v754
    %v3727 = vpop.f32.mrf.mxu0
    %v3728 = vadd.f32 %v3714, %v3727
    %v3729 = vpop.f32.mrf.mxu0
    %v3730 = vadd.f32 %v3716, %v3729
    %3731 = vdwg.mxu0
    %3732 = vmatpush.bf16.msra.mxu0 %v2681
    %3733 = vmatpush.bf16.msra.mxu0 %v2673
    %3734 = vmatpush.bf16.msra.mxu0 %v2665
    %3735 = vmatpush.bf16.msra.mxu0 %v2657
    %3736 = vmatpush.bf16.msra.mxu0 %v2649
    %3737 = vmatpush.bf16.msra.mxu0 %v2641
    %3738 = vmatpush.bf16.msra.mxu0 %v2633
    %3739 = vmatpush.bf16.msra.mxu0 %v2625
    %3740 = vmatmul.bf16.gmra.mxu0 %v755
    %v3741 = vpop.f32.mrf.mxu0
    %v3742 = vadd.f32 %v3728, %v3741
    %v3743 = vpop.f32.mrf.mxu0
    %v3744 = vadd.f32 %v3730, %v3743
    %3745 = vdwg.mxu0
    %3746 = vmatpush.bf16.msra.mxu0 %v2745
    %3747 = vmatpush.bf16.msra.mxu0 %v2737
    %3748 = vmatpush.bf16.msra.mxu0 %v2729
    %3749 = vmatpush.bf16.msra.mxu0 %v2721
    %3750 = vmatpush.bf16.msra.mxu0 %v2713
    %3751 = vmatpush.bf16.msra.mxu0 %v2705
    %3752 = vmatpush.bf16.msra.mxu0 %v2697
    %3753 = vmatpush.bf16.msra.mxu0 %v2689
    %3754 = vmatmul.bf16.gmra.mxu0 %v756
    %v3755 = vpop.f32.mrf.mxu0
    %v3756 = vadd.f32 %v3742, %v3755
    %v3757 = vpop.f32.mrf.mxu0
    %v3758 = vadd.f32 %v3744, %v3757
    %3759 = vdwg.mxu0
    %3760 = vmatpush.bf16.msra.mxu0 %v2809
    %3761 = vmatpush.bf16.msra.mxu0 %v2801
    %3762 = vmatpush.bf16.msra.mxu0 %v2793
    %3763 = vmatpush.bf16.msra.mxu0 %v2785
    %3764 = vmatpush.bf16.msra.mxu0 %v2777
    %3765 = vmatpush.bf16.msra.mxu0 %v2769
    %3766 = vmatpush.bf16.msra.mxu0 %v2761
    %3767 = vmatpush.bf16.msra.mxu0 %v2753
    %3768 = vmatmul.bf16.gmra.mxu0 %v757
    %v3769 = vpop.f32.mrf.mxu0
    %v3770 = vadd.f32 %v3756, %v3769
    %v3771 = vpop.f32.mrf.mxu0
    %v3772 = vadd.f32 %v3758, %v3771
    %3773 = vdwg.mxu0
    %3774 = vmatpush.bf16.msra.mxu0 %v2362
    %3775 = vmatpush.bf16.msra.mxu0 %v2354
    %3776 = vmatpush.bf16.msra.mxu0 %v2346
    %3777 = vmatpush.bf16.msra.mxu0 %v2338
    %3778 = vmatpush.bf16.msra.mxu0 %v2330
    %3779 = vmatpush.bf16.msra.mxu0 %v2322
    %3780 = vmatpush.bf16.msra.mxu0 %v2314
    %3781 = vmatpush.bf16.msra.mxu0 %v2306
    %3782 = vmatmul.bf16.gmra.mxu0 %v750
    %v3783 = vpop.f32.mrf.mxu0
    %v3784 = vadd.f32 0.0, %v3783
    %v3785 = vpop.f32.mrf.mxu0
    %v3786 = vadd.f32 0.0, %v3785
    %3787 = vdwg.mxu0
    %3788 = vmatpush.bf16.msra.mxu0 %v2426
    %3789 = vmatpush.bf16.msra.mxu0 %v2418
    %3790 = vmatpush.bf16.msra.mxu0 %v2410
    %3791 = vmatpush.bf16.msra.mxu0 %v2402
    %3792 = vmatpush.bf16.msra.mxu0 %v2394
    %3793 = vmatpush.bf16.msra.mxu0 %v2386
    %3794 = vmatpush.bf16.msra.mxu0 %v2378
    %3795 = vmatpush.bf16.msra.mxu0 %v2370
    %3796 = vmatmul.bf16.gmra.mxu0 %v751
    %v3797 = vpop.f32.mrf.mxu0
    %v3798 = vadd.f32 %v3784, %v3797
    %v3799 = vpop.f32.mrf.mxu0
    %v3800 = vadd.f32 %v3786, %v3799
    %3801 = vdwg.mxu0
    %3802 = vmatpush.bf16.msra.mxu0 %v2490
    %3803 = vmatpush.bf16.msra.mxu0 %v2482
    %3804 = vmatpush.bf16.msra.mxu0 %v2474
    %3805 = vmatpush.bf16.msra.mxu0 %v2466
    %3806 = vmatpush.bf16.msra.mxu0 %v2458
    %3807 = vmatpush.bf16.msra.mxu0 %v2450
    %3808 = vmatpush.bf16.msra.mxu0 %v2442
    %3809 = vmatpush.bf16.msra.mxu0 %v2434
    %3810 = vmatmul.bf16.gmra.mxu0 %v752
    %v3811 = vpop.f32.mrf.mxu0
    %v3812 = vadd.f32 %v3798, %v3811
    %v3813 = vpop.f32.mrf.mxu0
    %v3814 = vadd.f32 %v3800, %v3813
    %3815 = vdwg.mxu0
    %3816 = vmatpush.bf16.msra.mxu0 %v2554
    %3817 = vmatpush.bf16.msra.mxu0 %v2546
    %3818 = vmatpush.bf16.msra.mxu0 %v2538
    %3819 = vmatpush.bf16.msra.mxu0 %v2530
    %3820 = vmatpush.bf16.msra.mxu0 %v2522
    %3821 = vmatpush.bf16.msra.mxu0 %v2514
    %3822 = vmatpush.bf16.msra.mxu0 %v2506
    %3823 = vmatpush.bf16.msra.mxu0 %v2498
    %3824 = vmatmul.bf16.gmra.mxu0 %v753
    %v3825 = vpop.f32.mrf.mxu0
    %v3826 = vadd.f32 %v3812, %v3825
    %v3827 = vpop.f32.mrf.mxu0
    %v3828 = vadd.f32 %v3814, %v3827
    %3829 = vdwg.mxu0
    %3830 = vmatpush.bf16.msra.mxu0 %v2618
    %3831 = vmatpush.bf16.msra.mxu0 %v2610
    %3832 = vmatpush.bf16.msra.mxu0 %v2602
    %3833 = vmatpush.bf16.msra.mxu0 %v2594
    %3834 = vmatpush.bf16.msra.mxu0 %v2586
    %3835 = vmatpush.bf16.msra.mxu0 %v2578
    %3836 = vmatpush.bf16.msra.mxu0 %v2570
    %3837 = vmatpush.bf16.msra.mxu0 %v2562
    %3838 = vmatmul.bf16.gmra.mxu0 %v754
    %v3839 = vpop.f32.mrf.mxu0
    %v3840 = vadd.f32 %v3826, %v3839
    %v3841 = vpop.f32.mrf.mxu0
    %v3842 = vadd.f32 %v3828, %v3841
    %3843 = vdwg.mxu0
    %3844 = vmatpush.bf16.msra.mxu0 %v2682
    %3845 = vmatpush.bf16.msra.mxu0 %v2674
    %3846 = vmatpush.bf16.msra.mxu0 %v2666
    %3847 = vmatpush.bf16.msra.mxu0 %v2658
    %3848 = vmatpush.bf16.msra.mxu0 %v2650
    %3849 = vmatpush.bf16.msra.mxu0 %v2642
    %3850 = vmatpush.bf16.msra.mxu0 %v2634
    %3851 = vmatpush.bf16.msra.mxu0 %v2626
    %3852 = vmatmul.bf16.gmra.mxu0 %v755
    %v3853 = vpop.f32.mrf.mxu0
    %v3854 = vadd.f32 %v3840, %v3853
    %v3855 = vpop.f32.mrf.mxu0
    %v3856 = vadd.f32 %v3842, %v3855
    %3857 = vdwg.mxu0
    %3858 = vmatpush.bf16.msra.mxu0 %v2746
    %3859 = vmatpush.bf16.msra.mxu0 %v2738
    %3860 = vmatpush.bf16.msra.mxu0 %v2730
    %3861 = vmatpush.bf16.msra.mxu0 %v2722
    %3862 = vmatpush.bf16.msra.mxu0 %v2714
    %3863 = vmatpush.bf16.msra.mxu0 %v2706
    %3864 = vmatpush.bf16.msra.mxu0 %v2698
    %3865 = vmatpush.bf16.msra.mxu0 %v2690
    %3866 = vmatmul.bf16.gmra.mxu0 %v756
    %v3867 = vpop.f32.mrf.mxu0
    %v3868 = vadd.f32 %v3854, %v3867
    %v3869 = vpop.f32.mrf.mxu0
    %v3870 = vadd.f32 %v3856, %v3869
    %3871 = vdwg.mxu0
    %3872 = vmatpush.bf16.msra.mxu0 %v2810
    %3873 = vmatpush.bf16.msra.mxu0 %v2802
    %3874 = vmatpush.bf16.msra.mxu0 %v2794
    %3875 = vmatpush.bf16.msra.mxu0 %v2786
    %3876 = vmatpush.bf16.msra.mxu0 %v2778
    %3877 = vmatpush.bf16.msra.mxu0 %v2770
    %3878 = vmatpush.bf16.msra.mxu0 %v2762
    %3879 = vmatpush.bf16.msra.mxu0 %v2754
    %3880 = vmatmul.bf16.gmra.mxu0 %v757
    %v3881 = vpop.f32.mrf.mxu0
    %v3882 = vadd.f32 %v3868, %v3881
    %v3883 = vpop.f32.mrf.mxu0
    %v3884 = vadd.f32 %v3870, %v3883
    %3885 = vdwg.mxu0
    %3886 = vmatpush.bf16.msra.mxu0 %v2363
    %3887 = vmatpush.bf16.msra.mxu0 %v2355
    %3888 = vmatpush.bf16.msra.mxu0 %v2347
    %3889 = vmatpush.bf16.msra.mxu0 %v2339
    %3890 = vmatpush.bf16.msra.mxu0 %v2331
    %3891 = vmatpush.bf16.msra.mxu0 %v2323
    %3892 = vmatpush.bf16.msra.mxu0 %v2315
    %3893 = vmatpush.bf16.msra.mxu0 %v2307
    %3894 = vmatmul.bf16.gmra.mxu0 %v750
    %v3895 = vpop.f32.mrf.mxu0
    %v3896 = vadd.f32 0.0, %v3895
    %v3897 = vpop.f32.mrf.mxu0
    %v3898 = vadd.f32 0.0, %v3897
    %3899 = vdwg.mxu0
    %3900 = vmatpush.bf16.msra.mxu0 %v2427
    %3901 = vmatpush.bf16.msra.mxu0 %v2419
    %3902 = vmatpush.bf16.msra.mxu0 %v2411
    %3903 = vmatpush.bf16.msra.mxu0 %v2403
    %3904 = vmatpush.bf16.msra.mxu0 %v2395
    %3905 = vmatpush.bf16.msra.mxu0 %v2387
    %3906 = vmatpush.bf16.msra.mxu0 %v2379
    %3907 = vmatpush.bf16.msra.mxu0 %v2371
    %3908 = vmatmul.bf16.gmra.mxu0 %v751
    %v3909 = vpop.f32.mrf.mxu0
    %v3910 = vadd.f32 %v3896, %v3909
    %v3911 = vpop.f32.mrf.mxu0
    %v3912 = vadd.f32 %v3898, %v3911
    %3913 = vdwg.mxu0
    %3914 = vmatpush.bf16.msra.mxu0 %v2491
    %3915 = vmatpush.bf16.msra.mxu0 %v2483
    %3916 = vmatpush.bf16.msra.mxu0 %v2475
    %3917 = vmatpush.bf16.msra.mxu0 %v2467
    %3918 = vmatpush.bf16.msra.mxu0 %v2459
    %3919 = vmatpush.bf16.msra.mxu0 %v2451
    %3920 = vmatpush.bf16.msra.mxu0 %v2443
    %3921 = vmatpush.bf16.msra.mxu0 %v2435
    %3922 = vmatmul.bf16.gmra.mxu0 %v752
    %v3923 = vpop.f32.mrf.mxu0
    %v3924 = vadd.f32 %v3910, %v3923
    %v3925 = vpop.f32.mrf.mxu0
    %v3926 = vadd.f32 %v3912, %v3925
    %3927 = vdwg.mxu0
    %3928 = vmatpush.bf16.msra.mxu0 %v2555
    %3929 = vmatpush.bf16.msra.mxu0 %v2547
    %3930 = vmatpush.bf16.msra.mxu0 %v2539
    %3931 = vmatpush.bf16.msra.mxu0 %v2531
    %3932 = vmatpush.bf16.msra.mxu0 %v2523
    %3933 = vmatpush.bf16.msra.mxu0 %v2515
    %3934 = vmatpush.bf16.msra.mxu0 %v2507
    %3935 = vmatpush.bf16.msra.mxu0 %v2499
    %3936 = vmatmul.bf16.gmra.mxu0 %v753
    %v3937 = vpop.f32.mrf.mxu0
    %v3938 = vadd.f32 %v3924, %v3937
    %v3939 = vpop.f32.mrf.mxu0
    %v3940 = vadd.f32 %v3926, %v3939
    %3941 = vdwg.mxu0
    %3942 = vmatpush.bf16.msra.mxu0 %v2619
    %3943 = vmatpush.bf16.msra.mxu0 %v2611
    %3944 = vmatpush.bf16.msra.mxu0 %v2603
    %3945 = vmatpush.bf16.msra.mxu0 %v2595
    %3946 = vmatpush.bf16.msra.mxu0 %v2587
    %3947 = vmatpush.bf16.msra.mxu0 %v2579
    %3948 = vmatpush.bf16.msra.mxu0 %v2571
    %3949 = vmatpush.bf16.msra.mxu0 %v2563
    %3950 = vmatmul.bf16.gmra.mxu0 %v754
    %v3951 = vpop.f32.mrf.mxu0
    %v3952 = vadd.f32 %v3938, %v3951
    %v3953 = vpop.f32.mrf.mxu0
    %v3954 = vadd.f32 %v3940, %v3953
    %3955 = vdwg.mxu0
    %3956 = vmatpush.bf16.msra.mxu0 %v2683
    %3957 = vmatpush.bf16.msra.mxu0 %v2675
    %3958 = vmatpush.bf16.msra.mxu0 %v2667
    %3959 = vmatpush.bf16.msra.mxu0 %v2659
    %3960 = vmatpush.bf16.msra.mxu0 %v2651
    %3961 = vmatpush.bf16.msra.mxu0 %v2643
    %3962 = vmatpush.bf16.msra.mxu0 %v2635
    %3963 = vmatpush.bf16.msra.mxu0 %v2627
    %3964 = vmatmul.bf16.gmra.mxu0 %v755
    %v3965 = vpop.f32.mrf.mxu0
    %v3966 = vadd.f32 %v3952, %v3965
    %v3967 = vpop.f32.mrf.mxu0
    %v3968 = vadd.f32 %v3954, %v3967
    %3969 = vdwg.mxu0
    %3970 = vmatpush.bf16.msra.mxu0 %v2747
    %3971 = vmatpush.bf16.msra.mxu0 %v2739
    %3972 = vmatpush.bf16.msra.mxu0 %v2731
    %3973 = vmatpush.bf16.msra.mxu0 %v2723
    %3974 = vmatpush.bf16.msra.mxu0 %v2715
    %3975 = vmatpush.bf16.msra.mxu0 %v2707
    %3976 = vmatpush.bf16.msra.mxu0 %v2699
    %3977 = vmatpush.bf16.msra.mxu0 %v2691
    %3978 = vmatmul.bf16.gmra.mxu0 %v756
    %v3979 = vpop.f32.mrf.mxu0
    %v3980 = vadd.f32 %v3966, %v3979
    %v3981 = vpop.f32.mrf.mxu0
    %v3982 = vadd.f32 %v3968, %v3981
    %3983 = vdwg.mxu0
    %3984 = vmatpush.bf16.msra.mxu0 %v2811
    %3985 = vmatpush.bf16.msra.mxu0 %v2803
    %3986 = vmatpush.bf16.msra.mxu0 %v2795
    %3987 = vmatpush.bf16.msra.mxu0 %v2787
    %3988 = vmatpush.bf16.msra.mxu0 %v2779
    %3989 = vmatpush.bf16.msra.mxu0 %v2771
    %3990 = vmatpush.bf16.msra.mxu0 %v2763
    %3991 = vmatpush.bf16.msra.mxu0 %v2755
    %3992 = vmatmul.bf16.gmra.mxu0 %v757
    %v3993 = vpop.f32.mrf.mxu0
    %v3994 = vadd.f32 %v3980, %v3993
    %v3995 = vpop.f32.mrf.mxu0
    %v3996 = vadd.f32 %v3982, %v3995
    %3997 = vdwg.mxu0
    %3998 = vmatpush.bf16.msra.mxu0 %v2364
    %3999 = vmatpush.bf16.msra.mxu0 %v2356
    %4000 = vmatpush.bf16.msra.mxu0 %v2348
    %4001 = vmatpush.bf16.msra.mxu0 %v2340
    %4002 = vmatpush.bf16.msra.mxu0 %v2332
    %4003 = vmatpush.bf16.msra.mxu0 %v2324
    %4004 = vmatpush.bf16.msra.mxu0 %v2316
    %4005 = vmatpush.bf16.msra.mxu0 %v2308
    %4006 = vmatmul.bf16.gmra.mxu0 %v750
    %v4007 = vpop.f32.mrf.mxu0
    %v4008 = vadd.f32 0.0, %v4007
    %v4009 = vpop.f32.mrf.mxu0
    %v4010 = vadd.f32 0.0, %v4009
    %4011 = vdwg.mxu0
    %4012 = vmatpush.bf16.msra.mxu0 %v2428
    %4013 = vmatpush.bf16.msra.mxu0 %v2420
    %4014 = vmatpush.bf16.msra.mxu0 %v2412
    %4015 = vmatpush.bf16.msra.mxu0 %v2404
    %4016 = vmatpush.bf16.msra.mxu0 %v2396
    %4017 = vmatpush.bf16.msra.mxu0 %v2388
    %4018 = vmatpush.bf16.msra.mxu0 %v2380
    %4019 = vmatpush.bf16.msra.mxu0 %v2372
    %4020 = vmatmul.bf16.gmra.mxu0 %v751
    %v4021 = vpop.f32.mrf.mxu0
    %v4022 = vadd.f32 %v4008, %v4021
    %v4023 = vpop.f32.mrf.mxu0
    %v4024 = vadd.f32 %v4010, %v4023
    %4025 = vdwg.mxu0
    %4026 = vmatpush.bf16.msra.mxu0 %v2492
    %4027 = vmatpush.bf16.msra.mxu0 %v2484
    %4028 = vmatpush.bf16.msra.mxu0 %v2476
    %4029 = vmatpush.bf16.msra.mxu0 %v2468
    %4030 = vmatpush.bf16.msra.mxu0 %v2460
    %4031 = vmatpush.bf16.msra.mxu0 %v2452
    %4032 = vmatpush.bf16.msra.mxu0 %v2444
    %4033 = vmatpush.bf16.msra.mxu0 %v2436
    %4034 = vmatmul.bf16.gmra.mxu0 %v752
    %v4035 = vpop.f32.mrf.mxu0
    %v4036 = vadd.f32 %v4022, %v4035
    %v4037 = vpop.f32.mrf.mxu0
    %v4038 = vadd.f32 %v4024, %v4037
    %4039 = vdwg.mxu0
    %4040 = vmatpush.bf16.msra.mxu0 %v2556
    %4041 = vmatpush.bf16.msra.mxu0 %v2548
    %4042 = vmatpush.bf16.msra.mxu0 %v2540
    %4043 = vmatpush.bf16.msra.mxu0 %v2532
    %4044 = vmatpush.bf16.msra.mxu0 %v2524
    %4045 = vmatpush.bf16.msra.mxu0 %v2516
    %4046 = vmatpush.bf16.msra.mxu0 %v2508
    %4047 = vmatpush.bf16.msra.mxu0 %v2500
    %4048 = vmatmul.bf16.gmra.mxu0 %v753
    %v4049 = vpop.f32.mrf.mxu0
    %v4050 = vadd.f32 %v4036, %v4049
    %v4051 = vpop.f32.mrf.mxu0
    %v4052 = vadd.f32 %v4038, %v4051
    %4053 = vdwg.mxu0
    %4054 = vmatpush.bf16.msra.mxu0 %v2620
    %4055 = vmatpush.bf16.msra.mxu0 %v2612
    %4056 = vmatpush.bf16.msra.mxu0 %v2604
    %4057 = vmatpush.bf16.msra.mxu0 %v2596
    %4058 = vmatpush.bf16.msra.mxu0 %v2588
    %4059 = vmatpush.bf16.msra.mxu0 %v2580
    %4060 = vmatpush.bf16.msra.mxu0 %v2572
    %4061 = vmatpush.bf16.msra.mxu0 %v2564
    %4062 = vmatmul.bf16.gmra.mxu0 %v754
    %v4063 = vpop.f32.mrf.mxu0
    %v4064 = vadd.f32 %v4050, %v4063
    %v4065 = vpop.f32.mrf.mxu0
    %v4066 = vadd.f32 %v4052, %v4065
    %4067 = vdwg.mxu0
    %4068 = vmatpush.bf16.msra.mxu0 %v2684
    %4069 = vmatpush.bf16.msra.mxu0 %v2676
    %4070 = vmatpush.bf16.msra.mxu0 %v2668
    %4071 = vmatpush.bf16.msra.mxu0 %v2660
    %4072 = vmatpush.bf16.msra.mxu0 %v2652
    %4073 = vmatpush.bf16.msra.mxu0 %v2644
    %4074 = vmatpush.bf16.msra.mxu0 %v2636
    %4075 = vmatpush.bf16.msra.mxu0 %v2628
    %4076 = vmatmul.bf16.gmra.mxu0 %v755
    %v4077 = vpop.f32.mrf.mxu0
    %v4078 = vadd.f32 %v4064, %v4077
    %v4079 = vpop.f32.mrf.mxu0
    %v4080 = vadd.f32 %v4066, %v4079
    %4081 = vdwg.mxu0
    %4082 = vmatpush.bf16.msra.mxu0 %v2748
    %4083 = vmatpush.bf16.msra.mxu0 %v2740
    %4084 = vmatpush.bf16.msra.mxu0 %v2732
    %4085 = vmatpush.bf16.msra.mxu0 %v2724
    %4086 = vmatpush.bf16.msra.mxu0 %v2716
    %4087 = vmatpush.bf16.msra.mxu0 %v2708
    %4088 = vmatpush.bf16.msra.mxu0 %v2700
    %4089 = vmatpush.bf16.msra.mxu0 %v2692
    %4090 = vmatmul.bf16.gmra.mxu0 %v756
    %v4091 = vpop.f32.mrf.mxu0
    %v4092 = vadd.f32 %v4078, %v4091
    %v4093 = vpop.f32.mrf.mxu0
    %v4094 = vadd.f32 %v4080, %v4093
    %4095 = vdwg.mxu0
    %4096 = vmatpush.bf16.msra.mxu0 %v2812
    %4097 = vmatpush.bf16.msra.mxu0 %v2804
    %4098 = vmatpush.bf16.msra.mxu0 %v2796
    %4099 = vmatpush.bf16.msra.mxu0 %v2788
    %4100 = vmatpush.bf16.msra.mxu0 %v2780
    %4101 = vmatpush.bf16.msra.mxu0 %v2772
    %4102 = vmatpush.bf16.msra.mxu0 %v2764
    %4103 = vmatpush.bf16.msra.mxu0 %v2756
    %4104 = vmatmul.bf16.gmra.mxu0 %v757
    %v4105 = vpop.f32.mrf.mxu0
    %v4106 = vadd.f32 %v4092, %v4105
    %v4107 = vpop.f32.mrf.mxu0
    %v4108 = vadd.f32 %v4094, %v4107
    %4109 = vdwg.mxu0
    %4110 = vmatpush.bf16.msra.mxu0 %v2365
    %4111 = vmatpush.bf16.msra.mxu0 %v2357
    %4112 = vmatpush.bf16.msra.mxu0 %v2349
    %4113 = vmatpush.bf16.msra.mxu0 %v2341
    %4114 = vmatpush.bf16.msra.mxu0 %v2333
    %4115 = vmatpush.bf16.msra.mxu0 %v2325
    %4116 = vmatpush.bf16.msra.mxu0 %v2317
    %4117 = vmatpush.bf16.msra.mxu0 %v2309
    %4118 = vmatmul.bf16.gmra.mxu0 %v750
    %v4119 = vpop.f32.mrf.mxu0
    %v4120 = vadd.f32 0.0, %v4119
    %v4121 = vpop.f32.mrf.mxu0
    %v4122 = vadd.f32 0.0, %v4121
    %4123 = vdwg.mxu0
    %4124 = vmatpush.bf16.msra.mxu0 %v2429
    %4125 = vmatpush.bf16.msra.mxu0 %v2421
    %4126 = vmatpush.bf16.msra.mxu0 %v2413
    %4127 = vmatpush.bf16.msra.mxu0 %v2405
    %4128 = vmatpush.bf16.msra.mxu0 %v2397
    %4129 = vmatpush.bf16.msra.mxu0 %v2389
    %4130 = vmatpush.bf16.msra.mxu0 %v2381
    %4131 = vmatpush.bf16.msra.mxu0 %v2373
    %4132 = vmatmul.bf16.gmra.mxu0 %v751
    %v4133 = vpop.f32.mrf.mxu0
    %v4134 = vadd.f32 %v4120, %v4133
    %v4135 = vpop.f32.mrf.mxu0
    %v4136 = vadd.f32 %v4122, %v4135
    %4137 = vdwg.mxu0
    %4138 = vmatpush.bf16.msra.mxu0 %v2493
    %4139 = vmatpush.bf16.msra.mxu0 %v2485
    %4140 = vmatpush.bf16.msra.mxu0 %v2477
    %4141 = vmatpush.bf16.msra.mxu0 %v2469
    %4142 = vmatpush.bf16.msra.mxu0 %v2461
    %4143 = vmatpush.bf16.msra.mxu0 %v2453
    %4144 = vmatpush.bf16.msra.mxu0 %v2445
    %4145 = vmatpush.bf16.msra.mxu0 %v2437
    %4146 = vmatmul.bf16.gmra.mxu0 %v752
    %v4147 = vpop.f32.mrf.mxu0
    %v4148 = vadd.f32 %v4134, %v4147
    %v4149 = vpop.f32.mrf.mxu0
    %v4150 = vadd.f32 %v4136, %v4149
    %4151 = vdwg.mxu0
    %4152 = vmatpush.bf16.msra.mxu0 %v2557
    %4153 = vmatpush.bf16.msra.mxu0 %v2549
    %4154 = vmatpush.bf16.msra.mxu0 %v2541
    %4155 = vmatpush.bf16.msra.mxu0 %v2533
    %4156 = vmatpush.bf16.msra.mxu0 %v2525
    %4157 = vmatpush.bf16.msra.mxu0 %v2517
    %4158 = vmatpush.bf16.msra.mxu0 %v2509
    %4159 = vmatpush.bf16.msra.mxu0 %v2501
    %4160 = vmatmul.bf16.gmra.mxu0 %v753
    %v4161 = vpop.f32.mrf.mxu0
    %v4162 = vadd.f32 %v4148, %v4161
    %v4163 = vpop.f32.mrf.mxu0
    %v4164 = vadd.f32 %v4150, %v4163
    %4165 = vdwg.mxu0
    %4166 = vmatpush.bf16.msra.mxu0 %v2621
    %4167 = vmatpush.bf16.msra.mxu0 %v2613
    %4168 = vmatpush.bf16.msra.mxu0 %v2605
    %4169 = vmatpush.bf16.msra.mxu0 %v2597
    %4170 = vmatpush.bf16.msra.mxu0 %v2589
    %4171 = vmatpush.bf16.msra.mxu0 %v2581
    %4172 = vmatpush.bf16.msra.mxu0 %v2573
    %4173 = vmatpush.bf16.msra.mxu0 %v2565
    %4174 = vmatmul.bf16.gmra.mxu0 %v754
    %v4175 = vpop.f32.mrf.mxu0
    %v4176 = vadd.f32 %v4162, %v4175
    %v4177 = vpop.f32.mrf.mxu0
    %v4178 = vadd.f32 %v4164, %v4177
    %4179 = vdwg.mxu0
    %4180 = vmatpush.bf16.msra.mxu0 %v2685
    %4181 = vmatpush.bf16.msra.mxu0 %v2677
    %4182 = vmatpush.bf16.msra.mxu0 %v2669
    %4183 = vmatpush.bf16.msra.mxu0 %v2661
    %4184 = vmatpush.bf16.msra.mxu0 %v2653
    %4185 = vmatpush.bf16.msra.mxu0 %v2645
    %4186 = vmatpush.bf16.msra.mxu0 %v2637
    %4187 = vmatpush.bf16.msra.mxu0 %v2629
    %4188 = vmatmul.bf16.gmra.mxu0 %v755
    %v4189 = vpop.f32.mrf.mxu0
    %v4190 = vadd.f32 %v4176, %v4189
    %v4191 = vpop.f32.mrf.mxu0
    %v4192 = vadd.f32 %v4178, %v4191
    %4193 = vdwg.mxu0
    %4194 = vmatpush.bf16.msra.mxu0 %v2749
    %4195 = vmatpush.bf16.msra.mxu0 %v2741
    %4196 = vmatpush.bf16.msra.mxu0 %v2733
    %4197 = vmatpush.bf16.msra.mxu0 %v2725
    %4198 = vmatpush.bf16.msra.mxu0 %v2717
    %4199 = vmatpush.bf16.msra.mxu0 %v2709
    %4200 = vmatpush.bf16.msra.mxu0 %v2701
    %4201 = vmatpush.bf16.msra.mxu0 %v2693
    %4202 = vmatmul.bf16.gmra.mxu0 %v756
    %v4203 = vpop.f32.mrf.mxu0
    %v4204 = vadd.f32 %v4190, %v4203
    %v4205 = vpop.f32.mrf.mxu0
    %v4206 = vadd.f32 %v4192, %v4205
    %4207 = vdwg.mxu0
    %4208 = vmatpush.bf16.msra.mxu0 %v2813
    %4209 = vmatpush.bf16.msra.mxu0 %v2805
    %4210 = vmatpush.bf16.msra.mxu0 %v2797
    %4211 = vmatpush.bf16.msra.mxu0 %v2789
    %4212 = vmatpush.bf16.msra.mxu0 %v2781
    %4213 = vmatpush.bf16.msra.mxu0 %v2773
    %4214 = vmatpush.bf16.msra.mxu0 %v2765
    %4215 = vmatpush.bf16.msra.mxu0 %v2757
    %4216 = vmatmul.bf16.gmra.mxu0 %v757
    %v4217 = vpop.f32.mrf.mxu0
    %v4218 = vadd.f32 %v4204, %v4217
    %v4219 = vpop.f32.mrf.mxu0
    %v4220 = vadd.f32 %v4206, %v4219
    %4221 = vdwg.mxu0
    %v4222 = vadd.f32 %v190, %v3434
    %v4223 = vadd.f32 %v191, %v3546
    %v4224 = vadd.f32 %v192, %v3658
    %v4225 = vadd.f32 %v193, %v3770
    %v4226 = vadd.f32 %v194, %v3882
    %v4227 = vadd.f32 %v195, %v3994
    %v4228 = vadd.f32 %v196, %v4106
    %v4229 = vadd.f32 %v197, %v4218
    %v4230 = vadd.f32 %v198, %v3436
    %v4231 = vadd.f32 %v199, %v3548
    %v4232 = vadd.f32 %v200, %v3660
    %v4233 = vadd.f32 %v201, %v3772
    %v4234 = vadd.f32 %v202, %v3884
    %v4235 = vadd.f32 %v203, %v3996
    %v4236 = vadd.f32 %v204, %v4108
    %v4237 = vadd.f32 %v205, %v4220
    %4238 = vst [vmem:[#allocation2] sm:$0xff] %v4222
    %4239 = vst [vmem:[#allocation2 + $0x8] sm:$0xff] %v4223
    %4240 = vst [vmem:[#allocation2 + $0x10] sm:$0xff] %v4224
    %4241 = vst [vmem:[#allocation2 + $0x18] sm:$0xff] %v4225
    %4242 = vst [vmem:[#allocation2 + $0x20] sm:$0xff] %v4226
    %4243 = vst [vmem:[#allocation2 + $0x28] sm:$0xff] %v4227
    %4244 = vst [vmem:[#allocation2 + $0x30] sm:$0xff] %v4228
    %4245 = vst [vmem:[#allocation2 + $0x38] sm:$0xff] %v4229
    %4246 = vst [vmem:[#allocation2 + $0x40] sm:$0xff] %v4230
    %4247 = vst [vmem:[#allocation2 + $0x48] sm:$0xff] %v4231
    %4248 = vst [vmem:[#allocation2 + $0x50] sm:$0xff] %v4232
    %4249 = vst [vmem:[#allocation2 + $0x58] sm:$0xff] %v4233
    %4250 = vst [vmem:[#allocation2 + $0x60] sm:$0xff] %v4234
    %4251 = vst [vmem:[#allocation2 + $0x68] sm:$0xff] %v4235
    %4252 = vst [vmem:[#allocation2 + $0x70] sm:$0xff] %v4236
    %4253 = vst [vmem:[#allocation2 + $0x78] sm:$0xff] %v4237
    // Predicated region
    $region86: #{discriminator_forward.1} parent=1 // pred_check
      %p4254 = pneg %p170
    $region87: #{discriminator_forward.1} parent=1 // pred_check_branch
      %4256 = sbr.rel (%p4254) target = $region89
    $region88: #{discriminator_forward.1} parent=1 // pred_region
      %v4257 = vld [vmem:[#allocation2] sm:$0xff]
      %v4258 = vld [vmem:[#allocation2 + $0x8] sm:$0xff]
      %v4259 = vld [vmem:[#allocation2 + $0x10] sm:$0xff]
      %v4260 = vld [vmem:[#allocation2 + $0x18] sm:$0xff]
      %v4261 = vld [vmem:[#allocation2 + $0x20] sm:$0xff]
      %v4262 = vld [vmem:[#allocation2 + $0x28] sm:$0xff]
      %v4263 = vld [vmem:[#allocation2 + $0x30] sm:$0xff]
      %v4264 = vld [vmem:[#allocation2 + $0x38] sm:$0xff]
      %v4265 = vld [vmem:[#allocation2 + $0x40] sm:$0xff]
      %v4266 = vld [vmem:[#allocation2 + $0x48] sm:$0xff]
      %v4267 = vld [vmem:[#allocation2 + $0x50] sm:$0xff]
      %v4268 = vld [vmem:[#allocation2 + $0x58] sm:$0xff]
      %v4269 = vld [vmem:[#allocation2 + $0x60] sm:$0xff]
      %v4270 = vld [vmem:[#allocation2 + $0x68] sm:$0xff]
      %v4271 = vld [vmem:[#allocation2 + $0x70] sm:$0xff]
      %v4272 = vld [vmem:[#allocation2 + $0x78] sm:$0xff]
      %v4273 = vld [vmem:[#allocation6] sm:$0xff]
      %v4275 = vperm.slane %v4273, 0
      %v4276 = vperm.slane %v4273, 1
      %v4277 = vperm.slane %v4273, 2
      %v4278 = vperm.slane %v4273, 3
      %v4279 = vperm.slane %v4273, 4
      %v4280 = vperm.slane %v4273, 5
      %v4281 = vperm.slane %v4273, 6
      %v4282 = vperm.slane %v4273, 7
      %v4291 = vadd.f32 %v4257, %v4275
      %v4292 = vadd.f32 %v4258, %v4276
      %v4293 = vadd.f32 %v4259, %v4277
      %v4294 = vadd.f32 %v4260, %v4278
      %v4295 = vadd.f32 %v4261, %v4279
      %v4296 = vadd.f32 %v4262, %v4280
      %v4297 = vadd.f32 %v4263, %v4281
      %v4298 = vadd.f32 %v4264, %v4282
      %v4299 = vadd.f32 %v4265, %v4275
      %v4300 = vadd.f32 %v4266, %v4276
      %v4301 = vadd.f32 %v4267, %v4277
      %v4302 = vadd.f32 %v4268, %v4278
      %v4303 = vadd.f32 %v4269, %v4279
      %v4304 = vadd.f32 %v4270, %v4280
      %v4305 = vadd.f32 %v4271, %v4281
      %v4306 = vadd.f32 %v4272, %v4282
      %vm4307 = vcmp.gt.f32.partialorder %v4291, 0.0
      %vm4308 = vcmp.gt.f32.partialorder %v4292, 0.0
      %vm4309 = vcmp.gt.f32.partialorder %v4293, 0.0
      %vm4310 = vcmp.gt.f32.partialorder %v4294, 0.0
      %vm4311 = vcmp.gt.f32.partialorder %v4295, 0.0
      %vm4312 = vcmp.gt.f32.partialorder %v4296, 0.0
      %vm4313 = vcmp.gt.f32.partialorder %v4297, 0.0
      %vm4314 = vcmp.gt.f32.partialorder %v4298, 0.0
      %vm4315 = vcmp.gt.f32.partialorder %v4299, 0.0
      %vm4316 = vcmp.gt.f32.partialorder %v4300, 0.0
      %vm4317 = vcmp.gt.f32.partialorder %v4301, 0.0
      %vm4318 = vcmp.gt.f32.partialorder %v4302, 0.0
      %vm4319 = vcmp.gt.f32.partialorder %v4303, 0.0
      %vm4320 = vcmp.gt.f32.partialorder %v4304, 0.0
      %vm4321 = vcmp.gt.f32.partialorder %v4305, 0.0
      %vm4322 = vcmp.gt.f32.partialorder %v4306, 0.0
      %v4323 = vmul.f32 %v4291, 0.2
      %v4324 = vmul.f32 %v4292, 0.2
      %v4325 = vmul.f32 %v4293, 0.2
      %v4326 = vmul.f32 %v4294, 0.2
      %v4327 = vmul.f32 %v4295, 0.2
      %v4328 = vmul.f32 %v4296, 0.2
      %v4329 = vmul.f32 %v4297, 0.2
      %v4330 = vmul.f32 %v4298, 0.2
      %v4331 = vmul.f32 %v4299, 0.2
      %v4332 = vmul.f32 %v4300, 0.2
      %v4333 = vmul.f32 %v4301, 0.2
      %v4334 = vmul.f32 %v4302, 0.2
      %v4335 = vmul.f32 %v4303, 0.2
      %v4336 = vmul.f32 %v4304, 0.2
      %v4337 = vmul.f32 %v4305, 0.2
      %v4338 = vmul.f32 %v4306, 0.2
      %v4339 = vsel %vm4307, %v4291, %v4323
      %v4340 = vsel %vm4308, %v4292, %v4324
      %v4341 = vsel %vm4309, %v4293, %v4325
      %v4342 = vsel %vm4310, %v4294, %v4326
      %v4343 = vsel %vm4311, %v4295, %v4327
      %v4344 = vsel %vm4312, %v4296, %v4328
      %v4345 = vsel %vm4313, %v4297, %v4329
      %v4346 = vsel %vm4314, %v4298, %v4330
      %v4347 = vsel %vm4315, %v4299, %v4331
      %v4348 = vsel %vm4316, %v4300, %v4332
      %v4349 = vsel %vm4317, %v4301, %v4333
      %v4350 = vsel %vm4318, %v4302, %v4334
      %v4351 = vsel %vm4319, %v4303, %v4335
      %v4352 = vsel %vm4320, %v4304, %v4336
      %v4353 = vsel %vm4321, %v4305, %v4337
      %v4354 = vsel %vm4322, %v4306, %v4338
      %v4355 = vpack.c.bf16 %v4347, %v4339
      %v4356 = vpack.c.bf16 %v4348, %v4340
      %v4357 = vpack.c.bf16 %v4349, %v4341
      %v4358 = vpack.c.bf16 %v4350, %v4342
      %v4359 = vpack.c.bf16 %v4351, %v4343
      %v4360 = vpack.c.bf16 %v4352, %v4344
      %v4361 = vpack.c.bf16 %v4353, %v4345
      %v4362 = vpack.c.bf16 %v4354, %v4346
      %v4363 = vld [vmem:[#allocation8] sm:$0xff]
      %v4364 = vld [vmem:[#allocation8 + $0x8] sm:$0xff]
      %v4365 = vld [vmem:[#allocation8 + $0x10] sm:$0xff]
      %v4366 = vld [vmem:[#allocation8 + $0x18] sm:$0xff]
      %v4367 = vld [vmem:[#allocation8 + $0x20] sm:$0xff]
      %v4368 = vld [vmem:[#allocation8 + $0x28] sm:$0xff]
      %v4369 = vld [vmem:[#allocation8 + $0x30] sm:$0xff]
      %v4370 = vld [vmem:[#allocation8 + $0x38] sm:$0xff]
      %v4371 = vld [vmem:[#allocation8 + $0x40] sm:$0xff]
      %v4372 = vld [vmem:[#allocation8 + $0x48] sm:$0xff]
      %v4373 = vld [vmem:[#allocation8 + $0x50] sm:$0xff]
      %v4374 = vld [vmem:[#allocation8 + $0x58] sm:$0xff]
      %v4375 = vld [vmem:[#allocation8 + $0x60] sm:$0xff]
      %v4376 = vld [vmem:[#allocation8 + $0x68] sm:$0xff]
      %v4377 = vld [vmem:[#allocation8 + $0x70] sm:$0xff]
      %v4378 = vld [vmem:[#allocation8 + $0x78] sm:$0xff]
      %v4379 = vld [vmem:[#allocation8 + $0x80] sm:$0xff]
      %v4380 = vld [vmem:[#allocation8 + $0x88] sm:$0xff]
      %v4381 = vld [vmem:[#allocation8 + $0x90] sm:$0xff]
      %v4382 = vld [vmem:[#allocation8 + $0x98] sm:$0xff]
      %v4383 = vld [vmem:[#allocation8 + $0xa0] sm:$0xff]
      %v4384 = vld [vmem:[#allocation8 + $0xa8] sm:$0xff]
      %v4385 = vld [vmem:[#allocation8 + $0xb0] sm:$0xff]
      %v4386 = vld [vmem:[#allocation8 + $0xb8] sm:$0xff]
      %v4387 = vld [vmem:[#allocation8 + $0xc0] sm:$0xff]
      %v4388 = vld [vmem:[#allocation8 + $0xc8] sm:$0xff]
      %v4389 = vld [vmem:[#allocation8 + $0xd0] sm:$0xff]
      %v4390 = vld [vmem:[#allocation8 + $0xd8] sm:$0xff]
      %v4391 = vld [vmem:[#allocation8 + $0xe0] sm:$0xff]
      %v4392 = vld [vmem:[#allocation8 + $0xe8] sm:$0xff]
      %v4393 = vld [vmem:[#allocation8 + $0xf0] sm:$0xff]
      %v4394 = vld [vmem:[#allocation8 + $0xf8] sm:$0xff]
      %v4395 = vld [vmem:[#allocation8 + $0x100] sm:$0xff]
      %v4396 = vld [vmem:[#allocation8 + $0x108] sm:$0xff]
      %v4397 = vld [vmem:[#allocation8 + $0x110] sm:$0xff]
      %v4398 = vld [vmem:[#allocation8 + $0x118] sm:$0xff]
      %v4399 = vld [vmem:[#allocation8 + $0x120] sm:$0xff]
      %v4400 = vld [vmem:[#allocation8 + $0x128] sm:$0xff]
      %v4401 = vld [vmem:[#allocation8 + $0x130] sm:$0xff]
      %v4402 = vld [vmem:[#allocation8 + $0x138] sm:$0xff]
      %v4403 = vld [vmem:[#allocation8 + $0x140] sm:$0xff]
      %v4404 = vld [vmem:[#allocation8 + $0x148] sm:$0xff]
      %v4405 = vld [vmem:[#allocation8 + $0x150] sm:$0xff]
      %v4406 = vld [vmem:[#allocation8 + $0x158] sm:$0xff]
      %v4407 = vld [vmem:[#allocation8 + $0x160] sm:$0xff]
      %v4408 = vld [vmem:[#allocation8 + $0x168] sm:$0xff]
      %v4409 = vld [vmem:[#allocation8 + $0x170] sm:$0xff]
      %v4410 = vld [vmem:[#allocation8 + $0x178] sm:$0xff]
      %v4411 = vld [vmem:[#allocation8 + $0x180] sm:$0xff]
      %v4412 = vld [vmem:[#allocation8 + $0x188] sm:$0xff]
      %v4413 = vld [vmem:[#allocation8 + $0x190] sm:$0xff]
      %v4414 = vld [vmem:[#allocation8 + $0x198] sm:$0xff]
      %v4415 = vld [vmem:[#allocation8 + $0x1a0] sm:$0xff]
      %v4416 = vld [vmem:[#allocation8 + $0x1a8] sm:$0xff]
      %v4417 = vld [vmem:[#allocation8 + $0x1b0] sm:$0xff]
      %v4418 = vld [vmem:[#allocation8 + $0x1b8] sm:$0xff]
      %v4419 = vld [vmem:[#allocation8 + $0x1c0] sm:$0xff]
      %v4420 = vld [vmem:[#allocation8 + $0x1c8] sm:$0xff]
      %v4421 = vld [vmem:[#allocation8 + $0x1d0] sm:$0xff]
      %v4422 = vld [vmem:[#allocation8 + $0x1d8] sm:$0xff]
      %v4423 = vld [vmem:[#allocation8 + $0x1e0] sm:$0xff]
      %v4424 = vld [vmem:[#allocation8 + $0x1e8] sm:$0xff]
      %v4425 = vld [vmem:[#allocation8 + $0x1f0] sm:$0xff]
      %v4426 = vld [vmem:[#allocation8 + $0x1f8] sm:$0xff]
      %v4427 = vld [vmem:[#allocation8 + $0x200] sm:$0xff]
      %v4428 = vld [vmem:[#allocation8 + $0x208] sm:$0xff]
      %v4429 = vld [vmem:[#allocation8 + $0x210] sm:$0xff]
      %v4430 = vld [vmem:[#allocation8 + $0x218] sm:$0xff]
      %v4431 = vld [vmem:[#allocation8 + $0x220] sm:$0xff]
      %v4432 = vld [vmem:[#allocation8 + $0x228] sm:$0xff]
      %v4433 = vld [vmem:[#allocation8 + $0x230] sm:$0xff]
      %v4434 = vld [vmem:[#allocation8 + $0x238] sm:$0xff]
      %v4435 = vld [vmem:[#allocation8 + $0x240] sm:$0xff]
      %v4436 = vld [vmem:[#allocation8 + $0x248] sm:$0xff]
      %v4437 = vld [vmem:[#allocation8 + $0x250] sm:$0xff]
      %v4438 = vld [vmem:[#allocation8 + $0x258] sm:$0xff]
      %v4439 = vld [vmem:[#allocation8 + $0x260] sm:$0xff]
      %v4440 = vld [vmem:[#allocation8 + $0x268] sm:$0xff]
      %v4441 = vld [vmem:[#allocation8 + $0x270] sm:$0xff]
      %v4442 = vld [vmem:[#allocation8 + $0x278] sm:$0xff]
      %v4443 = vld [vmem:[#allocation8 + $0x280] sm:$0xff]
      %v4444 = vld [vmem:[#allocation8 + $0x288] sm:$0xff]
      %v4445 = vld [vmem:[#allocation8 + $0x290] sm:$0xff]
      %v4446 = vld [vmem:[#allocation8 + $0x298] sm:$0xff]
      %v4447 = vld [vmem:[#allocation8 + $0x2a0] sm:$0xff]
      %v4448 = vld [vmem:[#allocation8 + $0x2a8] sm:$0xff]
      %v4449 = vld [vmem:[#allocation8 + $0x2b0] sm:$0xff]
      %v4450 = vld [vmem:[#allocation8 + $0x2b8] sm:$0xff]
      %v4451 = vld [vmem:[#allocation8 + $0x2c0] sm:$0xff]
      %v4452 = vld [vmem:[#allocation8 + $0x2c8] sm:$0xff]
      %v4453 = vld [vmem:[#allocation8 + $0x2d0] sm:$0xff]
      %v4454 = vld [vmem:[#allocation8 + $0x2d8] sm:$0xff]
      %v4455 = vld [vmem:[#allocation8 + $0x2e0] sm:$0xff]
      %v4456 = vld [vmem:[#allocation8 + $0x2e8] sm:$0xff]
      %v4457 = vld [vmem:[#allocation8 + $0x2f0] sm:$0xff]
      %v4458 = vld [vmem:[#allocation8 + $0x2f8] sm:$0xff]
      %v4459 = vld [vmem:[#allocation8 + $0x300] sm:$0xff]
      %v4460 = vld [vmem:[#allocation8 + $0x308] sm:$0xff]
      %v4461 = vld [vmem:[#allocation8 + $0x310] sm:$0xff]
      %v4462 = vld [vmem:[#allocation8 + $0x318] sm:$0xff]
      %v4463 = vld [vmem:[#allocation8 + $0x320] sm:$0xff]
      %v4464 = vld [vmem:[#allocation8 + $0x328] sm:$0xff]
      %v4465 = vld [vmem:[#allocation8 + $0x330] sm:$0xff]
      %v4466 = vld [vmem:[#allocation8 + $0x338] sm:$0xff]
      %v4467 = vld [vmem:[#allocation8 + $0x340] sm:$0xff]
      %v4468 = vld [vmem:[#allocation8 + $0x348] sm:$0xff]
      %v4469 = vld [vmem:[#allocation8 + $0x350] sm:$0xff]
      %v4470 = vld [vmem:[#allocation8 + $0x358] sm:$0xff]
      %v4471 = vld [vmem:[#allocation8 + $0x360] sm:$0xff]
      %v4472 = vld [vmem:[#allocation8 + $0x368] sm:$0xff]
      %v4473 = vld [vmem:[#allocation8 + $0x370] sm:$0xff]
      %v4474 = vld [vmem:[#allocation8 + $0x378] sm:$0xff]
      %v4475 = vld [vmem:[#allocation8 + $0x380] sm:$0xff]
      %v4476 = vld [vmem:[#allocation8 + $0x388] sm:$0xff]
      %v4477 = vld [vmem:[#allocation8 + $0x390] sm:$0xff]
      %v4478 = vld [vmem:[#allocation8 + $0x398] sm:$0xff]
      %v4479 = vld [vmem:[#allocation8 + $0x3a0] sm:$0xff]
      %v4480 = vld [vmem:[#allocation8 + $0x3a8] sm:$0xff]
      %v4481 = vld [vmem:[#allocation8 + $0x3b0] sm:$0xff]
      %v4482 = vld [vmem:[#allocation8 + $0x3b8] sm:$0xff]
      %v4483 = vld [vmem:[#allocation8 + $0x3c0] sm:$0xff]
      %v4484 = vld [vmem:[#allocation8 + $0x3c8] sm:$0xff]
      %v4485 = vld [vmem:[#allocation8 + $0x3d0] sm:$0xff]
      %v4486 = vld [vmem:[#allocation8 + $0x3d8] sm:$0xff]
      %v4487 = vld [vmem:[#allocation8 + $0x3e0] sm:$0xff]
      %v4488 = vld [vmem:[#allocation8 + $0x3e8] sm:$0xff]
      %v4489 = vld [vmem:[#allocation8 + $0x3f0] sm:$0xff]
      %v4490 = vld [vmem:[#allocation8 + $0x3f8] sm:$0xff]
      %v4491 = vld [vmem:[#allocation8 + $0x400] sm:$0xff]
      %v4492 = vld [vmem:[#allocation8 + $0x408] sm:$0xff]
      %v4493 = vld [vmem:[#allocation8 + $0x410] sm:$0xff]
      %v4494 = vld [vmem:[#allocation8 + $0x418] sm:$0xff]
      %v4495 = vld [vmem:[#allocation8 + $0x420] sm:$0xff]
      %v4496 = vld [vmem:[#allocation8 + $0x428] sm:$0xff]
      %v4497 = vld [vmem:[#allocation8 + $0x430] sm:$0xff]
      %v4498 = vld [vmem:[#allocation8 + $0x438] sm:$0xff]
      %v4499 = vld [vmem:[#allocation8 + $0x440] sm:$0xff]
      %v4500 = vld [vmem:[#allocation8 + $0x448] sm:$0xff]
      %v4501 = vld [vmem:[#allocation8 + $0x450] sm:$0xff]
      %v4502 = vld [vmem:[#allocation8 + $0x458] sm:$0xff]
      %v4503 = vld [vmem:[#allocation8 + $0x460] sm:$0xff]
      %v4504 = vld [vmem:[#allocation8 + $0x468] sm:$0xff]
      %v4505 = vld [vmem:[#allocation8 + $0x470] sm:$0xff]
      %v4506 = vld [vmem:[#allocation8 + $0x478] sm:$0xff]
      %v4507 = vld [vmem:[#allocation8 + $0x480] sm:$0xff]
      %v4508 = vld [vmem:[#allocation8 + $0x488] sm:$0xff]
      %v4509 = vld [vmem:[#allocation8 + $0x490] sm:$0xff]
      %v4510 = vld [vmem:[#allocation8 + $0x498] sm:$0xff]
      %v4511 = vld [vmem:[#allocation8 + $0x4a0] sm:$0xff]
      %v4512 = vld [vmem:[#allocation8 + $0x4a8] sm:$0xff]
      %v4513 = vld [vmem:[#allocation8 + $0x4b0] sm:$0xff]
      %v4514 = vld [vmem:[#allocation8 + $0x4b8] sm:$0xff]
      %v4515 = vld [vmem:[#allocation8 + $0x4c0] sm:$0xff]
      %v4516 = vld [vmem:[#allocation8 + $0x4c8] sm:$0xff]
      %v4517 = vld [vmem:[#allocation8 + $0x4d0] sm:$0xff]
      %v4518 = vld [vmem:[#allocation8 + $0x4d8] sm:$0xff]
      %v4519 = vld [vmem:[#allocation8 + $0x4e0] sm:$0xff]
      %v4520 = vld [vmem:[#allocation8 + $0x4e8] sm:$0xff]
      %v4521 = vld [vmem:[#allocation8 + $0x4f0] sm:$0xff]
      %v4522 = vld [vmem:[#allocation8 + $0x4f8] sm:$0xff]
      %v4523 = vld [vmem:[#allocation8 + $0x500] sm:$0xff]
      %v4524 = vld [vmem:[#allocation8 + $0x508] sm:$0xff]
      %v4525 = vld [vmem:[#allocation8 + $0x510] sm:$0xff]
      %v4526 = vld [vmem:[#allocation8 + $0x518] sm:$0xff]
      %v4527 = vld [vmem:[#allocation8 + $0x520] sm:$0xff]
      %v4528 = vld [vmem:[#allocation8 + $0x528] sm:$0xff]
      %v4529 = vld [vmem:[#allocation8 + $0x530] sm:$0xff]
      %v4530 = vld [vmem:[#allocation8 + $0x538] sm:$0xff]
      %v4531 = vld [vmem:[#allocation8 + $0x540] sm:$0xff]
      %v4532 = vld [vmem:[#allocation8 + $0x548] sm:$0xff]
      %v4533 = vld [vmem:[#allocation8 + $0x550] sm:$0xff]
      %v4534 = vld [vmem:[#allocation8 + $0x558] sm:$0xff]
      %v4535 = vld [vmem:[#allocation8 + $0x560] sm:$0xff]
      %v4536 = vld [vmem:[#allocation8 + $0x568] sm:$0xff]
      %v4537 = vld [vmem:[#allocation8 + $0x570] sm:$0xff]
      %v4538 = vld [vmem:[#allocation8 + $0x578] sm:$0xff]
      %v4539 = vld [vmem:[#allocation8 + $0x580] sm:$0xff]
      %v4540 = vld [vmem:[#allocation8 + $0x588] sm:$0xff]
      %v4541 = vld [vmem:[#allocation8 + $0x590] sm:$0xff]
      %v4542 = vld [vmem:[#allocation8 + $0x598] sm:$0xff]
      %v4543 = vld [vmem:[#allocation8 + $0x5a0] sm:$0xff]
      %v4544 = vld [vmem:[#allocation8 + $0x5a8] sm:$0xff]
      %v4545 = vld [vmem:[#allocation8 + $0x5b0] sm:$0xff]
      %v4546 = vld [vmem:[#allocation8 + $0x5b8] sm:$0xff]
      %v4547 = vld [vmem:[#allocation8 + $0x5c0] sm:$0xff]
      %v4548 = vld [vmem:[#allocation8 + $0x5c8] sm:$0xff]
      %v4549 = vld [vmem:[#allocation8 + $0x5d0] sm:$0xff]
      %v4550 = vld [vmem:[#allocation8 + $0x5d8] sm:$0xff]
      %v4551 = vld [vmem:[#allocation8 + $0x5e0] sm:$0xff]
      %v4552 = vld [vmem:[#allocation8 + $0x5e8] sm:$0xff]
      %v4553 = vld [vmem:[#allocation8 + $0x5f0] sm:$0xff]
      %v4554 = vld [vmem:[#allocation8 + $0x5f8] sm:$0xff]
      %v4555 = vld [vmem:[#allocation8 + $0x600] sm:$0xff]
      %v4556 = vld [vmem:[#allocation8 + $0x608] sm:$0xff]
      %v4557 = vld [vmem:[#allocation8 + $0x610] sm:$0xff]
      %v4558 = vld [vmem:[#allocation8 + $0x618] sm:$0xff]
      %v4559 = vld [vmem:[#allocation8 + $0x620] sm:$0xff]
      %v4560 = vld [vmem:[#allocation8 + $0x628] sm:$0xff]
      %v4561 = vld [vmem:[#allocation8 + $0x630] sm:$0xff]
      %v4562 = vld [vmem:[#allocation8 + $0x638] sm:$0xff]
      %v4563 = vld [vmem:[#allocation8 + $0x640] sm:$0xff]
      %v4564 = vld [vmem:[#allocation8 + $0x648] sm:$0xff]
      %v4565 = vld [vmem:[#allocation8 + $0x650] sm:$0xff]
      %v4566 = vld [vmem:[#allocation8 + $0x658] sm:$0xff]
      %v4567 = vld [vmem:[#allocation8 + $0x660] sm:$0xff]
      %v4568 = vld [vmem:[#allocation8 + $0x668] sm:$0xff]
      %v4569 = vld [vmem:[#allocation8 + $0x670] sm:$0xff]
      %v4570 = vld [vmem:[#allocation8 + $0x678] sm:$0xff]
      %v4571 = vld [vmem:[#allocation8 + $0x680] sm:$0xff]
      %v4572 = vld [vmem:[#allocation8 + $0x688] sm:$0xff]
      %v4573 = vld [vmem:[#allocation8 + $0x690] sm:$0xff]
      %v4574 = vld [vmem:[#allocation8 + $0x698] sm:$0xff]
      %v4575 = vld [vmem:[#allocation8 + $0x6a0] sm:$0xff]
      %v4576 = vld [vmem:[#allocation8 + $0x6a8] sm:$0xff]
      %v4577 = vld [vmem:[#allocation8 + $0x6b0] sm:$0xff]
      %v4578 = vld [vmem:[#allocation8 + $0x6b8] sm:$0xff]
      %v4579 = vld [vmem:[#allocation8 + $0x6c0] sm:$0xff]
      %v4580 = vld [vmem:[#allocation8 + $0x6c8] sm:$0xff]
      %v4581 = vld [vmem:[#allocation8 + $0x6d0] sm:$0xff]
      %v4582 = vld [vmem:[#allocation8 + $0x6d8] sm:$0xff]
      %v4583 = vld [vmem:[#allocation8 + $0x6e0] sm:$0xff]
      %v4584 = vld [vmem:[#allocation8 + $0x6e8] sm:$0xff]
      %v4585 = vld [vmem:[#allocation8 + $0x6f0] sm:$0xff]
      %v4586 = vld [vmem:[#allocation8 + $0x6f8] sm:$0xff]
      %v4587 = vld [vmem:[#allocation8 + $0x700] sm:$0xff]
      %v4588 = vld [vmem:[#allocation8 + $0x708] sm:$0xff]
      %v4589 = vld [vmem:[#allocation8 + $0x710] sm:$0xff]
      %v4590 = vld [vmem:[#allocation8 + $0x718] sm:$0xff]
      %v4591 = vld [vmem:[#allocation8 + $0x720] sm:$0xff]
      %v4592 = vld [vmem:[#allocation8 + $0x728] sm:$0xff]
      %v4593 = vld [vmem:[#allocation8 + $0x730] sm:$0xff]
      %v4594 = vld [vmem:[#allocation8 + $0x738] sm:$0xff]
      %v4595 = vld [vmem:[#allocation8 + $0x740] sm:$0xff]
      %v4596 = vld [vmem:[#allocation8 + $0x748] sm:$0xff]
      %v4597 = vld [vmem:[#allocation8 + $0x750] sm:$0xff]
      %v4598 = vld [vmem:[#allocation8 + $0x758] sm:$0xff]
      %v4599 = vld [vmem:[#allocation8 + $0x760] sm:$0xff]
      %v4600 = vld [vmem:[#allocation8 + $0x768] sm:$0xff]
      %v4601 = vld [vmem:[#allocation8 + $0x770] sm:$0xff]
      %v4602 = vld [vmem:[#allocation8 + $0x778] sm:$0xff]
      %v4603 = vld [vmem:[#allocation8 + $0x780] sm:$0xff]
      %v4604 = vld [vmem:[#allocation8 + $0x788] sm:$0xff]
      %v4605 = vld [vmem:[#allocation8 + $0x790] sm:$0xff]
      %v4606 = vld [vmem:[#allocation8 + $0x798] sm:$0xff]
      %v4607 = vld [vmem:[#allocation8 + $0x7a0] sm:$0xff]
      %v4608 = vld [vmem:[#allocation8 + $0x7a8] sm:$0xff]
      %v4609 = vld [vmem:[#allocation8 + $0x7b0] sm:$0xff]
      %v4610 = vld [vmem:[#allocation8 + $0x7b8] sm:$0xff]
      %v4611 = vld [vmem:[#allocation8 + $0x7c0] sm:$0xff]
      %v4612 = vld [vmem:[#allocation8 + $0x7c8] sm:$0xff]
      %v4613 = vld [vmem:[#allocation8 + $0x7d0] sm:$0xff]
      %v4614 = vld [vmem:[#allocation8 + $0x7d8] sm:$0xff]
      %v4615 = vld [vmem:[#allocation8 + $0x7e0] sm:$0xff]
      %v4616 = vld [vmem:[#allocation8 + $0x7e8] sm:$0xff]
      %v4617 = vld [vmem:[#allocation8 + $0x7f0] sm:$0xff]
      %v4618 = vld [vmem:[#allocation8 + $0x7f8] sm:$0xff]
      %v4619 = vld [vmem:[#allocation9] sm:$0xf]
      %v4621 = vperm.slane %v4619, 0
      %v4622 = vperm.slane %v4619, 1
      %v4623 = vperm.slane %v4619, 2
      %v4624 = vperm.slane %v4619, 3
      %v4885 = vunpack.c.l.b16 %v4363
      %v4886 = vunpack.c.h.b16 %v4363
      %v4887 = vunpack.c.l.b16 %v4364
      %v4888 = vunpack.c.h.b16 %v4364
      %v4889 = vunpack.c.l.b16 %v4365
      %v4890 = vunpack.c.h.b16 %v4365
      %v4891 = vunpack.c.l.b16 %v4366
      %v4892 = vunpack.c.h.b16 %v4366
      %v4893 = vunpack.c.l.b16 %v4367
      %v4894 = vunpack.c.h.b16 %v4367
      %v4895 = vunpack.c.l.b16 %v4368
      %v4896 = vunpack.c.h.b16 %v4368
      %v4897 = vunpack.c.l.b16 %v4369
      %v4898 = vunpack.c.h.b16 %v4369
      %v4899 = vunpack.c.l.b16 %v4370
      %v4900 = vunpack.c.h.b16 %v4370
      %v4901 = vunpack.c.l.b16 %v4371
      %v4902 = vunpack.c.h.b16 %v4371
      %v4903 = vunpack.c.l.b16 %v4372
      %v4904 = vunpack.c.h.b16 %v4372
      %v4905 = vunpack.c.l.b16 %v4373
      %v4906 = vunpack.c.h.b16 %v4373
      %v4907 = vunpack.c.l.b16 %v4374
      %v4908 = vunpack.c.h.b16 %v4374
      %v4909 = vunpack.c.l.b16 %v4375
      %v4910 = vunpack.c.h.b16 %v4375
      %v4911 = vunpack.c.l.b16 %v4376
      %v4912 = vunpack.c.h.b16 %v4376
      %v4913 = vunpack.c.l.b16 %v4377
      %v4914 = vunpack.c.h.b16 %v4377
      %v4915 = vunpack.c.l.b16 %v4378
      %v4916 = vunpack.c.h.b16 %v4378
      %v4917 = vunpack.c.l.b16 %v4379
      %v4918 = vunpack.c.h.b16 %v4379
      %v4919 = vunpack.c.l.b16 %v4380
      %v4920 = vunpack.c.h.b16 %v4380
      %v4921 = vunpack.c.l.b16 %v4381
      %v4922 = vunpack.c.h.b16 %v4381
      %v4923 = vunpack.c.l.b16 %v4382
      %v4924 = vunpack.c.h.b16 %v4382
      %v4925 = vunpack.c.l.b16 %v4383
      %v4926 = vunpack.c.h.b16 %v4383
      %v4927 = vunpack.c.l.b16 %v4384
      %v4928 = vunpack.c.h.b16 %v4384
      %v4929 = vunpack.c.l.b16 %v4385
      %v4930 = vunpack.c.h.b16 %v4385
      %v4931 = vunpack.c.l.b16 %v4386
      %v4932 = vunpack.c.h.b16 %v4386
      %v4933 = vunpack.c.l.b16 %v4387
      %v4934 = vunpack.c.h.b16 %v4387
      %v4935 = vunpack.c.l.b16 %v4388
      %v4936 = vunpack.c.h.b16 %v4388
      %v4937 = vunpack.c.l.b16 %v4389
      %v4938 = vunpack.c.h.b16 %v4389
      %v4939 = vunpack.c.l.b16 %v4390
      %v4940 = vunpack.c.h.b16 %v4390
      %v4941 = vunpack.c.l.b16 %v4391
      %v4942 = vunpack.c.h.b16 %v4391
      %v4943 = vunpack.c.l.b16 %v4392
      %v4944 = vunpack.c.h.b16 %v4392
      %v4945 = vunpack.c.l.b16 %v4393
      %v4946 = vunpack.c.h.b16 %v4393
      %v4947 = vunpack.c.l.b16 %v4394
      %v4948 = vunpack.c.h.b16 %v4394
      %v4949 = vunpack.c.l.b16 %v4395
      %v4950 = vunpack.c.h.b16 %v4395
      %v4951 = vunpack.c.l.b16 %v4396
      %v4952 = vunpack.c.h.b16 %v4396
      %v4953 = vunpack.c.l.b16 %v4397
      %v4954 = vunpack.c.h.b16 %v4397
      %v4955 = vunpack.c.l.b16 %v4398
      %v4956 = vunpack.c.h.b16 %v4398
      %v4957 = vunpack.c.l.b16 %v4399
      %v4958 = vunpack.c.h.b16 %v4399
      %v4959 = vunpack.c.l.b16 %v4400
      %v4960 = vunpack.c.h.b16 %v4400
      %v4961 = vunpack.c.l.b16 %v4401
      %v4962 = vunpack.c.h.b16 %v4401
      %v4963 = vunpack.c.l.b16 %v4402
      %v4964 = vunpack.c.h.b16 %v4402
      %v4965 = vunpack.c.l.b16 %v4403
      %v4966 = vunpack.c.h.b16 %v4403
      %v4967 = vunpack.c.l.b16 %v4404
      %v4968 = vunpack.c.h.b16 %v4404
      %v4969 = vunpack.c.l.b16 %v4405
      %v4970 = vunpack.c.h.b16 %v4405
      %v4971 = vunpack.c.l.b16 %v4406
      %v4972 = vunpack.c.h.b16 %v4406
      %v4973 = vunpack.c.l.b16 %v4407
      %v4974 = vunpack.c.h.b16 %v4407
      %v4975 = vunpack.c.l.b16 %v4408
      %v4976 = vunpack.c.h.b16 %v4408
      %v4977 = vunpack.c.l.b16 %v4409
      %v4978 = vunpack.c.h.b16 %v4409
      %v4979 = vunpack.c.l.b16 %v4410
      %v4980 = vunpack.c.h.b16 %v4410
      %v4981 = vunpack.c.l.b16 %v4411
      %v4982 = vunpack.c.h.b16 %v4411
      %v4983 = vunpack.c.l.b16 %v4412
      %v4984 = vunpack.c.h.b16 %v4412
      %v4985 = vunpack.c.l.b16 %v4413
      %v4986 = vunpack.c.h.b16 %v4413
      %v4987 = vunpack.c.l.b16 %v4414
      %v4988 = vunpack.c.h.b16 %v4414
      %v4989 = vunpack.c.l.b16 %v4415
      %v4990 = vunpack.c.h.b16 %v4415
      %v4991 = vunpack.c.l.b16 %v4416
      %v4992 = vunpack.c.h.b16 %v4416
      %v4993 = vunpack.c.l.b16 %v4417
      %v4994 = vunpack.c.h.b16 %v4417
      %v4995 = vunpack.c.l.b16 %v4418
      %v4996 = vunpack.c.h.b16 %v4418
      %v4997 = vunpack.c.l.b16 %v4419
      %v4998 = vunpack.c.h.b16 %v4419
      %v4999 = vunpack.c.l.b16 %v4420
      %v5000 = vunpack.c.h.b16 %v4420
      %v5001 = vunpack.c.l.b16 %v4421
      %v5002 = vunpack.c.h.b16 %v4421
      %v5003 = vunpack.c.l.b16 %v4422
      %v5004 = vunpack.c.h.b16 %v4422
      %v5005 = vunpack.c.l.b16 %v4423
      %v5006 = vunpack.c.h.b16 %v4423
      %v5007 = vunpack.c.l.b16 %v4424
      %v5008 = vunpack.c.h.b16 %v4424
      %v5009 = vunpack.c.l.b16 %v4425
      %v5010 = vunpack.c.h.b16 %v4425
      %v5011 = vunpack.c.l.b16 %v4426
      %v5012 = vunpack.c.h.b16 %v4426
      %v5013 = vunpack.c.l.b16 %v4427
      %v5014 = vunpack.c.h.b16 %v4427
      %v5015 = vunpack.c.l.b16 %v4428
      %v5016 = vunpack.c.h.b16 %v4428
      %v5017 = vunpack.c.l.b16 %v4429
      %v5018 = vunpack.c.h.b16 %v4429
      %v5019 = vunpack.c.l.b16 %v4430
      %v5020 = vunpack.c.h.b16 %v4430
      %v5021 = vunpack.c.l.b16 %v4431
      %v5022 = vunpack.c.h.b16 %v4431
      %v5023 = vunpack.c.l.b16 %v4432
      %v5024 = vunpack.c.h.b16 %v4432
      %v5025 = vunpack.c.l.b16 %v4433
      %v5026 = vunpack.c.h.b16 %v4433
      %v5027 = vunpack.c.l.b16 %v4434
      %v5028 = vunpack.c.h.b16 %v4434
      %v5029 = vunpack.c.l.b16 %v4435
      %v5030 = vunpack.c.h.b16 %v4435
      %v5031 = vunpack.c.l.b16 %v4436
      %v5032 = vunpack.c.h.b16 %v4436
      %v5033 = vunpack.c.l.b16 %v4437
      %v5034 = vunpack.c.h.b16 %v4437
      %v5035 = vunpack.c.l.b16 %v4438
      %v5036 = vunpack.c.h.b16 %v4438
      %v5037 = vunpack.c.l.b16 %v4439
      %v5038 = vunpack.c.h.b16 %v4439
      %v5039 = vunpack.c.l.b16 %v4440
      %v5040 = vunpack.c.h.b16 %v4440
      %v5041 = vunpack.c.l.b16 %v4441
      %v5042 = vunpack.c.h.b16 %v4441
      %v5043 = vunpack.c.l.b16 %v4442
      %v5044 = vunpack.c.h.b16 %v4442
      %v5045 = vunpack.c.l.b16 %v4443
      %v5046 = vunpack.c.h.b16 %v4443
      %v5047 = vunpack.c.l.b16 %v4444
      %v5048 = vunpack.c.h.b16 %v4444
      %v5049 = vunpack.c.l.b16 %v4445
      %v5050 = vunpack.c.h.b16 %v4445
      %v5051 = vunpack.c.l.b16 %v4446
      %v5052 = vunpack.c.h.b16 %v4446
      %v5053 = vunpack.c.l.b16 %v4447
      %v5054 = vunpack.c.h.b16 %v4447
      %v5055 = vunpack.c.l.b16 %v4448
      %v5056 = vunpack.c.h.b16 %v4448
      %v5057 = vunpack.c.l.b16 %v4449
      %v5058 = vunpack.c.h.b16 %v4449
      %v5059 = vunpack.c.l.b16 %v4450
      %v5060 = vunpack.c.h.b16 %v4450
      %v5061 = vunpack.c.l.b16 %v4451
      %v5062 = vunpack.c.h.b16 %v4451
      %v5063 = vunpack.c.l.b16 %v4452
      %v5064 = vunpack.c.h.b16 %v4452
      %v5065 = vunpack.c.l.b16 %v4453
      %v5066 = vunpack.c.h.b16 %v4453
      %v5067 = vunpack.c.l.b16 %v4454
      %v5068 = vunpack.c.h.b16 %v4454
      %v5069 = vunpack.c.l.b16 %v4455
      %v5070 = vunpack.c.h.b16 %v4455
      %v5071 = vunpack.c.l.b16 %v4456
      %v5072 = vunpack.c.h.b16 %v4456
      %v5073 = vunpack.c.l.b16 %v4457
      %v5074 = vunpack.c.h.b16 %v4457
      %v5075 = vunpack.c.l.b16 %v4458
      %v5076 = vunpack.c.h.b16 %v4458
      %v5077 = vunpack.c.l.b16 %v4459
      %v5078 = vunpack.c.h.b16 %v4459
      %v5079 = vunpack.c.l.b16 %v4460
      %v5080 = vunpack.c.h.b16 %v4460
      %v5081 = vunpack.c.l.b16 %v4461
      %v5082 = vunpack.c.h.b16 %v4461
      %v5083 = vunpack.c.l.b16 %v4462
      %v5084 = vunpack.c.h.b16 %v4462
      %v5085 = vunpack.c.l.b16 %v4463
      %v5086 = vunpack.c.h.b16 %v4463
      %v5087 = vunpack.c.l.b16 %v4464
      %v5088 = vunpack.c.h.b16 %v4464
      %v5089 = vunpack.c.l.b16 %v4465
      %v5090 = vunpack.c.h.b16 %v4465
      %v5091 = vunpack.c.l.b16 %v4466
      %v5092 = vunpack.c.h.b16 %v4466
      %v5093 = vunpack.c.l.b16 %v4467
      %v5094 = vunpack.c.h.b16 %v4467
      %v5095 = vunpack.c.l.b16 %v4468
      %v5096 = vunpack.c.h.b16 %v4468
      %v5097 = vunpack.c.l.b16 %v4469
      %v5098 = vunpack.c.h.b16 %v4469
      %v5099 = vunpack.c.l.b16 %v4470
      %v5100 = vunpack.c.h.b16 %v4470
      %v5101 = vunpack.c.l.b16 %v4471
      %v5102 = vunpack.c.h.b16 %v4471
      %v5103 = vunpack.c.l.b16 %v4472
      %v5104 = vunpack.c.h.b16 %v4472
      %v5105 = vunpack.c.l.b16 %v4473
      %v5106 = vunpack.c.h.b16 %v4473
      %v5107 = vunpack.c.l.b16 %v4474
      %v5108 = vunpack.c.h.b16 %v4474
      %v5109 = vunpack.c.l.b16 %v4475
      %v5110 = vunpack.c.h.b16 %v4475
      %v5111 = vunpack.c.l.b16 %v4476
      %v5112 = vunpack.c.h.b16 %v4476
      %v5113 = vunpack.c.l.b16 %v4477
      %v5114 = vunpack.c.h.b16 %v4477
      %v5115 = vunpack.c.l.b16 %v4478
      %v5116 = vunpack.c.h.b16 %v4478
      %v5117 = vunpack.c.l.b16 %v4479
      %v5118 = vunpack.c.h.b16 %v4479
      %v5119 = vunpack.c.l.b16 %v4480
      %v5120 = vunpack.c.h.b16 %v4480
      %v5121 = vunpack.c.l.b16 %v4481
      %v5122 = vunpack.c.h.b16 %v4481
      %v5123 = vunpack.c.l.b16 %v4482
      %v5124 = vunpack.c.h.b16 %v4482
      %v5125 = vunpack.c.l.b16 %v4483
      %v5126 = vunpack.c.h.b16 %v4483
      %v5127 = vunpack.c.l.b16 %v4484
      %v5128 = vunpack.c.h.b16 %v4484
      %v5129 = vunpack.c.l.b16 %v4485
      %v5130 = vunpack.c.h.b16 %v4485
      %v5131 = vunpack.c.l.b16 %v4486
      %v5132 = vunpack.c.h.b16 %v4486
      %v5133 = vunpack.c.l.b16 %v4487
      %v5134 = vunpack.c.h.b16 %v4487
      %v5135 = vunpack.c.l.b16 %v4488
      %v5136 = vunpack.c.h.b16 %v4488
      %v5137 = vunpack.c.l.b16 %v4489
      %v5138 = vunpack.c.h.b16 %v4489
      %v5139 = vunpack.c.l.b16 %v4490
      %v5140 = vunpack.c.h.b16 %v4490
      %v5141 = vunpack.c.l.b16 %v4491
      %v5142 = vunpack.c.h.b16 %v4491
      %v5143 = vunpack.c.l.b16 %v4492
      %v5144 = vunpack.c.h.b16 %v4492
      %v5145 = vunpack.c.l.b16 %v4493
      %v5146 = vunpack.c.h.b16 %v4493
      %v5147 = vunpack.c.l.b16 %v4494
      %v5148 = vunpack.c.h.b16 %v4494
      %v5149 = vunpack.c.l.b16 %v4495
      %v5150 = vunpack.c.h.b16 %v4495
      %v5151 = vunpack.c.l.b16 %v4496
      %v5152 = vunpack.c.h.b16 %v4496
      %v5153 = vunpack.c.l.b16 %v4497
      %v5154 = vunpack.c.h.b16 %v4497
      %v5155 = vunpack.c.l.b16 %v4498
      %v5156 = vunpack.c.h.b16 %v4498
      %v5157 = vunpack.c.l.b16 %v4499
      %v5158 = vunpack.c.h.b16 %v4499
      %v5159 = vunpack.c.l.b16 %v4500
      %v5160 = vunpack.c.h.b16 %v4500
      %v5161 = vunpack.c.l.b16 %v4501
      %v5162 = vunpack.c.h.b16 %v4501
      %v5163 = vunpack.c.l.b16 %v4502
      %v5164 = vunpack.c.h.b16 %v4502
      %v5165 = vunpack.c.l.b16 %v4503
      %v5166 = vunpack.c.h.b16 %v4503
      %v5167 = vunpack.c.l.b16 %v4504
      %v5168 = vunpack.c.h.b16 %v4504
      %v5169 = vunpack.c.l.b16 %v4505
      %v5170 = vunpack.c.h.b16 %v4505
      %v5171 = vunpack.c.l.b16 %v4506
      %v5172 = vunpack.c.h.b16 %v4506
      %v5173 = vunpack.c.l.b16 %v4507
      %v5174 = vunpack.c.h.b16 %v4507
      %v5175 = vunpack.c.l.b16 %v4508
      %v5176 = vunpack.c.h.b16 %v4508
      %v5177 = vunpack.c.l.b16 %v4509
      %v5178 = vunpack.c.h.b16 %v4509
      %v5179 = vunpack.c.l.b16 %v4510
      %v5180 = vunpack.c.h.b16 %v4510
      %v5181 = vunpack.c.l.b16 %v4511
      %v5182 = vunpack.c.h.b16 %v4511
      %v5183 = vunpack.c.l.b16 %v4512
      %v5184 = vunpack.c.h.b16 %v4512
      %v5185 = vunpack.c.l.b16 %v4513
      %v5186 = vunpack.c.h.b16 %v4513
      %v5187 = vunpack.c.l.b16 %v4514
      %v5188 = vunpack.c.h.b16 %v4514
      %v5189 = vunpack.c.l.b16 %v4515
      %v5190 = vunpack.c.h.b16 %v4515
      %v5191 = vunpack.c.l.b16 %v4516
      %v5192 = vunpack.c.h.b16 %v4516
      %v5193 = vunpack.c.l.b16 %v4517
      %v5194 = vunpack.c.h.b16 %v4517
      %v5195 = vunpack.c.l.b16 %v4518
      %v5196 = vunpack.c.h.b16 %v4518
      %v5197 = vunpack.c.l.b16 %v4519
      %v5198 = vunpack.c.h.b16 %v4519
      %v5199 = vunpack.c.l.b16 %v4520
      %v5200 = vunpack.c.h.b16 %v4520
      %v5201 = vunpack.c.l.b16 %v4521
      %v5202 = vunpack.c.h.b16 %v4521
      %v5203 = vunpack.c.l.b16 %v4522
      %v5204 = vunpack.c.h.b16 %v4522
      %v5205 = vunpack.c.l.b16 %v4523
      %v5206 = vunpack.c.h.b16 %v4523
      %v5207 = vunpack.c.l.b16 %v4524
      %v5208 = vunpack.c.h.b16 %v4524
      %v5209 = vunpack.c.l.b16 %v4525
      %v5210 = vunpack.c.h.b16 %v4525
      %v5211 = vunpack.c.l.b16 %v4526
      %v5212 = vunpack.c.h.b16 %v4526
      %v5213 = vunpack.c.l.b16 %v4527
      %v5214 = vunpack.c.h.b16 %v4527
      %v5215 = vunpack.c.l.b16 %v4528
      %v5216 = vunpack.c.h.b16 %v4528
      %v5217 = vunpack.c.l.b16 %v4529
      %v5218 = vunpack.c.h.b16 %v4529
      %v5219 = vunpack.c.l.b16 %v4530
      %v5220 = vunpack.c.h.b16 %v4530
      %v5221 = vunpack.c.l.b16 %v4531
      %v5222 = vunpack.c.h.b16 %v4531
      %v5223 = vunpack.c.l.b16 %v4532
      %v5224 = vunpack.c.h.b16 %v4532
      %v5225 = vunpack.c.l.b16 %v4533
      %v5226 = vunpack.c.h.b16 %v4533
      %v5227 = vunpack.c.l.b16 %v4534
      %v5228 = vunpack.c.h.b16 %v4534
      %v5229 = vunpack.c.l.b16 %v4535
      %v5230 = vunpack.c.h.b16 %v4535
      %v5231 = vunpack.c.l.b16 %v4536
      %v5232 = vunpack.c.h.b16 %v4536
      %v5233 = vunpack.c.l.b16 %v4537
      %v5234 = vunpack.c.h.b16 %v4537
      %v5235 = vunpack.c.l.b16 %v4538
      %v5236 = vunpack.c.h.b16 %v4538
      %v5237 = vunpack.c.l.b16 %v4539
      %v5238 = vunpack.c.h.b16 %v4539
      %v5239 = vunpack.c.l.b16 %v4540
      %v5240 = vunpack.c.h.b16 %v4540
      %v5241 = vunpack.c.l.b16 %v4541
      %v5242 = vunpack.c.h.b16 %v4541
      %v5243 = vunpack.c.l.b16 %v4542
      %v5244 = vunpack.c.h.b16 %v4542
      %v5245 = vunpack.c.l.b16 %v4543
      %v5246 = vunpack.c.h.b16 %v4543
      %v5247 = vunpack.c.l.b16 %v4544
      %v5248 = vunpack.c.h.b16 %v4544
      %v5249 = vunpack.c.l.b16 %v4545
      %v5250 = vunpack.c.h.b16 %v4545
      %v5251 = vunpack.c.l.b16 %v4546
      %v5252 = vunpack.c.h.b16 %v4546
      %v5253 = vunpack.c.l.b16 %v4547
      %v5254 = vunpack.c.h.b16 %v4547
      %v5255 = vunpack.c.l.b16 %v4548
      %v5256 = vunpack.c.h.b16 %v4548
      %v5257 = vunpack.c.l.b16 %v4549
      %v5258 = vunpack.c.h.b16 %v4549
      %v5259 = vunpack.c.l.b16 %v4550
      %v5260 = vunpack.c.h.b16 %v4550
      %v5261 = vunpack.c.l.b16 %v4551
      %v5262 = vunpack.c.h.b16 %v4551
      %v5263 = vunpack.c.l.b16 %v4552
      %v5264 = vunpack.c.h.b16 %v4552
      %v5265 = vunpack.c.l.b16 %v4553
      %v5266 = vunpack.c.h.b16 %v4553
      %v5267 = vunpack.c.l.b16 %v4554
      %v5268 = vunpack.c.h.b16 %v4554
      %v5269 = vunpack.c.l.b16 %v4555
      %v5270 = vunpack.c.h.b16 %v4555
      %v5271 = vunpack.c.l.b16 %v4556
      %v5272 = vunpack.c.h.b16 %v4556
      %v5273 = vunpack.c.l.b16 %v4557
      %v5274 = vunpack.c.h.b16 %v4557
      %v5275 = vunpack.c.l.b16 %v4558
      %v5276 = vunpack.c.h.b16 %v4558
      %v5277 = vunpack.c.l.b16 %v4559
      %v5278 = vunpack.c.h.b16 %v4559
      %v5279 = vunpack.c.l.b16 %v4560
      %v5280 = vunpack.c.h.b16 %v4560
      %v5281 = vunpack.c.l.b16 %v4561
      %v5282 = vunpack.c.h.b16 %v4561
      %v5283 = vunpack.c.l.b16 %v4562
      %v5284 = vunpack.c.h.b16 %v4562
      %v5285 = vunpack.c.l.b16 %v4563
      %v5286 = vunpack.c.h.b16 %v4563
      %v5287 = vunpack.c.l.b16 %v4564
      %v5288 = vunpack.c.h.b16 %v4564
      %v5289 = vunpack.c.l.b16 %v4565
      %v5290 = vunpack.c.h.b16 %v4565
      %v5291 = vunpack.c.l.b16 %v4566
      %v5292 = vunpack.c.h.b16 %v4566
      %v5293 = vunpack.c.l.b16 %v4567
      %v5294 = vunpack.c.h.b16 %v4567
      %v5295 = vunpack.c.l.b16 %v4568
      %v5296 = vunpack.c.h.b16 %v4568
      %v5297 = vunpack.c.l.b16 %v4569
      %v5298 = vunpack.c.h.b16 %v4569
      %v5299 = vunpack.c.l.b16 %v4570
      %v5300 = vunpack.c.h.b16 %v4570
      %v5301 = vunpack.c.l.b16 %v4571
      %v5302 = vunpack.c.h.b16 %v4571
      %v5303 = vunpack.c.l.b16 %v4572
      %v5304 = vunpack.c.h.b16 %v4572
      %v5305 = vunpack.c.l.b16 %v4573
      %v5306 = vunpack.c.h.b16 %v4573
      %v5307 = vunpack.c.l.b16 %v4574
      %v5308 = vunpack.c.h.b16 %v4574
      %v5309 = vunpack.c.l.b16 %v4575
      %v5310 = vunpack.c.h.b16 %v4575
      %v5311 = vunpack.c.l.b16 %v4576
      %v5312 = vunpack.c.h.b16 %v4576
      %v5313 = vunpack.c.l.b16 %v4577
      %v5314 = vunpack.c.h.b16 %v4577
      %v5315 = vunpack.c.l.b16 %v4578
      %v5316 = vunpack.c.h.b16 %v4578
      %v5317 = vunpack.c.l.b16 %v4579
      %v5318 = vunpack.c.h.b16 %v4579
      %v5319 = vunpack.c.l.b16 %v4580
      %v5320 = vunpack.c.h.b16 %v4580
      %v5321 = vunpack.c.l.b16 %v4581
      %v5322 = vunpack.c.h.b16 %v4581
      %v5323 = vunpack.c.l.b16 %v4582
      %v5324 = vunpack.c.h.b16 %v4582
      %v5325 = vunpack.c.l.b16 %v4583
      %v5326 = vunpack.c.h.b16 %v4583
      %v5327 = vunpack.c.l.b16 %v4584
      %v5328 = vunpack.c.h.b16 %v4584
      %v5329 = vunpack.c.l.b16 %v4585
      %v5330 = vunpack.c.h.b16 %v4585
      %v5331 = vunpack.c.l.b16 %v4586
      %v5332 = vunpack.c.h.b16 %v4586
      %v5333 = vunpack.c.l.b16 %v4587
      %v5334 = vunpack.c.h.b16 %v4587
      %v5335 = vunpack.c.l.b16 %v4588
      %v5336 = vunpack.c.h.b16 %v4588
      %v5337 = vunpack.c.l.b16 %v4589
      %v5338 = vunpack.c.h.b16 %v4589
      %v5339 = vunpack.c.l.b16 %v4590
      %v5340 = vunpack.c.h.b16 %v4590
      %v5341 = vunpack.c.l.b16 %v4591
      %v5342 = vunpack.c.h.b16 %v4591
      %v5343 = vunpack.c.l.b16 %v4592
      %v5344 = vunpack.c.h.b16 %v4592
      %v5345 = vunpack.c.l.b16 %v4593
      %v5346 = vunpack.c.h.b16 %v4593
      %v5347 = vunpack.c.l.b16 %v4594
      %v5348 = vunpack.c.h.b16 %v4594
      %v5349 = vunpack.c.l.b16 %v4595
      %v5350 = vunpack.c.h.b16 %v4595
      %v5351 = vunpack.c.l.b16 %v4596
      %v5352 = vunpack.c.h.b16 %v4596
      %v5353 = vunpack.c.l.b16 %v4597
      %v5354 = vunpack.c.h.b16 %v4597
      %v5355 = vunpack.c.l.b16 %v4598
      %v5356 = vunpack.c.h.b16 %v4598
      %v5357 = vunpack.c.l.b16 %v4599
      %v5358 = vunpack.c.h.b16 %v4599
      %v5359 = vunpack.c.l.b16 %v4600
      %v5360 = vunpack.c.h.b16 %v4600
      %v5361 = vunpack.c.l.b16 %v4601
      %v5362 = vunpack.c.h.b16 %v4601
      %v5363 = vunpack.c.l.b16 %v4602
      %v5364 = vunpack.c.h.b16 %v4602
      %v5365 = vunpack.c.l.b16 %v4603
      %v5366 = vunpack.c.h.b16 %v4603
      %v5367 = vunpack.c.l.b16 %v4604
      %v5368 = vunpack.c.h.b16 %v4604
      %v5369 = vunpack.c.l.b16 %v4605
      %v5370 = vunpack.c.h.b16 %v4605
      %v5371 = vunpack.c.l.b16 %v4606
      %v5372 = vunpack.c.h.b16 %v4606
      %v5373 = vunpack.c.l.b16 %v4607
      %v5374 = vunpack.c.h.b16 %v4607
      %v5375 = vunpack.c.l.b16 %v4608
      %v5376 = vunpack.c.h.b16 %v4608
      %v5377 = vunpack.c.l.b16 %v4609
      %v5378 = vunpack.c.h.b16 %v4609
      %v5379 = vunpack.c.l.b16 %v4610
      %v5380 = vunpack.c.h.b16 %v4610
      %v5381 = vunpack.c.l.b16 %v4611
      %v5382 = vunpack.c.h.b16 %v4611
      %v5383 = vunpack.c.l.b16 %v4612
      %v5384 = vunpack.c.h.b16 %v4612
      %v5385 = vunpack.c.l.b16 %v4613
      %v5386 = vunpack.c.h.b16 %v4613
      %v5387 = vunpack.c.l.b16 %v4614
      %v5388 = vunpack.c.h.b16 %v4614
      %v5389 = vunpack.c.l.b16 %v4615
      %v5390 = vunpack.c.h.b16 %v4615
      %v5391 = vunpack.c.l.b16 %v4616
      %v5392 = vunpack.c.h.b16 %v4616
      %v5393 = vunpack.c.l.b16 %v4617
      %v5394 = vunpack.c.h.b16 %v4617
      %v5395 = vunpack.c.l.b16 %v4618
      %v5396 = vunpack.c.h.b16 %v4618
      %v5397 = vpack.c.b16 %v4889, %v4885
      %v5398 = vpack.c.b16 %v4890, %v4886
      %v5399 = vpack.c.b16 %v4891, %v4887
      %v5400 = vpack.c.b16 %v4892, %v4888
      %v5401 = vpack.c.b16 %v4897, %v4893
      %v5402 = vpack.c.b16 %v4898, %v4894
      %v5403 = vpack.c.b16 %v4899, %v4895
      %v5404 = vpack.c.b16 %v4900, %v4896
      %v5405 = vpack.c.b16 %v4905, %v4901
      %v5406 = vpack.c.b16 %v4906, %v4902
      %v5407 = vpack.c.b16 %v4907, %v4903
      %v5408 = vpack.c.b16 %v4908, %v4904
      %v5409 = vpack.c.b16 %v4913, %v4909
      %v5410 = vpack.c.b16 %v4914, %v4910
      %v5411 = vpack.c.b16 %v4915, %v4911
      %v5412 = vpack.c.b16 %v4916, %v4912
      %v5413 = vpack.c.b16 %v4921, %v4917
      %v5414 = vpack.c.b16 %v4922, %v4918
      %v5415 = vpack.c.b16 %v4923, %v4919
      %v5416 = vpack.c.b16 %v4924, %v4920
      %v5417 = vpack.c.b16 %v4929, %v4925
      %v5418 = vpack.c.b16 %v4930, %v4926
      %v5419 = vpack.c.b16 %v4931, %v4927
      %v5420 = vpack.c.b16 %v4932, %v4928
      %v5421 = vpack.c.b16 %v4937, %v4933
      %v5422 = vpack.c.b16 %v4938, %v4934
      %v5423 = vpack.c.b16 %v4939, %v4935
      %v5424 = vpack.c.b16 %v4940, %v4936
      %v5425 = vpack.c.b16 %v4945, %v4941
      %v5426 = vpack.c.b16 %v4946, %v4942
      %v5427 = vpack.c.b16 %v4947, %v4943
      %v5428 = vpack.c.b16 %v4948, %v4944
      %v5429 = vpack.c.b16 %v4953, %v4949
      %v5430 = vpack.c.b16 %v4954, %v4950
      %v5431 = vpack.c.b16 %v4955, %v4951
      %v5432 = vpack.c.b16 %v4956, %v4952
      %v5433 = vpack.c.b16 %v4961, %v4957
      %v5434 = vpack.c.b16 %v4962, %v4958
      %v5435 = vpack.c.b16 %v4963, %v4959
      %v5436 = vpack.c.b16 %v4964, %v4960
      %v5437 = vpack.c.b16 %v4969, %v4965
      %v5438 = vpack.c.b16 %v4970, %v4966
      %v5439 = vpack.c.b16 %v4971, %v4967
      %v5440 = vpack.c.b16 %v4972, %v4968
      %v5441 = vpack.c.b16 %v4977, %v4973
      %v5442 = vpack.c.b16 %v4978, %v4974
      %v5443 = vpack.c.b16 %v4979, %v4975
      %v5444 = vpack.c.b16 %v4980, %v4976
      %v5445 = vpack.c.b16 %v4985, %v4981
      %v5446 = vpack.c.b16 %v4986, %v4982
      %v5447 = vpack.c.b16 %v4987, %v4983
      %v5448 = vpack.c.b16 %v4988, %v4984
      %v5449 = vpack.c.b16 %v4993, %v4989
      %v5450 = vpack.c.b16 %v4994, %v4990
      %v5451 = vpack.c.b16 %v4995, %v4991
      %v5452 = vpack.c.b16 %v4996, %v4992
      %v5453 = vpack.c.b16 %v5001, %v4997
      %v5454 = vpack.c.b16 %v5002, %v4998
      %v5455 = vpack.c.b16 %v5003, %v4999
      %v5456 = vpack.c.b16 %v5004, %v5000
      %v5457 = vpack.c.b16 %v5009, %v5005
      %v5458 = vpack.c.b16 %v5010, %v5006
      %v5459 = vpack.c.b16 %v5011, %v5007
      %v5460 = vpack.c.b16 %v5012, %v5008
      %v5461 = vpack.c.b16 %v5017, %v5013
      %v5462 = vpack.c.b16 %v5018, %v5014
      %v5463 = vpack.c.b16 %v5019, %v5015
      %v5464 = vpack.c.b16 %v5020, %v5016
      %v5465 = vpack.c.b16 %v5025, %v5021
      %v5466 = vpack.c.b16 %v5026, %v5022
      %v5467 = vpack.c.b16 %v5027, %v5023
      %v5468 = vpack.c.b16 %v5028, %v5024
      %v5469 = vpack.c.b16 %v5033, %v5029
      %v5470 = vpack.c.b16 %v5034, %v5030
      %v5471 = vpack.c.b16 %v5035, %v5031
      %v5472 = vpack.c.b16 %v5036, %v5032
      %v5473 = vpack.c.b16 %v5041, %v5037
      %v5474 = vpack.c.b16 %v5042, %v5038
      %v5475 = vpack.c.b16 %v5043, %v5039
      %v5476 = vpack.c.b16 %v5044, %v5040
      %v5477 = vpack.c.b16 %v5049, %v5045
      %v5478 = vpack.c.b16 %v5050, %v5046
      %v5479 = vpack.c.b16 %v5051, %v5047
      %v5480 = vpack.c.b16 %v5052, %v5048
      %v5481 = vpack.c.b16 %v5057, %v5053
      %v5482 = vpack.c.b16 %v5058, %v5054
      %v5483 = vpack.c.b16 %v5059, %v5055
      %v5484 = vpack.c.b16 %v5060, %v5056
      %v5485 = vpack.c.b16 %v5065, %v5061
      %v5486 = vpack.c.b16 %v5066, %v5062
      %v5487 = vpack.c.b16 %v5067, %v5063
      %v5488 = vpack.c.b16 %v5068, %v5064
      %v5489 = vpack.c.b16 %v5073, %v5069
      %v5490 = vpack.c.b16 %v5074, %v5070
      %v5491 = vpack.c.b16 %v5075, %v5071
      %v5492 = vpack.c.b16 %v5076, %v5072
      %v5493 = vpack.c.b16 %v5081, %v5077
      %v5494 = vpack.c.b16 %v5082, %v5078
      %v5495 = vpack.c.b16 %v5083, %v5079
      %v5496 = vpack.c.b16 %v5084, %v5080
      %v5497 = vpack.c.b16 %v5089, %v5085
      %v5498 = vpack.c.b16 %v5090, %v5086
      %v5499 = vpack.c.b16 %v5091, %v5087
      %v5500 = vpack.c.b16 %v5092, %v5088
      %v5501 = vpack.c.b16 %v5097, %v5093
      %v5502 = vpack.c.b16 %v5098, %v5094
      %v5503 = vpack.c.b16 %v5099, %v5095
      %v5504 = vpack.c.b16 %v5100, %v5096
      %v5505 = vpack.c.b16 %v5105, %v5101
      %v5506 = vpack.c.b16 %v5106, %v5102
      %v5507 = vpack.c.b16 %v5107, %v5103
      %v5508 = vpack.c.b16 %v5108, %v5104
      %v5509 = vpack.c.b16 %v5113, %v5109
      %v5510 = vpack.c.b16 %v5114, %v5110
      %v5511 = vpack.c.b16 %v5115, %v5111
      %v5512 = vpack.c.b16 %v5116, %v5112
      %v5513 = vpack.c.b16 %v5121, %v5117
      %v5514 = vpack.c.b16 %v5122, %v5118
      %v5515 = vpack.c.b16 %v5123, %v5119
      %v5516 = vpack.c.b16 %v5124, %v5120
      %v5517 = vpack.c.b16 %v5129, %v5125
      %v5518 = vpack.c.b16 %v5130, %v5126
      %v5519 = vpack.c.b16 %v5131, %v5127
      %v5520 = vpack.c.b16 %v5132, %v5128
      %v5521 = vpack.c.b16 %v5137, %v5133
      %v5522 = vpack.c.b16 %v5138, %v5134
      %v5523 = vpack.c.b16 %v5139, %v5135
      %v5524 = vpack.c.b16 %v5140, %v5136
      %v5525 = vpack.c.b16 %v5145, %v5141
      %v5526 = vpack.c.b16 %v5146, %v5142
      %v5527 = vpack.c.b16 %v5147, %v5143
      %v5528 = vpack.c.b16 %v5148, %v5144
      %v5529 = vpack.c.b16 %v5153, %v5149
      %v5530 = vpack.c.b16 %v5154, %v5150
      %v5531 = vpack.c.b16 %v5155, %v5151
      %v5532 = vpack.c.b16 %v5156, %v5152
      %v5533 = vpack.c.b16 %v5161, %v5157
      %v5534 = vpack.c.b16 %v5162, %v5158
      %v5535 = vpack.c.b16 %v5163, %v5159
      %v5536 = vpack.c.b16 %v5164, %v5160
      %v5537 = vpack.c.b16 %v5169, %v5165
      %v5538 = vpack.c.b16 %v5170, %v5166
      %v5539 = vpack.c.b16 %v5171, %v5167
      %v5540 = vpack.c.b16 %v5172, %v5168
      %v5541 = vpack.c.b16 %v5177, %v5173
      %v5542 = vpack.c.b16 %v5178, %v5174
      %v5543 = vpack.c.b16 %v5179, %v5175
      %v5544 = vpack.c.b16 %v5180, %v5176
      %v5545 = vpack.c.b16 %v5185, %v5181
      %v5546 = vpack.c.b16 %v5186, %v5182
      %v5547 = vpack.c.b16 %v5187, %v5183
      %v5548 = vpack.c.b16 %v5188, %v5184
      %v5549 = vpack.c.b16 %v5193, %v5189
      %v5550 = vpack.c.b16 %v5194, %v5190
      %v5551 = vpack.c.b16 %v5195, %v5191
      %v5552 = vpack.c.b16 %v5196, %v5192
      %v5553 = vpack.c.b16 %v5201, %v5197
      %v5554 = vpack.c.b16 %v5202, %v5198
      %v5555 = vpack.c.b16 %v5203, %v5199
      %v5556 = vpack.c.b16 %v5204, %v5200
      %v5557 = vpack.c.b16 %v5209, %v5205
      %v5558 = vpack.c.b16 %v5210, %v5206
      %v5559 = vpack.c.b16 %v5211, %v5207
      %v5560 = vpack.c.b16 %v5212, %v5208
      %v5561 = vpack.c.b16 %v5217, %v5213
      %v5562 = vpack.c.b16 %v5218, %v5214
      %v5563 = vpack.c.b16 %v5219, %v5215
      %v5564 = vpack.c.b16 %v5220, %v5216
      %v5565 = vpack.c.b16 %v5225, %v5221
      %v5566 = vpack.c.b16 %v5226, %v5222
      %v5567 = vpack.c.b16 %v5227, %v5223
      %v5568 = vpack.c.b16 %v5228, %v5224
      %v5569 = vpack.c.b16 %v5233, %v5229
      %v5570 = vpack.c.b16 %v5234, %v5230
      %v5571 = vpack.c.b16 %v5235, %v5231
      %v5572 = vpack.c.b16 %v5236, %v5232
      %v5573 = vpack.c.b16 %v5241, %v5237
      %v5574 = vpack.c.b16 %v5242, %v5238
      %v5575 = vpack.c.b16 %v5243, %v5239
      %v5576 = vpack.c.b16 %v5244, %v5240
      %v5577 = vpack.c.b16 %v5249, %v5245
      %v5578 = vpack.c.b16 %v5250, %v5246
      %v5579 = vpack.c.b16 %v5251, %v5247
      %v5580 = vpack.c.b16 %v5252, %v5248
      %v5581 = vpack.c.b16 %v5257, %v5253
      %v5582 = vpack.c.b16 %v5258, %v5254
      %v5583 = vpack.c.b16 %v5259, %v5255
      %v5584 = vpack.c.b16 %v5260, %v5256
      %v5585 = vpack.c.b16 %v5265, %v5261
      %v5586 = vpack.c.b16 %v5266, %v5262
      %v5587 = vpack.c.b16 %v5267, %v5263
      %v5588 = vpack.c.b16 %v5268, %v5264
      %v5589 = vpack.c.b16 %v5273, %v5269
      %v5590 = vpack.c.b16 %v5274, %v5270
      %v5591 = vpack.c.b16 %v5275, %v5271
      %v5592 = vpack.c.b16 %v5276, %v5272
      %v5593 = vpack.c.b16 %v5281, %v5277
      %v5594 = vpack.c.b16 %v5282, %v5278
      %v5595 = vpack.c.b16 %v5283, %v5279
      %v5596 = vpack.c.b16 %v5284, %v5280
      %v5597 = vpack.c.b16 %v5289, %v5285
      %v5598 = vpack.c.b16 %v5290, %v5286
      %v5599 = vpack.c.b16 %v5291, %v5287
      %v5600 = vpack.c.b16 %v5292, %v5288
      %v5601 = vpack.c.b16 %v5297, %v5293
      %v5602 = vpack.c.b16 %v5298, %v5294
      %v5603 = vpack.c.b16 %v5299, %v5295
      %v5604 = vpack.c.b16 %v5300, %v5296
      %v5605 = vpack.c.b16 %v5305, %v5301
      %v5606 = vpack.c.b16 %v5306, %v5302
      %v5607 = vpack.c.b16 %v5307, %v5303
      %v5608 = vpack.c.b16 %v5308, %v5304
      %v5609 = vpack.c.b16 %v5313, %v5309
      %v5610 = vpack.c.b16 %v5314, %v5310
      %v5611 = vpack.c.b16 %v5315, %v5311
      %v5612 = vpack.c.b16 %v5316, %v5312
      %v5613 = vpack.c.b16 %v5321, %v5317
      %v5614 = vpack.c.b16 %v5322, %v5318
      %v5615 = vpack.c.b16 %v5323, %v5319
      %v5616 = vpack.c.b16 %v5324, %v5320
      %v5617 = vpack.c.b16 %v5329, %v5325
      %v5618 = vpack.c.b16 %v5330, %v5326
      %v5619 = vpack.c.b16 %v5331, %v5327
      %v5620 = vpack.c.b16 %v5332, %v5328
      %v5621 = vpack.c.b16 %v5337, %v5333
      %v5622 = vpack.c.b16 %v5338, %v5334
      %v5623 = vpack.c.b16 %v5339, %v5335
      %v5624 = vpack.c.b16 %v5340, %v5336
      %v5625 = vpack.c.b16 %v5345, %v5341
      %v5626 = vpack.c.b16 %v5346, %v5342
      %v5627 = vpack.c.b16 %v5347, %v5343
      %v5628 = vpack.c.b16 %v5348, %v5344
      %v5629 = vpack.c.b16 %v5353, %v5349
      %v5630 = vpack.c.b16 %v5354, %v5350
      %v5631 = vpack.c.b16 %v5355, %v5351
      %v5632 = vpack.c.b16 %v5356, %v5352
      %v5633 = vpack.c.b16 %v5361, %v5357
      %v5634 = vpack.c.b16 %v5362, %v5358
      %v5635 = vpack.c.b16 %v5363, %v5359
      %v5636 = vpack.c.b16 %v5364, %v5360
      %v5637 = vpack.c.b16 %v5369, %v5365
      %v5638 = vpack.c.b16 %v5370, %v5366
      %v5639 = vpack.c.b16 %v5371, %v5367
      %v5640 = vpack.c.b16 %v5372, %v5368
      %v5641 = vpack.c.b16 %v5377, %v5373
      %v5642 = vpack.c.b16 %v5378, %v5374
      %v5643 = vpack.c.b16 %v5379, %v5375
      %v5644 = vpack.c.b16 %v5380, %v5376
      %v5645 = vpack.c.b16 %v5385, %v5381
      %v5646 = vpack.c.b16 %v5386, %v5382
      %v5647 = vpack.c.b16 %v5387, %v5383
      %v5648 = vpack.c.b16 %v5388, %v5384
      %v5649 = vpack.c.b16 %v5393, %v5389
      %v5650 = vpack.c.b16 %v5394, %v5390
      %v5651 = vpack.c.b16 %v5395, %v5391
      %v5652 = vpack.c.b16 %v5396, %v5392
      %5909 = vmatpush.bf16.msra.mxu0 %v5425
      %5910 = vmatpush.bf16.msra.mxu0 %v5421
      %5911 = vmatpush.bf16.msra.mxu0 %v5417
      %5912 = vmatpush.bf16.msra.mxu0 %v5413
      %5913 = vmatpush.bf16.msra.mxu0 %v5409
      %5914 = vmatpush.bf16.msra.mxu0 %v5405
      %5915 = vmatpush.bf16.msra.mxu0 %v5401
      %5916 = vmatpush.bf16.msra.mxu0 %v5397
      %5917 = vmatmul.bf16.gmra.mxu0 %v4355
      %v5918 = vpop.f32.mrf.mxu0
      %v5919 = vadd.f32 %v4621, %v5918
      %v5920 = vpop.f32.mrf.mxu0
      %v5921 = vadd.f32 %v4621, %v5920
      %5922 = vdwg.mxu0
      %5923 = vmatpush.bf16.msra.mxu0 %v5457
      %5924 = vmatpush.bf16.msra.mxu0 %v5453
      %5925 = vmatpush.bf16.msra.mxu0 %v5449
      %5926 = vmatpush.bf16.msra.mxu0 %v5445
      %5927 = vmatpush.bf16.msra.mxu0 %v5441
      %5928 = vmatpush.bf16.msra.mxu0 %v5437
      %5929 = vmatpush.bf16.msra.mxu0 %v5433
      %5930 = vmatpush.bf16.msra.mxu0 %v5429
      %5931 = vmatmul.bf16.gmra.mxu0 %v4356
      %v5932 = vpop.f32.mrf.mxu0
      %v5933 = vadd.f32 %v5919, %v5932
      %v5934 = vpop.f32.mrf.mxu0
      %v5935 = vadd.f32 %v5921, %v5934
      %5936 = vdwg.mxu0
      %5937 = vmatpush.bf16.msra.mxu0 %v5489
      %5938 = vmatpush.bf16.msra.mxu0 %v5485
      %5939 = vmatpush.bf16.msra.mxu0 %v5481
      %5940 = vmatpush.bf16.msra.mxu0 %v5477
      %5941 = vmatpush.bf16.msra.mxu0 %v5473
      %5942 = vmatpush.bf16.msra.mxu0 %v5469
      %5943 = vmatpush.bf16.msra.mxu0 %v5465
      %5944 = vmatpush.bf16.msra.mxu0 %v5461
      %5945 = vmatmul.bf16.gmra.mxu0 %v4357
      %v5946 = vpop.f32.mrf.mxu0
      %v5947 = vadd.f32 %v5933, %v5946
      %v5948 = vpop.f32.mrf.mxu0
      %v5949 = vadd.f32 %v5935, %v5948
      %5950 = vdwg.mxu0
      %5951 = vmatpush.bf16.msra.mxu0 %v5521
      %5952 = vmatpush.bf16.msra.mxu0 %v5517
      %5953 = vmatpush.bf16.msra.mxu0 %v5513
      %5954 = vmatpush.bf16.msra.mxu0 %v5509
      %5955 = vmatpush.bf16.msra.mxu0 %v5505
      %5956 = vmatpush.bf16.msra.mxu0 %v5501
      %5957 = vmatpush.bf16.msra.mxu0 %v5497
      %5958 = vmatpush.bf16.msra.mxu0 %v5493
      %5959 = vmatmul.bf16.gmra.mxu0 %v4358
      %v5960 = vpop.f32.mrf.mxu0
      %v5961 = vadd.f32 %v5947, %v5960
      %v5962 = vpop.f32.mrf.mxu0
      %v5963 = vadd.f32 %v5949, %v5962
      %5964 = vdwg.mxu0
      %5965 = vmatpush.bf16.msra.mxu0 %v5553
      %5966 = vmatpush.bf16.msra.mxu0 %v5549
      %5967 = vmatpush.bf16.msra.mxu0 %v5545
      %5968 = vmatpush.bf16.msra.mxu0 %v5541
      %5969 = vmatpush.bf16.msra.mxu0 %v5537
      %5970 = vmatpush.bf16.msra.mxu0 %v5533
      %5971 = vmatpush.bf16.msra.mxu0 %v5529
      %5972 = vmatpush.bf16.msra.mxu0 %v5525
      %5973 = vmatmul.bf16.gmra.mxu0 %v4359
      %v5974 = vpop.f32.mrf.mxu0
      %v5975 = vadd.f32 %v5961, %v5974
      %v5976 = vpop.f32.mrf.mxu0
      %v5977 = vadd.f32 %v5963, %v5976
      %5978 = vdwg.mxu0
      %5979 = vmatpush.bf16.msra.mxu0 %v5585
      %5980 = vmatpush.bf16.msra.mxu0 %v5581
      %5981 = vmatpush.bf16.msra.mxu0 %v5577
      %5982 = vmatpush.bf16.msra.mxu0 %v5573
      %5983 = vmatpush.bf16.msra.mxu0 %v5569
      %5984 = vmatpush.bf16.msra.mxu0 %v5565
      %5985 = vmatpush.bf16.msra.mxu0 %v5561
      %5986 = vmatpush.bf16.msra.mxu0 %v5557
      %5987 = vmatmul.bf16.gmra.mxu0 %v4360
      %v5988 = vpop.f32.mrf.mxu0
      %v5989 = vadd.f32 %v5975, %v5988
      %v5990 = vpop.f32.mrf.mxu0
      %v5991 = vadd.f32 %v5977, %v5990
      %5992 = vdwg.mxu0
      %5993 = vmatpush.bf16.msra.mxu0 %v5617
      %5994 = vmatpush.bf16.msra.mxu0 %v5613
      %5995 = vmatpush.bf16.msra.mxu0 %v5609
      %5996 = vmatpush.bf16.msra.mxu0 %v5605
      %5997 = vmatpush.bf16.msra.mxu0 %v5601
      %5998 = vmatpush.bf16.msra.mxu0 %v5597
      %5999 = vmatpush.bf16.msra.mxu0 %v5593
      %6000 = vmatpush.bf16.msra.mxu0 %v5589
      %6001 = vmatmul.bf16.gmra.mxu0 %v4361
      %v6002 = vpop.f32.mrf.mxu0
      %v6003 = vadd.f32 %v5989, %v6002
      %v6004 = vpop.f32.mrf.mxu0
      %v6005 = vadd.f32 %v5991, %v6004
      %6006 = vdwg.mxu0
      %6007 = vmatpush.bf16.msra.mxu0 %v5649
      %6008 = vmatpush.bf16.msra.mxu0 %v5645
      %6009 = vmatpush.bf16.msra.mxu0 %v5641
      %6010 = vmatpush.bf16.msra.mxu0 %v5637
      %6011 = vmatpush.bf16.msra.mxu0 %v5633
      %6012 = vmatpush.bf16.msra.mxu0 %v5629
      %6013 = vmatpush.bf16.msra.mxu0 %v5625
      %6014 = vmatpush.bf16.msra.mxu0 %v5621
      %6015 = vmatmul.bf16.gmra.mxu0 %v4362
      %v6016 = vpop.f32.mrf.mxu0
      %v6017 = vadd.f32 %v6003, %v6016
      %v6018 = vpop.f32.mrf.mxu0
      %v6019 = vadd.f32 %v6005, %v6018
      %6020 = vdwg.mxu0
      %6021 = vmatpush.bf16.msra.mxu0 %v5426
      %6022 = vmatpush.bf16.msra.mxu0 %v5422
      %6023 = vmatpush.bf16.msra.mxu0 %v5418
      %6024 = vmatpush.bf16.msra.mxu0 %v5414
      %6025 = vmatpush.bf16.msra.mxu0 %v5410
      %6026 = vmatpush.bf16.msra.mxu0 %v5406
      %6027 = vmatpush.bf16.msra.mxu0 %v5402
      %6028 = vmatpush.bf16.msra.mxu0 %v5398
      %6029 = vmatmul.bf16.gmra.mxu0 %v4355
      %v6030 = vpop.f32.mrf.mxu0
      %v6031 = vadd.f32 %v4622, %v6030
      %v6032 = vpop.f32.mrf.mxu0
      %v6033 = vadd.f32 %v4622, %v6032
      %6034 = vdwg.mxu0
      %6035 = vmatpush.bf16.msra.mxu0 %v5458
      %6036 = vmatpush.bf16.msra.mxu0 %v5454
      %6037 = vmatpush.bf16.msra.mxu0 %v5450
      %6038 = vmatpush.bf16.msra.mxu0 %v5446
      %6039 = vmatpush.bf16.msra.mxu0 %v5442
      %6040 = vmatpush.bf16.msra.mxu0 %v5438
      %6041 = vmatpush.bf16.msra.mxu0 %v5434
      %6042 = vmatpush.bf16.msra.mxu0 %v5430
      %6043 = vmatmul.bf16.gmra.mxu0 %v4356
      %v6044 = vpop.f32.mrf.mxu0
      %v6045 = vadd.f32 %v6031, %v6044
      %v6046 = vpop.f32.mrf.mxu0
      %v6047 = vadd.f32 %v6033, %v6046
      %6048 = vdwg.mxu0
      %6049 = vmatpush.bf16.msra.mxu0 %v5490
      %6050 = vmatpush.bf16.msra.mxu0 %v5486
      %6051 = vmatpush.bf16.msra.mxu0 %v5482
      %6052 = vmatpush.bf16.msra.mxu0 %v5478
      %6053 = vmatpush.bf16.msra.mxu0 %v5474
      %6054 = vmatpush.bf16.msra.mxu0 %v5470
      %6055 = vmatpush.bf16.msra.mxu0 %v5466
      %6056 = vmatpush.bf16.msra.mxu0 %v5462
      %6057 = vmatmul.bf16.gmra.mxu0 %v4357
      %v6058 = vpop.f32.mrf.mxu0
      %v6059 = vadd.f32 %v6045, %v6058
      %v6060 = vpop.f32.mrf.mxu0
      %v6061 = vadd.f32 %v6047, %v6060
      %6062 = vdwg.mxu0
      %6063 = vmatpush.bf16.msra.mxu0 %v5522
      %6064 = vmatpush.bf16.msra.mxu0 %v5518
      %6065 = vmatpush.bf16.msra.mxu0 %v5514
      %6066 = vmatpush.bf16.msra.mxu0 %v5510
      %6067 = vmatpush.bf16.msra.mxu0 %v5506
      %6068 = vmatpush.bf16.msra.mxu0 %v5502
      %6069 = vmatpush.bf16.msra.mxu0 %v5498
      %6070 = vmatpush.bf16.msra.mxu0 %v5494
      %6071 = vmatmul.bf16.gmra.mxu0 %v4358
      %v6072 = vpop.f32.mrf.mxu0
      %v6073 = vadd.f32 %v6059, %v6072
      %v6074 = vpop.f32.mrf.mxu0
      %v6075 = vadd.f32 %v6061, %v6074
      %6076 = vdwg.mxu0
      %6077 = vmatpush.bf16.msra.mxu0 %v5554
      %6078 = vmatpush.bf16.msra.mxu0 %v5550
      %6079 = vmatpush.bf16.msra.mxu0 %v5546
      %6080 = vmatpush.bf16.msra.mxu0 %v5542
      %6081 = vmatpush.bf16.msra.mxu0 %v5538
      %6082 = vmatpush.bf16.msra.mxu0 %v5534
      %6083 = vmatpush.bf16.msra.mxu0 %v5530
      %6084 = vmatpush.bf16.msra.mxu0 %v5526
      %6085 = vmatmul.bf16.gmra.mxu0 %v4359
      %v6086 = vpop.f32.mrf.mxu0
      %v6087 = vadd.f32 %v6073, %v6086
      %v6088 = vpop.f32.mrf.mxu0
      %v6089 = vadd.f32 %v6075, %v6088
      %6090 = vdwg.mxu0
      %6091 = vmatpush.bf16.msra.mxu0 %v5586
      %6092 = vmatpush.bf16.msra.mxu0 %v5582
      %6093 = vmatpush.bf16.msra.mxu0 %v5578
      %6094 = vmatpush.bf16.msra.mxu0 %v5574
      %6095 = vmatpush.bf16.msra.mxu0 %v5570
      %6096 = vmatpush.bf16.msra.mxu0 %v5566
      %6097 = vmatpush.bf16.msra.mxu0 %v5562
      %6098 = vmatpush.bf16.msra.mxu0 %v5558
      %6099 = vmatmul.bf16.gmra.mxu0 %v4360
      %v6100 = vpop.f32.mrf.mxu0
      %v6101 = vadd.f32 %v6087, %v6100
      %v6102 = vpop.f32.mrf.mxu0
      %v6103 = vadd.f32 %v6089, %v6102
      %6104 = vdwg.mxu0
      %6105 = vmatpush.bf16.msra.mxu0 %v5618
      %6106 = vmatpush.bf16.msra.mxu0 %v5614
      %6107 = vmatpush.bf16.msra.mxu0 %v5610
      %6108 = vmatpush.bf16.msra.mxu0 %v5606
      %6109 = vmatpush.bf16.msra.mxu0 %v5602
      %6110 = vmatpush.bf16.msra.mxu0 %v5598
      %6111 = vmatpush.bf16.msra.mxu0 %v5594
      %6112 = vmatpush.bf16.msra.mxu0 %v5590
      %6113 = vmatmul.bf16.gmra.mxu0 %v4361
      %v6114 = vpop.f32.mrf.mxu0
      %v6115 = vadd.f32 %v6101, %v6114
      %v6116 = vpop.f32.mrf.mxu0
      %v6117 = vadd.f32 %v6103, %v6116
      %6118 = vdwg.mxu0
      %6119 = vmatpush.bf16.msra.mxu0 %v5650
      %6120 = vmatpush.bf16.msra.mxu0 %v5646
      %6121 = vmatpush.bf16.msra.mxu0 %v5642
      %6122 = vmatpush.bf16.msra.mxu0 %v5638
      %6123 = vmatpush.bf16.msra.mxu0 %v5634
      %6124 = vmatpush.bf16.msra.mxu0 %v5630
      %6125 = vmatpush.bf16.msra.mxu0 %v5626
      %6126 = vmatpush.bf16.msra.mxu0 %v5622
      %6127 = vmatmul.bf16.gmra.mxu0 %v4362
      %v6128 = vpop.f32.mrf.mxu0
      %v6129 = vadd.f32 %v6115, %v6128
      %v6130 = vpop.f32.mrf.mxu0
      %v6131 = vadd.f32 %v6117, %v6130
      %6132 = vdwg.mxu0
      %6133 = vmatpush.bf16.msra.mxu0 %v5427
      %6134 = vmatpush.bf16.msra.mxu0 %v5423
      %6135 = vmatpush.bf16.msra.mxu0 %v5419
      %6136 = vmatpush.bf16.msra.mxu0 %v5415
      %6137 = vmatpush.bf16.msra.mxu0 %v5411
      %6138 = vmatpush.bf16.msra.mxu0 %v5407
      %6139 = vmatpush.bf16.msra.mxu0 %v5403
      %6140 = vmatpush.bf16.msra.mxu0 %v5399
      %6141 = vmatmul.bf16.gmra.mxu0 %v4355
      %v6142 = vpop.f32.mrf.mxu0
      %v6143 = vadd.f32 %v4623, %v6142
      %v6144 = vpop.f32.mrf.mxu0
      %v6145 = vadd.f32 %v4623, %v6144
      %6146 = vdwg.mxu0
      %6147 = vmatpush.bf16.msra.mxu0 %v5459
      %6148 = vmatpush.bf16.msra.mxu0 %v5455
      %6149 = vmatpush.bf16.msra.mxu0 %v5451
      %6150 = vmatpush.bf16.msra.mxu0 %v5447
      %6151 = vmatpush.bf16.msra.mxu0 %v5443
      %6152 = vmatpush.bf16.msra.mxu0 %v5439
      %6153 = vmatpush.bf16.msra.mxu0 %v5435
      %6154 = vmatpush.bf16.msra.mxu0 %v5431
      %6155 = vmatmul.bf16.gmra.mxu0 %v4356
      %v6156 = vpop.f32.mrf.mxu0
      %v6157 = vadd.f32 %v6143, %v6156
      %v6158 = vpop.f32.mrf.mxu0
      %v6159 = vadd.f32 %v6145, %v6158
      %6160 = vdwg.mxu0
      %6161 = vmatpush.bf16.msra.mxu0 %v5491
      %6162 = vmatpush.bf16.msra.mxu0 %v5487
      %6163 = vmatpush.bf16.msra.mxu0 %v5483
      %6164 = vmatpush.bf16.msra.mxu0 %v5479
      %6165 = vmatpush.bf16.msra.mxu0 %v5475
      %6166 = vmatpush.bf16.msra.mxu0 %v5471
      %6167 = vmatpush.bf16.msra.mxu0 %v5467
      %6168 = vmatpush.bf16.msra.mxu0 %v5463
      %6169 = vmatmul.bf16.gmra.mxu0 %v4357
      %v6170 = vpop.f32.mrf.mxu0
      %v6171 = vadd.f32 %v6157, %v6170
      %v6172 = vpop.f32.mrf.mxu0
      %v6173 = vadd.f32 %v6159, %v6172
      %6174 = vdwg.mxu0
      %6175 = vmatpush.bf16.msra.mxu0 %v5523
      %6176 = vmatpush.bf16.msra.mxu0 %v5519
      %6177 = vmatpush.bf16.msra.mxu0 %v5515
      %6178 = vmatpush.bf16.msra.mxu0 %v5511
      %6179 = vmatpush.bf16.msra.mxu0 %v5507
      %6180 = vmatpush.bf16.msra.mxu0 %v5503
      %6181 = vmatpush.bf16.msra.mxu0 %v5499
      %6182 = vmatpush.bf16.msra.mxu0 %v5495
      %6183 = vmatmul.bf16.gmra.mxu0 %v4358
      %v6184 = vpop.f32.mrf.mxu0
      %v6185 = vadd.f32 %v6171, %v6184
      %v6186 = vpop.f32.mrf.mxu0
      %v6187 = vadd.f32 %v6173, %v6186
      %6188 = vdwg.mxu0
      %6189 = vmatpush.bf16.msra.mxu0 %v5555
      %6190 = vmatpush.bf16.msra.mxu0 %v5551
      %6191 = vmatpush.bf16.msra.mxu0 %v5547
      %6192 = vmatpush.bf16.msra.mxu0 %v5543
      %6193 = vmatpush.bf16.msra.mxu0 %v5539
      %6194 = vmatpush.bf16.msra.mxu0 %v5535
      %6195 = vmatpush.bf16.msra.mxu0 %v5531
      %6196 = vmatpush.bf16.msra.mxu0 %v5527
      %6197 = vmatmul.bf16.gmra.mxu0 %v4359
      %v6198 = vpop.f32.mrf.mxu0
      %v6199 = vadd.f32 %v6185, %v6198
      %v6200 = vpop.f32.mrf.mxu0
      %v6201 = vadd.f32 %v6187, %v6200
      %6202 = vdwg.mxu0
      %6203 = vmatpush.bf16.msra.mxu0 %v5587
      %6204 = vmatpush.bf16.msra.mxu0 %v5583
      %6205 = vmatpush.bf16.msra.mxu0 %v5579
      %6206 = vmatpush.bf16.msra.mxu0 %v5575
      %6207 = vmatpush.bf16.msra.mxu0 %v5571
      %6208 = vmatpush.bf16.msra.mxu0 %v5567
      %6209 = vmatpush.bf16.msra.mxu0 %v5563
      %6210 = vmatpush.bf16.msra.mxu0 %v5559
      %6211 = vmatmul.bf16.gmra.mxu0 %v4360
      %v6212 = vpop.f32.mrf.mxu0
      %v6213 = vadd.f32 %v6199, %v6212
      %v6214 = vpop.f32.mrf.mxu0
      %v6215 = vadd.f32 %v6201, %v6214
      %6216 = vdwg.mxu0
      %6217 = vmatpush.bf16.msra.mxu0 %v5619
      %6218 = vmatpush.bf16.msra.mxu0 %v5615
      %6219 = vmatpush.bf16.msra.mxu0 %v5611
      %6220 = vmatpush.bf16.msra.mxu0 %v5607
      %6221 = vmatpush.bf16.msra.mxu0 %v5603
      %6222 = vmatpush.bf16.msra.mxu0 %v5599
      %6223 = vmatpush.bf16.msra.mxu0 %v5595
      %6224 = vmatpush.bf16.msra.mxu0 %v5591
      %6225 = vmatmul.bf16.gmra.mxu0 %v4361
      %v6226 = vpop.f32.mrf.mxu0
      %v6227 = vadd.f32 %v6213, %v6226
      %v6228 = vpop.f32.mrf.mxu0
      %v6229 = vadd.f32 %v6215, %v6228
      %6230 = vdwg.mxu0
      %6231 = vmatpush.bf16.msra.mxu0 %v5651
      %6232 = vmatpush.bf16.msra.mxu0 %v5647
      %6233 = vmatpush.bf16.msra.mxu0 %v5643
      %6234 = vmatpush.bf16.msra.mxu0 %v5639
      %6235 = vmatpush.bf16.msra.mxu0 %v5635
      %6236 = vmatpush.bf16.msra.mxu0 %v5631
      %6237 = vmatpush.bf16.msra.mxu0 %v5627
      %6238 = vmatpush.bf16.msra.mxu0 %v5623
      %6239 = vmatmul.bf16.gmra.mxu0 %v4362
      %v6240 = vpop.f32.mrf.mxu0
      %v6241 = vadd.f32 %v6227, %v6240
      %v6242 = vpop.f32.mrf.mxu0
      %v6243 = vadd.f32 %v6229, %v6242
      %6244 = vdwg.mxu0
      %6245 = vmatpush.bf16.msra.mxu0 %v5428
      %6246 = vmatpush.bf16.msra.mxu0 %v5424
      %6247 = vmatpush.bf16.msra.mxu0 %v5420
      %6248 = vmatpush.bf16.msra.mxu0 %v5416
      %6249 = vmatpush.bf16.msra.mxu0 %v5412
      %6250 = vmatpush.bf16.msra.mxu0 %v5408
      %6251 = vmatpush.bf16.msra.mxu0 %v5404
      %6252 = vmatpush.bf16.msra.mxu0 %v5400
      %6253 = vmatmul.bf16.gmra.mxu0 %v4355
      %v6254 = vpop.f32.mrf.mxu0
      %v6255 = vadd.f32 %v4624, %v6254
      %v6256 = vpop.f32.mrf.mxu0
      %v6257 = vadd.f32 %v4624, %v6256
      %6258 = vdwg.mxu0
      %6259 = vmatpush.bf16.msra.mxu0 %v5460
      %6260 = vmatpush.bf16.msra.mxu0 %v5456
      %6261 = vmatpush.bf16.msra.mxu0 %v5452
      %6262 = vmatpush.bf16.msra.mxu0 %v5448
      %6263 = vmatpush.bf16.msra.mxu0 %v5444
      %6264 = vmatpush.bf16.msra.mxu0 %v5440
      %6265 = vmatpush.bf16.msra.mxu0 %v5436
      %6266 = vmatpush.bf16.msra.mxu0 %v5432
      %6267 = vmatmul.bf16.gmra.mxu0 %v4356
      %v6268 = vpop.f32.mrf.mxu0
      %v6269 = vadd.f32 %v6255, %v6268
      %v6270 = vpop.f32.mrf.mxu0
      %v6271 = vadd.f32 %v6257, %v6270
      %6272 = vdwg.mxu0
      %6273 = vmatpush.bf16.msra.mxu0 %v5492
      %6274 = vmatpush.bf16.msra.mxu0 %v5488
      %6275 = vmatpush.bf16.msra.mxu0 %v5484
      %6276 = vmatpush.bf16.msra.mxu0 %v5480
      %6277 = vmatpush.bf16.msra.mxu0 %v5476
      %6278 = vmatpush.bf16.msra.mxu0 %v5472
      %6279 = vmatpush.bf16.msra.mxu0 %v5468
      %6280 = vmatpush.bf16.msra.mxu0 %v5464
      %6281 = vmatmul.bf16.gmra.mxu0 %v4357
      %v6282 = vpop.f32.mrf.mxu0
      %v6283 = vadd.f32 %v6269, %v6282
      %v6284 = vpop.f32.mrf.mxu0
      %v6285 = vadd.f32 %v6271, %v6284
      %6286 = vdwg.mxu0
      %6287 = vmatpush.bf16.msra.mxu0 %v5524
      %6288 = vmatpush.bf16.msra.mxu0 %v5520
      %6289 = vmatpush.bf16.msra.mxu0 %v5516
      %6290 = vmatpush.bf16.msra.mxu0 %v5512
      %6291 = vmatpush.bf16.msra.mxu0 %v5508
      %6292 = vmatpush.bf16.msra.mxu0 %v5504
      %6293 = vmatpush.bf16.msra.mxu0 %v5500
      %6294 = vmatpush.bf16.msra.mxu0 %v5496
      %6295 = vmatmul.bf16.gmra.mxu0 %v4358
      %v6296 = vpop.f32.mrf.mxu0
      %v6297 = vadd.f32 %v6283, %v6296
      %v6298 = vpop.f32.mrf.mxu0
      %v6299 = vadd.f32 %v6285, %v6298
      %6300 = vdwg.mxu0
      %6301 = vmatpush.bf16.msra.mxu0 %v5556
      %6302 = vmatpush.bf16.msra.mxu0 %v5552
      %6303 = vmatpush.bf16.msra.mxu0 %v5548
      %6304 = vmatpush.bf16.msra.mxu0 %v5544
      %6305 = vmatpush.bf16.msra.mxu0 %v5540
      %6306 = vmatpush.bf16.msra.mxu0 %v5536
      %6307 = vmatpush.bf16.msra.mxu0 %v5532
      %6308 = vmatpush.bf16.msra.mxu0 %v5528
      %6309 = vmatmul.bf16.gmra.mxu0 %v4359
      %v6310 = vpop.f32.mrf.mxu0
      %v6311 = vadd.f32 %v6297, %v6310
      %v6312 = vpop.f32.mrf.mxu0
      %v6313 = vadd.f32 %v6299, %v6312
      %6314 = vdwg.mxu0
      %6315 = vmatpush.bf16.msra.mxu0 %v5588
      %6316 = vmatpush.bf16.msra.mxu0 %v5584
      %6317 = vmatpush.bf16.msra.mxu0 %v5580
      %6318 = vmatpush.bf16.msra.mxu0 %v5576
      %6319 = vmatpush.bf16.msra.mxu0 %v5572
      %6320 = vmatpush.bf16.msra.mxu0 %v5568
      %6321 = vmatpush.bf16.msra.mxu0 %v5564
      %6322 = vmatpush.bf16.msra.mxu0 %v5560
      %6323 = vmatmul.bf16.gmra.mxu0 %v4360
      %v6324 = vpop.f32.mrf.mxu0
      %v6325 = vadd.f32 %v6311, %v6324
      %v6326 = vpop.f32.mrf.mxu0
      %v6327 = vadd.f32 %v6313, %v6326
      %6328 = vdwg.mxu0
      %6329 = vmatpush.bf16.msra.mxu0 %v5620
      %6330 = vmatpush.bf16.msra.mxu0 %v5616
      %6331 = vmatpush.bf16.msra.mxu0 %v5612
      %6332 = vmatpush.bf16.msra.mxu0 %v5608
      %6333 = vmatpush.bf16.msra.mxu0 %v5604
      %6334 = vmatpush.bf16.msra.mxu0 %v5600
      %6335 = vmatpush.bf16.msra.mxu0 %v5596
      %6336 = vmatpush.bf16.msra.mxu0 %v5592
      %6337 = vmatmul.bf16.gmra.mxu0 %v4361
      %v6338 = vpop.f32.mrf.mxu0
      %v6339 = vadd.f32 %v6325, %v6338
      %v6340 = vpop.f32.mrf.mxu0
      %v6341 = vadd.f32 %v6327, %v6340
      %6342 = vdwg.mxu0
      %6343 = vmatpush.bf16.msra.mxu0 %v5652
      %6344 = vmatpush.bf16.msra.mxu0 %v5648
      %6345 = vmatpush.bf16.msra.mxu0 %v5644
      %6346 = vmatpush.bf16.msra.mxu0 %v5640
      %6347 = vmatpush.bf16.msra.mxu0 %v5636
      %6348 = vmatpush.bf16.msra.mxu0 %v5632
      %6349 = vmatpush.bf16.msra.mxu0 %v5628
      %6350 = vmatpush.bf16.msra.mxu0 %v5624
      %6351 = vmatmul.bf16.gmra.mxu0 %v4362
      %v6352 = vpop.f32.mrf.mxu0
      %v6353 = vadd.f32 %v6339, %v6352
      %v6354 = vpop.f32.mrf.mxu0
      %v6355 = vadd.f32 %v6341, %v6354
      %6356 = vdwg.mxu0
      %vm6357 = vcmp.gt.f32.partialorder %v6017, 0.0
      %vm6358 = vcmp.gt.f32.partialorder %v6129, 0.0
      %vm6359 = vcmp.gt.f32.partialorder %v6241, 0.0
      %vm6360 = vcmp.gt.f32.partialorder %v6353, 0.0
      %vm6361 = vcmp.gt.f32.partialorder %v6019, 0.0
      %vm6362 = vcmp.gt.f32.partialorder %v6131, 0.0
      %vm6363 = vcmp.gt.f32.partialorder %v6243, 0.0
      %vm6364 = vcmp.gt.f32.partialorder %v6355, 0.0
      %v6365 = vmul.f32 %v6017, 0.2
      %v6366 = vmul.f32 %v6129, 0.2
      %v6367 = vmul.f32 %v6241, 0.2
      %v6368 = vmul.f32 %v6353, 0.2
      %v6369 = vmul.f32 %v6019, 0.2
      %v6370 = vmul.f32 %v6131, 0.2
      %v6371 = vmul.f32 %v6243, 0.2
      %v6372 = vmul.f32 %v6355, 0.2
      %v6373 = vsel %vm6357, %v6017, %v6365
      %v6374 = vsel %vm6358, %v6129, %v6366
      %v6375 = vsel %vm6359, %v6241, %v6367
      %v6376 = vsel %vm6360, %v6353, %v6368
      %v6377 = vsel %vm6361, %v6019, %v6369
      %v6378 = vsel %vm6362, %v6131, %v6370
      %v6379 = vsel %vm6363, %v6243, %v6371
      %v6380 = vsel %vm6364, %v6355, %v6372
      %v6381 = vpack.c.bf16 %v6377, %v6373
      %v6382 = vpack.c.bf16 %v6378, %v6374
      %v6383 = vpack.c.bf16 %v6379, %v6375
      %v6384 = vpack.c.bf16 %v6380, %v6376
      %v6385 = vld [vmem:[#allocation11] sm:$0xff]
      %v6386 = vld [vmem:[#allocation11 + $0x8] sm:$0xff]
      %v6387 = vld [vmem:[#allocation11 + $0x10] sm:$0xff]
      %v6388 = vld [vmem:[#allocation11 + $0x18] sm:$0xff]
      %v6389 = vld [vmem:[#allocation11 + $0x20] sm:$0xff]
      %v6390 = vld [vmem:[#allocation11 + $0x28] sm:$0xff]
      %v6391 = vld [vmem:[#allocation11 + $0x30] sm:$0xff]
      %v6392 = vld [vmem:[#allocation11 + $0x38] sm:$0xff]
      %v6393 = vld [vmem:[#allocation11 + $0x40] sm:$0xff]
      %v6394 = vld [vmem:[#allocation11 + $0x48] sm:$0xff]
      %v6395 = vld [vmem:[#allocation11 + $0x50] sm:$0xff]
      %v6396 = vld [vmem:[#allocation11 + $0x58] sm:$0xff]
      %v6397 = vld [vmem:[#allocation11 + $0x60] sm:$0xff]
      %v6398 = vld [vmem:[#allocation11 + $0x68] sm:$0xff]
      %v6399 = vld [vmem:[#allocation11 + $0x70] sm:$0xff]
      %v6400 = vld [vmem:[#allocation11 + $0x78] sm:$0xff]
      %v6401 = vld [vmem:[#allocation11 + $0x80] sm:$0xff]
      %v6402 = vld [vmem:[#allocation11 + $0x88] sm:$0xff]
      %v6403 = vld [vmem:[#allocation11 + $0x90] sm:$0xff]
      %v6404 = vld [vmem:[#allocation11 + $0x98] sm:$0xff]
      %v6405 = vld [vmem:[#allocation11 + $0xa0] sm:$0xff]
      %v6406 = vld [vmem:[#allocation11 + $0xa8] sm:$0xff]
      %v6407 = vld [vmem:[#allocation11 + $0xb0] sm:$0xff]
      %v6408 = vld [vmem:[#allocation11 + $0xb8] sm:$0xff]
      %v6409 = vld [vmem:[#allocation11 + $0xc0] sm:$0xff]
      %v6410 = vld [vmem:[#allocation11 + $0xc8] sm:$0xff]
      %v6411 = vld [vmem:[#allocation11 + $0xd0] sm:$0xff]
      %v6412 = vld [vmem:[#allocation11 + $0xd8] sm:$0xff]
      %v6413 = vld [vmem:[#allocation11 + $0xe0] sm:$0xff]
      %v6414 = vld [vmem:[#allocation11 + $0xe8] sm:$0xff]
      %v6415 = vld [vmem:[#allocation11 + $0xf0] sm:$0xff]
      %v6416 = vld [vmem:[#allocation11 + $0xf8] sm:$0xff]
      %v6417 = vld [vmem:[#allocation11 + $0x100] sm:$0xff]
      %v6418 = vld [vmem:[#allocation11 + $0x108] sm:$0xff]
      %v6419 = vld [vmem:[#allocation11 + $0x110] sm:$0xff]
      %v6420 = vld [vmem:[#allocation11 + $0x118] sm:$0xff]
      %v6421 = vld [vmem:[#allocation11 + $0x120] sm:$0xff]
      %v6422 = vld [vmem:[#allocation11 + $0x128] sm:$0xff]
      %v6423 = vld [vmem:[#allocation11 + $0x130] sm:$0xff]
      %v6424 = vld [vmem:[#allocation11 + $0x138] sm:$0xff]
      %v6425 = vld [vmem:[#allocation11 + $0x140] sm:$0xff]
      %v6426 = vld [vmem:[#allocation11 + $0x148] sm:$0xff]
      %v6427 = vld [vmem:[#allocation11 + $0x150] sm:$0xff]
      %v6428 = vld [vmem:[#allocation11 + $0x158] sm:$0xff]
      %v6429 = vld [vmem:[#allocation11 + $0x160] sm:$0xff]
      %v6430 = vld [vmem:[#allocation11 + $0x168] sm:$0xff]
      %v6431 = vld [vmem:[#allocation11 + $0x170] sm:$0xff]
      %v6432 = vld [vmem:[#allocation11 + $0x178] sm:$0xff]
      %v6433 = vld [vmem:[#allocation11 + $0x180] sm:$0xff]
      %v6434 = vld [vmem:[#allocation11 + $0x188] sm:$0xff]
      %v6435 = vld [vmem:[#allocation11 + $0x190] sm:$0xff]
      %v6436 = vld [vmem:[#allocation11 + $0x198] sm:$0xff]
      %v6437 = vld [vmem:[#allocation11 + $0x1a0] sm:$0xff]
      %v6438 = vld [vmem:[#allocation11 + $0x1a8] sm:$0xff]
      %v6439 = vld [vmem:[#allocation11 + $0x1b0] sm:$0xff]
      %v6440 = vld [vmem:[#allocation11 + $0x1b8] sm:$0xff]
      %v6441 = vld [vmem:[#allocation11 + $0x1c0] sm:$0xff]
      %v6442 = vld [vmem:[#allocation11 + $0x1c8] sm:$0xff]
      %v6443 = vld [vmem:[#allocation11 + $0x1d0] sm:$0xff]
      %v6444 = vld [vmem:[#allocation11 + $0x1d8] sm:$0xff]
      %v6445 = vld [vmem:[#allocation11 + $0x1e0] sm:$0xff]
      %v6446 = vld [vmem:[#allocation11 + $0x1e8] sm:$0xff]
      %v6447 = vld [vmem:[#allocation11 + $0x1f0] sm:$0xff]
      %v6448 = vld [vmem:[#allocation11 + $0x1f8] sm:$0xff]
      %v6449 = vld [vmem:[#allocation12] sm:$0x3]
      %v6451 = vperm.slane %v6449, 0
      %v6452 = vperm.slane %v6449, 1
      %v6519 = vunpack.c.l.b16 %v6385
      %v6520 = vunpack.c.h.b16 %v6385
      %v6521 = vunpack.c.l.b16 %v6386
      %v6522 = vunpack.c.h.b16 %v6386
      %v6523 = vunpack.c.l.b16 %v6387
      %v6524 = vunpack.c.h.b16 %v6387
      %v6525 = vunpack.c.l.b16 %v6388
      %v6526 = vunpack.c.h.b16 %v6388
      %v6527 = vunpack.c.l.b16 %v6389
      %v6528 = vunpack.c.h.b16 %v6389
      %v6529 = vunpack.c.l.b16 %v6390
      %v6530 = vunpack.c.h.b16 %v6390
      %v6531 = vunpack.c.l.b16 %v6391
      %v6532 = vunpack.c.h.b16 %v6391
      %v6533 = vunpack.c.l.b16 %v6392
      %v6534 = vunpack.c.h.b16 %v6392
      %v6535 = vunpack.c.l.b16 %v6393
      %v6536 = vunpack.c.h.b16 %v6393
      %v6537 = vunpack.c.l.b16 %v6394
      %v6538 = vunpack.c.h.b16 %v6394
      %v6539 = vunpack.c.l.b16 %v6395
      %v6540 = vunpack.c.h.b16 %v6395
      %v6541 = vunpack.c.l.b16 %v6396
      %v6542 = vunpack.c.h.b16 %v6396
      %v6543 = vunpack.c.l.b16 %v6397
      %v6544 = vunpack.c.h.b16 %v6397
      %v6545 = vunpack.c.l.b16 %v6398
      %v6546 = vunpack.c.h.b16 %v6398
      %v6547 = vunpack.c.l.b16 %v6399
      %v6548 = vunpack.c.h.b16 %v6399
      %v6549 = vunpack.c.l.b16 %v6400
      %v6550 = vunpack.c.h.b16 %v6400
      %v6551 = vunpack.c.l.b16 %v6401
      %v6552 = vunpack.c.h.b16 %v6401
      %v6553 = vunpack.c.l.b16 %v6402
      %v6554 = vunpack.c.h.b16 %v6402
      %v6555 = vunpack.c.l.b16 %v6403
      %v6556 = vunpack.c.h.b16 %v6403
      %v6557 = vunpack.c.l.b16 %v6404
      %v6558 = vunpack.c.h.b16 %v6404
      %v6559 = vunpack.c.l.b16 %v6405
      %v6560 = vunpack.c.h.b16 %v6405
      %v6561 = vunpack.c.l.b16 %v6406
      %v6562 = vunpack.c.h.b16 %v6406
      %v6563 = vunpack.c.l.b16 %v6407
      %v6564 = vunpack.c.h.b16 %v6407
      %v6565 = vunpack.c.l.b16 %v6408
      %v6566 = vunpack.c.h.b16 %v6408
      %v6567 = vunpack.c.l.b16 %v6409
      %v6568 = vunpack.c.h.b16 %v6409
      %v6569 = vunpack.c.l.b16 %v6410
      %v6570 = vunpack.c.h.b16 %v6410
      %v6571 = vunpack.c.l.b16 %v6411
      %v6572 = vunpack.c.h.b16 %v6411
      %v6573 = vunpack.c.l.b16 %v6412
      %v6574 = vunpack.c.h.b16 %v6412
      %v6575 = vunpack.c.l.b16 %v6413
      %v6576 = vunpack.c.h.b16 %v6413
      %v6577 = vunpack.c.l.b16 %v6414
      %v6578 = vunpack.c.h.b16 %v6414
      %v6579 = vunpack.c.l.b16 %v6415
      %v6580 = vunpack.c.h.b16 %v6415
      %v6581 = vunpack.c.l.b16 %v6416
      %v6582 = vunpack.c.h.b16 %v6416
      %v6583 = vunpack.c.l.b16 %v6417
      %v6584 = vunpack.c.h.b16 %v6417
      %v6585 = vunpack.c.l.b16 %v6418
      %v6586 = vunpack.c.h.b16 %v6418
      %v6587 = vunpack.c.l.b16 %v6419
      %v6588 = vunpack.c.h.b16 %v6419
      %v6589 = vunpack.c.l.b16 %v6420
      %v6590 = vunpack.c.h.b16 %v6420
      %v6591 = vunpack.c.l.b16 %v6421
      %v6592 = vunpack.c.h.b16 %v6421
      %v6593 = vunpack.c.l.b16 %v6422
      %v6594 = vunpack.c.h.b16 %v6422
      %v6595 = vunpack.c.l.b16 %v6423
      %v6596 = vunpack.c.h.b16 %v6423
      %v6597 = vunpack.c.l.b16 %v6424
      %v6598 = vunpack.c.h.b16 %v6424
      %v6599 = vunpack.c.l.b16 %v6425
      %v6600 = vunpack.c.h.b16 %v6425
      %v6601 = vunpack.c.l.b16 %v6426
      %v6602 = vunpack.c.h.b16 %v6426
      %v6603 = vunpack.c.l.b16 %v6427
      %v6604 = vunpack.c.h.b16 %v6427
      %v6605 = vunpack.c.l.b16 %v6428
      %v6606 = vunpack.c.h.b16 %v6428
      %v6607 = vunpack.c.l.b16 %v6429
      %v6608 = vunpack.c.h.b16 %v6429
      %v6609 = vunpack.c.l.b16 %v6430
      %v6610 = vunpack.c.h.b16 %v6430
      %v6611 = vunpack.c.l.b16 %v6431
      %v6612 = vunpack.c.h.b16 %v6431
      %v6613 = vunpack.c.l.b16 %v6432
      %v6614 = vunpack.c.h.b16 %v6432
      %v6615 = vunpack.c.l.b16 %v6433
      %v6616 = vunpack.c.h.b16 %v6433
      %v6617 = vunpack.c.l.b16 %v6434
      %v6618 = vunpack.c.h.b16 %v6434
      %v6619 = vunpack.c.l.b16 %v6435
      %v6620 = vunpack.c.h.b16 %v6435
      %v6621 = vunpack.c.l.b16 %v6436
      %v6622 = vunpack.c.h.b16 %v6436
      %v6623 = vunpack.c.l.b16 %v6437
      %v6624 = vunpack.c.h.b16 %v6437
      %v6625 = vunpack.c.l.b16 %v6438
      %v6626 = vunpack.c.h.b16 %v6438
      %v6627 = vunpack.c.l.b16 %v6439
      %v6628 = vunpack.c.h.b16 %v6439
      %v6629 = vunpack.c.l.b16 %v6440
      %v6630 = vunpack.c.h.b16 %v6440
      %v6631 = vunpack.c.l.b16 %v6441
      %v6632 = vunpack.c.h.b16 %v6441
      %v6633 = vunpack.c.l.b16 %v6442
      %v6634 = vunpack.c.h.b16 %v6442
      %v6635 = vunpack.c.l.b16 %v6443
      %v6636 = vunpack.c.h.b16 %v6443
      %v6637 = vunpack.c.l.b16 %v6444
      %v6638 = vunpack.c.h.b16 %v6444
      %v6639 = vunpack.c.l.b16 %v6445
      %v6640 = vunpack.c.h.b16 %v6445
      %v6641 = vunpack.c.l.b16 %v6446
      %v6642 = vunpack.c.h.b16 %v6446
      %v6643 = vunpack.c.l.b16 %v6447
      %v6644 = vunpack.c.h.b16 %v6447
      %v6645 = vunpack.c.l.b16 %v6448
      %v6646 = vunpack.c.h.b16 %v6448
      %v6647 = vpack.c.b16 %v6521, %v6519
      %v6648 = vpack.c.b16 %v6522, %v6520
      %v6649 = vpack.c.b16 %v6525, %v6523
      %v6650 = vpack.c.b16 %v6526, %v6524
      %v6651 = vpack.c.b16 %v6529, %v6527
      %v6652 = vpack.c.b16 %v6530, %v6528
      %v6653 = vpack.c.b16 %v6533, %v6531
      %v6654 = vpack.c.b16 %v6534, %v6532
      %v6655 = vpack.c.b16 %v6537, %v6535
      %v6656 = vpack.c.b16 %v6538, %v6536
      %v6657 = vpack.c.b16 %v6541, %v6539
      %v6658 = vpack.c.b16 %v6542, %v6540
      %v6659 = vpack.c.b16 %v6545, %v6543
      %v6660 = vpack.c.b16 %v6546, %v6544
      %v6661 = vpack.c.b16 %v6549, %v6547
      %v6662 = vpack.c.b16 %v6550, %v6548
      %v6663 = vpack.c.b16 %v6553, %v6551
      %v6664 = vpack.c.b16 %v6554, %v6552
      %v6665 = vpack.c.b16 %v6557, %v6555
      %v6666 = vpack.c.b16 %v6558, %v6556
      %v6667 = vpack.c.b16 %v6561, %v6559
      %v6668 = vpack.c.b16 %v6562, %v6560
      %v6669 = vpack.c.b16 %v6565, %v6563
      %v6670 = vpack.c.b16 %v6566, %v6564
      %v6671 = vpack.c.b16 %v6569, %v6567
      %v6672 = vpack.c.b16 %v6570, %v6568
      %v6673 = vpack.c.b16 %v6573, %v6571
      %v6674 = vpack.c.b16 %v6574, %v6572
      %v6675 = vpack.c.b16 %v6577, %v6575
      %v6676 = vpack.c.b16 %v6578, %v6576
      %v6677 = vpack.c.b16 %v6581, %v6579
      %v6678 = vpack.c.b16 %v6582, %v6580
      %v6679 = vpack.c.b16 %v6585, %v6583
      %v6680 = vpack.c.b16 %v6586, %v6584
      %v6681 = vpack.c.b16 %v6589, %v6587
      %v6682 = vpack.c.b16 %v6590, %v6588
      %v6683 = vpack.c.b16 %v6593, %v6591
      %v6684 = vpack.c.b16 %v6594, %v6592
      %v6685 = vpack.c.b16 %v6597, %v6595
      %v6686 = vpack.c.b16 %v6598, %v6596
      %v6687 = vpack.c.b16 %v6601, %v6599
      %v6688 = vpack.c.b16 %v6602, %v6600
      %v6689 = vpack.c.b16 %v6605, %v6603
      %v6690 = vpack.c.b16 %v6606, %v6604
      %v6691 = vpack.c.b16 %v6609, %v6607
      %v6692 = vpack.c.b16 %v6610, %v6608
      %v6693 = vpack.c.b16 %v6613, %v6611
      %v6694 = vpack.c.b16 %v6614, %v6612
      %v6695 = vpack.c.b16 %v6617, %v6615
      %v6696 = vpack.c.b16 %v6618, %v6616
      %v6697 = vpack.c.b16 %v6621, %v6619
      %v6698 = vpack.c.b16 %v6622, %v6620
      %v6699 = vpack.c.b16 %v6625, %v6623
      %v6700 = vpack.c.b16 %v6626, %v6624
      %v6701 = vpack.c.b16 %v6629, %v6627
      %v6702 = vpack.c.b16 %v6630, %v6628
      %v6703 = vpack.c.b16 %v6633, %v6631
      %v6704 = vpack.c.b16 %v6634, %v6632
      %v6705 = vpack.c.b16 %v6637, %v6635
      %v6706 = vpack.c.b16 %v6638, %v6636
      %v6707 = vpack.c.b16 %v6641, %v6639
      %v6708 = vpack.c.b16 %v6642, %v6640
      %v6709 = vpack.c.b16 %v6645, %v6643
      %v6710 = vpack.c.b16 %v6646, %v6644
      %6775 = vmatpush.bf16.msra.mxu0 %v6661
      %6776 = vmatpush.bf16.msra.mxu0 %v6659
      %6777 = vmatpush.bf16.msra.mxu0 %v6657
      %6778 = vmatpush.bf16.msra.mxu0 %v6655
      %6779 = vmatpush.bf16.msra.mxu0 %v6653
      %6780 = vmatpush.bf16.msra.mxu0 %v6651
      %6781 = vmatpush.bf16.msra.mxu0 %v6649
      %6782 = vmatpush.bf16.msra.mxu0 %v6647
      %6783 = vmatmul.bf16.gmra.mxu0 %v6381
      %v6784 = vpop.f32.mrf.mxu0
      %v6785 = vadd.f32 %v6451, %v6784
      %v6786 = vpop.f32.mrf.mxu0
      %v6787 = vadd.f32 %v6451, %v6786
      %6788 = vdwg.mxu0
      %6789 = vmatpush.bf16.msra.mxu0 %v6677
      %6790 = vmatpush.bf16.msra.mxu0 %v6675
      %6791 = vmatpush.bf16.msra.mxu0 %v6673
      %6792 = vmatpush.bf16.msra.mxu0 %v6671
      %6793 = vmatpush.bf16.msra.mxu0 %v6669
      %6794 = vmatpush.bf16.msra.mxu0 %v6667
      %6795 = vmatpush.bf16.msra.mxu0 %v6665
      %6796 = vmatpush.bf16.msra.mxu0 %v6663
      %6797 = vmatmul.bf16.gmra.mxu0 %v6382
      %v6798 = vpop.f32.mrf.mxu0
      %v6799 = vadd.f32 %v6785, %v6798
      %v6800 = vpop.f32.mrf.mxu0
      %v6801 = vadd.f32 %v6787, %v6800
      %6802 = vdwg.mxu0
      %6803 = vmatpush.bf16.msra.mxu0 %v6693
      %6804 = vmatpush.bf16.msra.mxu0 %v6691
      %6805 = vmatpush.bf16.msra.mxu0 %v6689
      %6806 = vmatpush.bf16.msra.mxu0 %v6687
      %6807 = vmatpush.bf16.msra.mxu0 %v6685
      %6808 = vmatpush.bf16.msra.mxu0 %v6683
      %6809 = vmatpush.bf16.msra.mxu0 %v6681
      %6810 = vmatpush.bf16.msra.mxu0 %v6679
      %6811 = vmatmul.bf16.gmra.mxu0 %v6383
      %v6812 = vpop.f32.mrf.mxu0
      %v6813 = vadd.f32 %v6799, %v6812
      %v6814 = vpop.f32.mrf.mxu0
      %v6815 = vadd.f32 %v6801, %v6814
      %6816 = vdwg.mxu0
      %6817 = vmatpush.bf16.msra.mxu0 %v6709
      %6818 = vmatpush.bf16.msra.mxu0 %v6707
      %6819 = vmatpush.bf16.msra.mxu0 %v6705
      %6820 = vmatpush.bf16.msra.mxu0 %v6703
      %6821 = vmatpush.bf16.msra.mxu0 %v6701
      %6822 = vmatpush.bf16.msra.mxu0 %v6699
      %6823 = vmatpush.bf16.msra.mxu0 %v6697
      %6824 = vmatpush.bf16.msra.mxu0 %v6695
      %6825 = vmatmul.bf16.gmra.mxu0 %v6384
      %v6826 = vpop.f32.mrf.mxu0
      %v6827 = vadd.f32 %v6813, %v6826
      %v6828 = vpop.f32.mrf.mxu0
      %v6829 = vadd.f32 %v6815, %v6828
      %6830 = vdwg.mxu0
      %6831 = vmatpush.bf16.msra.mxu0 %v6662
      %6832 = vmatpush.bf16.msra.mxu0 %v6660
      %6833 = vmatpush.bf16.msra.mxu0 %v6658
      %6834 = vmatpush.bf16.msra.mxu0 %v6656
      %6835 = vmatpush.bf16.msra.mxu0 %v6654
      %6836 = vmatpush.bf16.msra.mxu0 %v6652
      %6837 = vmatpush.bf16.msra.mxu0 %v6650
      %6838 = vmatpush.bf16.msra.mxu0 %v6648
      %6839 = vmatmul.bf16.gmra.mxu0 %v6381
      %v6840 = vpop.f32.mrf.mxu0
      %v6841 = vadd.f32 %v6452, %v6840
      %v6842 = vpop.f32.mrf.mxu0
      %v6843 = vadd.f32 %v6452, %v6842
      %6844 = vdwg.mxu0
      %6845 = vmatpush.bf16.msra.mxu0 %v6678
      %6846 = vmatpush.bf16.msra.mxu0 %v6676
      %6847 = vmatpush.bf16.msra.mxu0 %v6674
      %6848 = vmatpush.bf16.msra.mxu0 %v6672
      %6849 = vmatpush.bf16.msra.mxu0 %v6670
      %6850 = vmatpush.bf16.msra.mxu0 %v6668
      %6851 = vmatpush.bf16.msra.mxu0 %v6666
      %6852 = vmatpush.bf16.msra.mxu0 %v6664
      %6853 = vmatmul.bf16.gmra.mxu0 %v6382
      %v6854 = vpop.f32.mrf.mxu0
      %v6855 = vadd.f32 %v6841, %v6854
      %v6856 = vpop.f32.mrf.mxu0
      %v6857 = vadd.f32 %v6843, %v6856
      %6858 = vdwg.mxu0
      %6859 = vmatpush.bf16.msra.mxu0 %v6694
      %6860 = vmatpush.bf16.msra.mxu0 %v6692
      %6861 = vmatpush.bf16.msra.mxu0 %v6690
      %6862 = vmatpush.bf16.msra.mxu0 %v6688
      %6863 = vmatpush.bf16.msra.mxu0 %v6686
      %6864 = vmatpush.bf16.msra.mxu0 %v6684
      %6865 = vmatpush.bf16.msra.mxu0 %v6682
      %6866 = vmatpush.bf16.msra.mxu0 %v6680
      %6867 = vmatmul.bf16.gmra.mxu0 %v6383
      %v6868 = vpop.f32.mrf.mxu0
      %v6869 = vadd.f32 %v6855, %v6868
      %v6870 = vpop.f32.mrf.mxu0
      %v6871 = vadd.f32 %v6857, %v6870
      %6872 = vdwg.mxu0
      %6873 = vmatpush.bf16.msra.mxu0 %v6710
      %6874 = vmatpush.bf16.msra.mxu0 %v6708
      %6875 = vmatpush.bf16.msra.mxu0 %v6706
      %6876 = vmatpush.bf16.msra.mxu0 %v6704
      %6877 = vmatpush.bf16.msra.mxu0 %v6702
      %6878 = vmatpush.bf16.msra.mxu0 %v6700
      %6879 = vmatpush.bf16.msra.mxu0 %v6698
      %6880 = vmatpush.bf16.msra.mxu0 %v6696
      %6881 = vmatmul.bf16.gmra.mxu0 %v6384
      %v6882 = vpop.f32.mrf.mxu0
      %v6883 = vadd.f32 %v6869, %v6882
      %v6884 = vpop.f32.mrf.mxu0
      %v6885 = vadd.f32 %v6871, %v6884
      %6886 = vdwg.mxu0
      %vm6887 = vcmp.gt.f32.partialorder %v6827, 0.0
      %vm6888 = vcmp.gt.f32.partialorder %v6883, 0.0
      %vm6889 = vcmp.gt.f32.partialorder %v6829, 0.0
      %vm6890 = vcmp.gt.f32.partialorder %v6885, 0.0
      %v6891 = vmul.f32 %v6827, 0.2
      %v6892 = vmul.f32 %v6883, 0.2
      %v6893 = vmul.f32 %v6829, 0.2
      %v6894 = vmul.f32 %v6885, 0.2
      %v6895 = vsel %vm6887, %v6827, %v6891
      %v6896 = vsel %vm6888, %v6883, %v6892
      %v6897 = vsel %vm6889, %v6829, %v6893
      %v6898 = vsel %vm6890, %v6885, %v6894
      %v6899 = vpack.c.bf16 %v6897, %v6895
      %v6900 = vpack.c.bf16 %v6898, %v6896
      %v6901 = vld [vmem:[#allocation14] sm:$0xf]
      %v6902 = vld [vmem:[#allocation14 + $0x4] sm:$0xf]
      %v6903 = vld [vmem:[#allocation14 + $0x8] sm:$0xf]
      %v6904 = vld [vmem:[#allocation14 + $0xc] sm:$0xf]
      %v6905 = vld [vmem:[#allocation14 + $0x10] sm:$0xf]
      %v6906 = vld [vmem:[#allocation14 + $0x14] sm:$0xf]
      %v6907 = vld [vmem:[#allocation14 + $0x18] sm:$0xf]
      %v6908 = vld [vmem:[#allocation14 + $0x1c] sm:$0xf]
      %v6909 = vld [vmem:[#allocation14 + $0x20] sm:$0xf]
      %v6910 = vld [vmem:[#allocation14 + $0x24] sm:$0xf]
      %v6911 = vld [vmem:[#allocation14 + $0x28] sm:$0xf]
      %v6912 = vld [vmem:[#allocation14 + $0x2c] sm:$0xf]
      %v6913 = vld [vmem:[#allocation14 + $0x30] sm:$0xf]
      %v6914 = vld [vmem:[#allocation14 + $0x34] sm:$0xf]
      %v6915 = vld [vmem:[#allocation14 + $0x38] sm:$0xf]
      %v6916 = vld [vmem:[#allocation14 + $0x3c] sm:$0xf]
      %v6917 = vld [vmem:[#allocation14 + $0x40] sm:$0xf]
      %v6918 = vld [vmem:[#allocation14 + $0x44] sm:$0xf]
      %v6919 = vld [vmem:[#allocation14 + $0x48] sm:$0xf]
      %v6920 = vld [vmem:[#allocation14 + $0x4c] sm:$0xf]
      %v6921 = vld [vmem:[#allocation14 + $0x50] sm:$0xf]
      %v6922 = vld [vmem:[#allocation14 + $0x54] sm:$0xf]
      %v6923 = vld [vmem:[#allocation14 + $0x58] sm:$0xf]
      %v6924 = vld [vmem:[#allocation14 + $0x5c] sm:$0xf]
      %v6925 = vld [vmem:[#allocation14 + $0x60] sm:$0xf]
      %v6926 = vld [vmem:[#allocation14 + $0x64] sm:$0xf]
      %v6927 = vld [vmem:[#allocation14 + $0x68] sm:$0xf]
      %v6928 = vld [vmem:[#allocation14 + $0x6c] sm:$0xf]
      %v6929 = vld [vmem:[#allocation14 + $0x70] sm:$0xf]
      %v6930 = vld [vmem:[#allocation14 + $0x74] sm:$0xf]
      %v6931 = vld [vmem:[#allocation14 + $0x78] sm:$0xf]
      %v6932 = vld [vmem:[#allocation14 + $0x7c] sm:$0xf]
      %v6933 = vld [vmem:[#allocation15] sm:$0x1]
      %v6935 = vperm.slane %v6933, 0
      %v6969 = vunpack.c.l.b16 %v6901
      %v6970 = vunpack.c.l.b16 %v6902
      %v6971 = vunpack.c.l.b16 %v6903
      %v6972 = vunpack.c.l.b16 %v6904
      %v6973 = vunpack.c.l.b16 %v6905
      %v6974 = vunpack.c.l.b16 %v6906
      %v6975 = vunpack.c.l.b16 %v6907
      %v6976 = vunpack.c.l.b16 %v6908
      %v6977 = vunpack.c.l.b16 %v6909
      %v6978 = vunpack.c.l.b16 %v6910
      %v6979 = vunpack.c.l.b16 %v6911
      %v6980 = vunpack.c.l.b16 %v6912
      %v6981 = vunpack.c.l.b16 %v6913
      %v6982 = vunpack.c.l.b16 %v6914
      %v6983 = vunpack.c.l.b16 %v6915
      %v6984 = vunpack.c.l.b16 %v6916
      %v6985 = vunpack.c.l.b16 %v6917
      %v6986 = vunpack.c.l.b16 %v6918
      %v6987 = vunpack.c.l.b16 %v6919
      %v6988 = vunpack.c.l.b16 %v6920
      %v6989 = vunpack.c.l.b16 %v6921
      %v6990 = vunpack.c.l.b16 %v6922
      %v6991 = vunpack.c.l.b16 %v6923
      %v6992 = vunpack.c.l.b16 %v6924
      %v6993 = vunpack.c.l.b16 %v6925
      %v6994 = vunpack.c.l.b16 %v6926
      %v6995 = vunpack.c.l.b16 %v6927
      %v6996 = vunpack.c.l.b16 %v6928
      %v6997 = vunpack.c.l.b16 %v6929
      %v6998 = vunpack.c.l.b16 %v6930
      %v6999 = vunpack.c.l.b16 %v6931
      %v7000 = vunpack.c.l.b16 %v6932
      %v7001 = vpack.c.b16 %v6970, %v6969
      %v7002 = vpack.c.b16 %v6972, %v6971
      %v7003 = vpack.c.b16 %v6974, %v6973
      %v7004 = vpack.c.b16 %v6976, %v6975
      %v7005 = vpack.c.b16 %v6978, %v6977
      %v7006 = vpack.c.b16 %v6980, %v6979
      %v7007 = vpack.c.b16 %v6982, %v6981
      %v7008 = vpack.c.b16 %v6984, %v6983
      %v7009 = vpack.c.b16 %v6986, %v6985
      %v7010 = vpack.c.b16 %v6988, %v6987
      %v7011 = vpack.c.b16 %v6990, %v6989
      %v7012 = vpack.c.b16 %v6992, %v6991
      %v7013 = vpack.c.b16 %v6994, %v6993
      %v7014 = vpack.c.b16 %v6996, %v6995
      %v7015 = vpack.c.b16 %v6998, %v6997
      %v7016 = vpack.c.b16 %v7000, %v6999
      %7033 = vmatpush.bf16.msra.mxu0 %v7008
      %7034 = vmatpush.bf16.msra.mxu0 %v7007
      %7035 = vmatpush.bf16.msra.mxu0 %v7006
      %7036 = vmatpush.bf16.msra.mxu0 %v7005
      %7037 = vmatpush.bf16.msra.mxu0 %v7004
      %7038 = vmatpush.bf16.msra.mxu0 %v7003
      %7039 = vmatpush.bf16.msra.mxu0 %v7002
      %7040 = vmatpush.bf16.msra.mxu0 %v7001
      %7041 = vmatmul.bf16.gmra.mxu0 %v6899
      %v7042 = vpop.f32.mrf.mxu0
      %v7043 = vadd.f32 %v6935, %v7042
      %v7044 = vpop.f32.mrf.mxu0
      %v7045 = vadd.f32 %v6935, %v7044
      %7046 = vdwg.mxu0
      %7047 = vmatpush.bf16.msra.mxu0 %v7016
      %7048 = vmatpush.bf16.msra.mxu0 %v7015
      %7049 = vmatpush.bf16.msra.mxu0 %v7014
      %7050 = vmatpush.bf16.msra.mxu0 %v7013
      %7051 = vmatpush.bf16.msra.mxu0 %v7012
      %7052 = vmatpush.bf16.msra.mxu0 %v7011
      %7053 = vmatpush.bf16.msra.mxu0 %v7010
      %7054 = vmatpush.bf16.msra.mxu0 %v7009
      %7055 = vmatmul.bf16.gmra.mxu0 %v6900
      %v7056 = vpop.f32.mrf.mxu0
      %v7057 = vadd.f32 %v7043, %v7056
      %v7058 = vpop.f32.mrf.mxu0
      %v7059 = vadd.f32 %v7045, %v7058
      %7060 = vdwg.mxu0
      %vm7061 = vcmp.gt.f32.partialorder %v7057, 0.0
      %vm7062 = vcmp.gt.f32.partialorder %v7059, 0.0
      %v7063 = vmul.f32 %v7057, 0.2
      %v7064 = vmul.f32 %v7059, 0.2
      %v7065 = vsel %vm7061, %v7057, %v7063
      %v7066 = vsel %vm7062, %v7059, %v7064
      %v7067 = vpack.c.bf16 %v7065, %v7065
      %v7068 = vpack.c.bf16 %v7066, %v7066
      %v7069 = vld [vmem:[#allocation17] sm:$0x1]
      %v7070 = vunpack.c.l.bf16 %v7069
      %v7071 = vunpack.c.l.bf16 %v7067
      %v7072 = vunpack.c.l.bf16 %v7068
      %v7073 = vperm.slane %v7070, 0
      %v7074 = vmul.f32 %v7071, %v7073
      %v7075 = vmul.f32 %v7072, %v7073
      %7076 = vadd.xlane.f32.xlu0 %v7074
      %v7077 = vpop.xlane.xlu0 %7076
      %7078 = vadd.xlane.f32.xlu0 %v7075
      %v7079 = vpop.xlane.xlu0 %7078
      %v7080 = vld [vmem:[#allocation3] sm:$0x1]
      %v7082 = vperm.slane %v7080, 0
      %v7084 = vadd.f32 %v7077, %v7082
      %v7085 = vadd.f32 %v7079, %v7082
      %vm7086 = vcmask 7168
      %7087 = vst.msk [vmem:[%s11] sm:$0xff] %vm7086, %v7084
      %7088 = vst.msk [vmem:[%s11 + $0x8] sm:$0xff] %vm7086, %v7085
    $region89: #{discriminator_forward.1} parent=1 // pred_fallthru
      _
    // Predicated region
    $region90: #{discriminator_forward.1} parent=1 // pred_check
      _
    $region91: #{discriminator_forward.1} parent=1 // pred_check_branch
      %7090 = sbr.rel (0) target = $region93
    $region92: #{discriminator_forward.1} parent=1 // pred_region
      _
    $region93: #{discriminator_forward.1} parent=1 // pred_fallthru
      _
    // Predicated region
    $region94: #{discriminator_forward.1} parent=1 // pred_check
      _
    $region95: #{discriminator_forward.1} parent=1 // pred_check_branch
      %7092 = sbr.rel (0) target = $region97
    $region96: #{discriminator_forward.1} parent=1 // pred_region
      _
    $region97: #{discriminator_forward.1} parent=1 // pred_fallthru
      _
    %7093 = vsyncpa [#allocation5], 1
    %7094 = vsyncpa [#allocation7], 1
    %7095 = vsyncpa [#allocation10], 1
    %7096 = vsyncpa [#allocation13], 1
    %7097 = vsyncpa [#allocation16], 1

</llo_original>
